<compile_context>
chip_gen: v5e
topology: v5e:2x2
jax: 0.10.0
libtpu: 0.0.40
codegen_flags: <defaults>
</compile_context>

<pallas_src>
import math

import jax
import jax.numpy as jnp
from jax import lax
from jax.experimental import pallas as pl
from jax.experimental.pallas import tpu as pltpu


_SQRT_HALF = 1.0 / math.sqrt(2.0)


def _gelu_exact(v):
    # torch.nn.GELU() default (approximate='none'): exact erf-based GELU.
    return 0.5 * v * (1.0 + lax.erf(v * _SQRT_HALF))


def _make_kernel(n_trends, input_size):
    """Build the kernel body with the packed-column layout baked in."""
    NT, NI = n_trends, input_size
    # Column layout of the packed `cols` (HP, NT+NI+6) parameter block:
    #   [0:NT)        Wt_in columns        (trend input layer weights)
    #   NT            bt_in                (trend input bias)
    #   NT+1          bt_h                 (trend hidden bias)
    #   NT+2          wt_out               (trend output weights)
    #   [NT+3:NT+3+NI) Ws_in columns       (season input layer weights)
    #   NT+3+NI       bs_in
    #   NT+3+NI+1     bs_h
    #   NT+3+NI+2     ws_out
    IB_T_IN = NT
    IB_T_H = NT + 1
    IW_T_OUT = NT + 2
    IW_S = NT + 3
    IB_S_IN = IW_S + NI
    IB_S_H = IW_S + NI + 1
    IW_S_OUT = IW_S + NI + 2

    def kernel(t_ref, x_ref, tr_ref, f_ref, c_ref, wh_ref, sc_ref, o_ref):
        t = t_ref[...]                                       # (1, BM), lane-dense

        # ---- Fourier: sum_k R_k * sin(freq_k * t + phi_k)  (single EUP sin) --
        freq = f_ref[:, 0:1]                                 # (TK, 1)
        amp = f_ref[:, 1:2]                                  # (TK, 1)
        phi = f_ref[:, 2:3]                                  # (TK, 1)
        fourier = jnp.sum(amp * jnp.sin(freq * t + phi),
                          axis=0, keepdims=True)             # (1, BM)

        # ---- Trend branch: activations are (HP, BM), batch on lanes ----------
        # Input layer (K = n_trends): rank-1 VPU updates, no tiny-K MXU matmul.
        pre_t = c_ref[:, IB_T_IN:IB_T_IN + 1]                # bias column (HP, 1)
        for k in range(NT):
            pre_t = pre_t + c_ref[:, k:k + 1] * tr_ref[k:k + 1, :]
        h = jnp.tanh(pre_t)                                  # (HP, BM)
        z = jnp.dot(wh_ref[0], h, preferred_element_type=jnp.float32)
        z = z + c_ref[:, IB_T_H:IB_T_H + 1]
        g = _gelu_exact(z)
        # Output projection (N = 1): VPU mul + sublane reduce, not an MXU matmul.
        yhat_trend = jnp.sum(c_ref[:, IW_T_OUT:IW_T_OUT + 1] * g,
                             axis=0, keepdims=True) + sc_ref[:, 0:1]   # (1, BM)

        base = yhat_trend + fourier                          # (1, BM)

        # ---- Season branch on residual ---------------------------------------
        pre_s = c_ref[:, IB_S_IN:IB_S_IN + 1]
        for k in range(NI):
            pre_s = pre_s + c_ref[:, IW_S + k:IW_S + k + 1] * (x_ref[k:k + 1, :] - base)
        s = jnp.tanh(pre_s)
        zs = jnp.dot(wh_ref[1], s, preferred_element_type=jnp.float32)
        zs = zs + c_ref[:, IB_S_H:IB_S_H + 1]
        gs = _gelu_exact(zs)
        yhat_season = jnp.sum(c_ref[:, IW_S_OUT:IW_S_OUT + 1] * gs,
                              axis=0, keepdims=True) + sc_ref[:, 1:2]  # (1, BM)

        o_ref[...] = yhat_season + base                      # lane-dense store

    return kernel


# ---------------------------------------------------------------------------
# Wrapper: parameter glue + pallas_call
# ---------------------------------------------------------------------------
def neural_harmonic_forward(x, t, trend, params, *, k_order=5, t_order=1, bm=256):
    assert bm % 128 == 0, "batch tile must be lane-aligned (multiple of 128)"
    x = x.astype(jnp.float32)
    t = t.astype(jnp.float32)
    trend = trend.astype(jnp.float32)

    B, input_size = x.shape
    n_trends = trend.shape[1]
    hidden = params["wt_h"].shape[0]
    TK = t_order * k_order

    # ---- Fourier glue: fold A*sin + B*cos -> R*sin(theta + phi) ------------
    T_ = jax.nn.softplus(params["Ts"].astype(jnp.float32)) + 1.0      # (t_order,)
    ks = jnp.arange(k_order, dtype=jnp.float32)
    freq = (2.0 * math.pi) * ks[None, :] / T_[:, None]                # (t_order, k_order)
    A = params["ABs"][..., 0].astype(jnp.float32)
    Bc = params["ABs"][..., 1].astype(jnp.float32)
    R = jnp.sqrt(A * A + Bc * Bc)
    phi = jnp.arctan2(Bc, A)
    f_tab = jnp.stack([freq.reshape(TK), R.reshape(TK), phi.reshape(TK)], axis=1)  # (TK, 3)

    # ---- Pad hidden to a lane/sublane friendly size (zero pad is exact) ----
    HP = max(64, ((hidden + 63) // 64) * 64)
    ph = HP - hidden

    def padr(w):   # pad the hidden (output-row) axis of an (out, in) weight
        return jnp.pad(w.astype(jnp.float32), ((0, ph), (0, 0)))

    def padv(v):   # pad a length-`hidden` vector
        return jnp.pad(v.astype(jnp.float32).reshape(-1), (0, ph))

    cols = jnp.concatenate(
        [padr(params["wt_in"]),                       # (HP, n_trends)
         padv(params["bt_in"])[:, None],
         padv(params["bt_h"])[:, None],
         padv(params["wt_out"])[:, None],
         padr(params["ws_in"]),                       # (HP, input_size)
         padv(params["bs_in"])[:, None],
         padv(params["bs_h"])[:, None],
         padv(params["ws_out"])[:, None]],
        axis=1)                                       # (HP, n_trends + input_size + 6)
    NC = n_trends + input_size + 6

    w_hid = jnp.stack(
        [jnp.pad(params["wt_h"].astype(jnp.float32), ((0, ph), (0, ph))),
         jnp.pad(params["ws_h"].astype(jnp.float32), ((0, ph), (0, ph)))],
        axis=0)                                       # (2, HP, HP)

    sc = jnp.stack([params["bt_out"].reshape(()),
                    params["bs_out"].reshape(())]).reshape(1, 2).astype(jnp.float32)

    # ---- Batch layout: batch on the lane axis, tiled by bm ------------------
    num_tiles = max(1, (B + bm - 1) // bm)
    Bp = num_tiles * bm
    padb = Bp - B
    t_row = jnp.pad(t.reshape(1, B), ((0, 0), (0, padb)))             # (1, Bp)
    x_T = jnp.pad(x.T, ((0, 0), (0, padb)))                           # (input_size, Bp)
    tr_T = jnp.pad(trend.T, ((0, 0), (0, padb)))                      # (n_trends, Bp)

    kernel = _make_kernel(n_trends, input_size)

    def rep(shape):   # whole-array block, resident across the batch grid
        return pl.BlockSpec(shape, lambda i, _s=shape: (0,) * len(_s))

    out = pl.pallas_call(
        kernel,
        out_shape=jax.ShapeDtypeStruct((1, Bp), jnp.float32),
        grid=(num_tiles,),
        in_specs=[
            pl.BlockSpec((1, bm), lambda i: (0, i)),            # t
            pl.BlockSpec((input_size, bm), lambda i: (0, i)),   # x^T
            pl.BlockSpec((n_trends, bm), lambda i: (0, i)),     # trend^T
            rep((TK, 3)),                                       # fourier table
            rep((HP, NC)),                                      # packed columns
            rep((2, HP, HP)),                                   # hidden weights
            rep((1, 2)),                                        # output biases
        ],
        out_specs=pl.BlockSpec((1, bm), lambda i: (0, i)),
        compiler_params=pltpu.CompilerParams(
            dimension_semantics=("parallel",)),
    )(t_row, x_T, tr_T, f_tab, cols, w_hid, sc)

    return out.reshape(Bp, 1)[:B]


# ---------------------------------------------------------------------------
# Deterministic parameter init (PyTorch Linear convention: W is (out, in))
# ---------------------------------------------------------------------------
def init_params(key, input_size=3, hidden=50, k_order=5, t_order=1, n_trends=3):
    keys = jax.random.split(key, 6)

    def linear(k_, fan_in, fan_out):
        bound = 1.0 / math.sqrt(fan_in)
        kw, kb = jax.random.split(k_)
        w = jax.random.uniform(kw, (fan_out, fan_in), jnp.float32, -bound, bound)
        b = jax.random.uniform(kb, (fan_out,), jnp.float32, -bound, bound)
        return w, b

    p = {}
    p["wt_in"], p["bt_in"] = linear(keys[0], n_trends, hidden)
    p["wt_h"], p["bt_h"] = linear(keys[1], hidden, hidden)
    p["wt_out"], p["bt_out"] = linear(keys[2], hidden, 1)
    p["ws_in"], p["bs_in"] = linear(keys[3], input_size, hidden)
    p["ws_h"], p["bs_h"] = linear(keys[4], hidden, hidden)
    p["ws_out"], p["bs_out"] = linear(keys[5], hidden, 1)
    step_period = 3.0
    p["Ts"] = jnp.linspace(step_period, step_period * t_order, t_order).astype(jnp.float32)
    p["ABs"] = jnp.full((t_order, k_order, 2), 0.01, dtype=jnp.float32)
    # self.T and self.constant exist in the module but are unused in forward().
    return p


# ---------------------------------------------------------------------------
# Pure-JAX reference (faithful to the PyTorch forward) for correctness check
# ---------------------------------------------------------------------------
def reference_forward(x, t, trend, params, *, k_order=5, t_order=1):
    fourier = jnp.zeros_like(t)
    for ti in range(t_order):
        T_ = jax.nn.softplus(params["Ts"][ti]) + 1.0
        for k in range(k_order):
            A = params["ABs"][ti, k, 0]
            B = params["ABs"][ti, k, 1]
            fourier = fourier + A * jnp.sin(2.0 * jnp.pi * t * k / T_) \
                              + B * jnp.cos(2.0 * jnp.pi * t * k / T_)
    gelu = lambda v: 0.5 * v * (1.0 + lax.erf(v / jnp.sqrt(2.0)))
    h = jnp.tanh(trend @ params["wt_in"].T + params["bt_in"])
    h = gelu(h @ params["wt_h"].T + params["bt_h"])
    yhat_trend = h @ params["wt_out"].T + params["bt_out"]
    residual = x - (yhat_trend + fourier)
    s = jnp.tanh(residual @ params["ws_in"].T + params["bs_in"])
    s = gelu(s @ params["ws_h"].T + params["bs_h"])
    yhat_season = s @ params["ws_out"].T + params["bs_out"]
    return yhat_season + yhat_trend + fourier


if __name__ == "__main__":
    key = jax.random.PRNGKey(0)
    k_params, kx, ktrend = jax.random.split(key, 3)

    B, input_size, n_trends, hidden = 1024, 3, 3, 50
    params = init_params(k_params, input_size=input_size, hidden=hidden,
                         k_order=5, t_order=1, n_trends=n_trends)

    x = jax.random.normal(kx, (B, input_size), dtype=jnp.float32)
    t = jnp.linspace(0.0, 12.0, B, dtype=jnp.float32).reshape(B, 1)
    trend = jax.random.normal(ktrend, (B, n_trends), dtype=jnp.float32)

    out = neural_harmonic_forward(x, t, trend, params, bm=256)   # 4 parallel tiles
    out = jax.block_until_ready(out)

    ref = reference_forward(x, t, trend, params)
    assert out.shape == (B, 1)
    # Tolerance covers the R*sin(theta+phi) refactoring, hidden zero-padding,
    # and MXU accumulation-order differences (all ~1e-6..1e-5 level).
    max_err = float(jnp.max(jnp.abs(out - ref)))
    assert jnp.allclose(out, ref, atol=5e-4, rtol=5e-4), max_err
    print("KERNEL_OK")
</pallas_src>

<mosaic_0001>
module attributes {stable_mosaic.version = 11 : i64} {
  func.func @kernel(%arg0: i32, %arg1: memref<1x256xf32, #tpu.memory_space<vmem>>, %arg2: memref<3x256xf32, #tpu.memory_space<vmem>>, %arg3: memref<3x256xf32, #tpu.memory_space<vmem>>, %arg4: memref<5x3xf32, #tpu.memory_space<vmem>>, %arg5: memref<64x12xf32, #tpu.memory_space<vmem>>, %arg6: memref<2x64x64xf32, #tpu.memory_space<vmem>>, %arg7: memref<1x2xf32, #tpu.memory_space<vmem>>, %arg8: memref<1x256xf32, #tpu.memory_space<vmem>>) attributes {dimension_semantics = [#tpu.dimension_semantics<parallel>], iteration_bounds = array<i64: 4>, scalar_prefetch = 0 : i64, scratch_operands = 0 : i64, tpu.core_type = #tpu.core_type<tc>, window_params = [{transform_indices = @transform_0, window_bounds = array<i64: 1, 256>}, {transform_indices = @transform_1, window_bounds = array<i64: 3, 256>}, {transform_indices = @transform_2, window_bounds = array<i64: 3, 256>}, {pipeline_mode = #tpu.pipeline_mode<synchronous>, transform_indices = @transform_3, window_bounds = array<i64: 5, 3>}, {pipeline_mode = #tpu.pipeline_mode<synchronous>, transform_indices = @transform_4, window_bounds = array<i64: 64, 12>}, {pipeline_mode = #tpu.pipeline_mode<synchronous>, transform_indices = @transform_5, window_bounds = array<i64: 2, 64, 64>}, {pipeline_mode = #tpu.pipeline_mode<synchronous>, transform_indices = @transform_6, window_bounds = array<i64: 1, 2>}, {transform_indices = @transform_7, window_bounds = array<i64: 1, 256>}]} {
    %c0 = arith.constant 0 : index
    %c0_0 = arith.constant 0 : index
    %0 = vector.load %arg1[%c0, %c0_0] : memref<1x256xf32, #tpu.memory_space<vmem>>, vector<1x256xf32>
    %c0_1 = arith.constant 0 : index
    %c0_2 = arith.constant 0 : index
    %1 = vector.load %arg4[%c0_1, %c0_2] : memref<5x3xf32, #tpu.memory_space<vmem>>, vector<5x1xf32>
    %c0_3 = arith.constant 0 : index
    %c1 = arith.constant 1 : index
    %2 = vector.load %arg4[%c0_3, %c1] : memref<5x3xf32, #tpu.memory_space<vmem>>, vector<5x1xf32>
    %c0_4 = arith.constant 0 : index
    %c2 = arith.constant 2 : index
    %3 = vector.load %arg4[%c0_4, %c2] : memref<5x3xf32, #tpu.memory_space<vmem>>, vector<5x1xf32>
    %4 = vector.broadcast %1 : vector<5x1xf32> to vector<5x256xf32>
    %5 = vector.broadcast %0 : vector<1x256xf32> to vector<5x256xf32>
    %6 = arith.mulf %4, %5 : vector<5x256xf32>
    %7 = vector.broadcast %3 : vector<5x1xf32> to vector<5x256xf32>
    %8 = arith.addf %6, %7 : vector<5x256xf32>
    %9 = math.sin %8 : vector<5x256xf32>
    %10 = vector.broadcast %2 : vector<5x1xf32> to vector<5x256xf32>
    %11 = arith.mulf %10, %9 : vector<5x256xf32>
    %cst = arith.constant dense<0.000000e+00> : vector<256xf32>
    %12 = vector.multi_reduction <add>, %11, %cst [0] : vector<5x256xf32> to vector<256xf32>
    %13 = vector.shape_cast %12 : vector<256xf32> to vector<1x256xf32>
    %c0_5 = arith.constant 0 : index
    %c3 = arith.constant 3 : index
    %14 = vector.load %arg5[%c0_5, %c3] : memref<64x12xf32, #tpu.memory_space<vmem>>, vector<64x1xf32>
    %c0_6 = arith.constant 0 : index
    %c0_7 = arith.constant 0 : index
    %15 = vector.load %arg5[%c0_6, %c0_7] : memref<64x12xf32, #tpu.memory_space<vmem>>, vector<64x1xf32>
    %c0_8 = arith.constant 0 : index
    %c0_9 = arith.constant 0 : index
    %16 = vector.load %arg3[%c0_8, %c0_9] : memref<3x256xf32, #tpu.memory_space<vmem>>, vector<1x256xf32>
    %17 = vector.broadcast %15 : vector<64x1xf32> to vector<64x256xf32>
    %18 = vector.broadcast %16 : vector<1x256xf32> to vector<64x256xf32>
    %19 = arith.mulf %17, %18 : vector<64x256xf32>
    %20 = vector.broadcast %14 : vector<64x1xf32> to vector<64x256xf32>
    %21 = arith.addf %20, %19 : vector<64x256xf32>
    %c0_10 = arith.constant 0 : index
    %c1_11 = arith.constant 1 : index
    %22 = vector.load %arg5[%c0_10, %c1_11] : memref<64x12xf32, #tpu.memory_space<vmem>>, vector<64x1xf32>
    %c1_12 = arith.constant 1 : index
    %c0_13 = arith.constant 0 : index
    %23 = vector.load %arg3[%c1_12, %c0_13] : memref<3x256xf32, #tpu.memory_space<vmem>>, vector<1x256xf32>
    %24 = vector.broadcast %22 : vector<64x1xf32> to vector<64x256xf32>
    %25 = vector.broadcast %23 : vector<1x256xf32> to vector<64x256xf32>
    %26 = arith.mulf %24, %25 : vector<64x256xf32>
    %27 = arith.addf %21, %26 : vector<64x256xf32>
    %c0_14 = arith.constant 0 : index
    %c2_15 = arith.constant 2 : index
    %28 = vector.load %arg5[%c0_14, %c2_15] : memref<64x12xf32, #tpu.memory_space<vmem>>, vector<64x1xf32>
    %c2_16 = arith.constant 2 : index
    %c0_17 = arith.constant 0 : index
    %29 = vector.load %arg3[%c2_16, %c0_17] : memref<3x256xf32, #tpu.memory_space<vmem>>, vector<1x256xf32>
    %30 = vector.broadcast %28 : vector<64x1xf32> to vector<64x256xf32>
    %31 = vector.broadcast %29 : vector<1x256xf32> to vector<64x256xf32>
    %32 = arith.mulf %30, %31 : vector<64x256xf32>
    %33 = arith.addf %27, %32 : vector<64x256xf32>
    %34 = math.tanh %33 : vector<64x256xf32>
    %c0_18 = arith.constant 0 : index
    %c0_19 = arith.constant 0 : index
    %c0_20 = arith.constant 0 : index
    %35 = vector.load %arg6[%c0_18, %c0_19, %c0_20] : memref<2x64x64xf32, #tpu.memory_space<vmem>>, vector<1x64x64xf32>
    %36 = vector.shape_cast %35 : vector<1x64x64xf32> to vector<64x64xf32>
    %cst_21 = arith.constant dense<0.000000e+00> : vector<64x256xf32>
    %37 = tpu.matmul %36, %34, %cst_21 {dimension_numbers = #tpu.dot_dimension_numbers<[1], [0], [0], [1], [0, 0, 1, 1], [], []>} : vector<64x64xf32>, vector<64x256xf32>, vector<64x256xf32> -> vector<64x256xf32>
    %c0_22 = arith.constant 0 : index
    %c4 = arith.constant 4 : index
    %38 = vector.load %arg5[%c0_22, %c4] : memref<64x12xf32, #tpu.memory_space<vmem>>, vector<64x1xf32>
    %39 = vector.broadcast %38 : vector<64x1xf32> to vector<64x256xf32>
    %40 = arith.addf %37, %39 : vector<64x256xf32>
    %cst_23 = arith.constant 5.000000e-01 : f32
    %41 = vector.broadcast %cst_23 : f32 to vector<64x256xf32>
    %42 = arith.mulf %41, %40 : vector<64x256xf32>
    %cst_24 = arith.constant 0.707106769 : f32
    %43 = vector.broadcast %cst_24 : f32 to vector<64x256xf32>
    %44 = arith.mulf %40, %43 : vector<64x256xf32>
    %45 = math.erf %44 : vector<64x256xf32>
    %cst_25 = arith.constant 1.000000e+00 : f32
    %46 = vector.broadcast %cst_25 : f32 to vector<64x256xf32>
    %47 = arith.addf %46, %45 : vector<64x256xf32>
    %48 = arith.mulf %42, %47 : vector<64x256xf32>
    %c0_26 = arith.constant 0 : index
    %c5 = arith.constant 5 : index
    %49 = vector.load %arg5[%c0_26, %c5] : memref<64x12xf32, #tpu.memory_space<vmem>>, vector<64x1xf32>
    %50 = vector.broadcast %49 : vector<64x1xf32> to vector<64x256xf32>
    %51 = arith.mulf %50, %48 : vector<64x256xf32>
    %cst_27 = arith.constant dense<0.000000e+00> : vector<256xf32>
    %52 = vector.multi_reduction <add>, %51, %cst_27 [0] : vector<64x256xf32> to vector<256xf32>
    %53 = vector.shape_cast %52 : vector<256xf32> to vector<1x256xf32>
    %c0_28 = arith.constant 0 : index
    %c0_29 = arith.constant 0 : index
    %54 = vector.load %arg7[%c0_28, %c0_29] : memref<1x2xf32, #tpu.memory_space<vmem>>, vector<1x1xf32>
    %55 = vector.broadcast %54 : vector<1x1xf32> to vector<1x256xf32>
    %56 = arith.addf %53, %55 : vector<1x256xf32>
    %57 = arith.addf %56, %13 : vector<1x256xf32>
    %c0_30 = arith.constant 0 : index
    %c9 = arith.constant 9 : index
    %58 = vector.load %arg5[%c0_30, %c9] : memref<64x12xf32, #tpu.memory_space<vmem>>, vector<64x1xf32>
    %c0_31 = arith.constant 0 : index
    %c6 = arith.constant 6 : index
    %59 = vector.load %arg5[%c0_31, %c6] : memref<64x12xf32, #tpu.memory_space<vmem>>, vector<64x1xf32>
    %c0_32 = arith.constant 0 : index
    %c0_33 = arith.constant 0 : index
    %60 = vector.load %arg2[%c0_32, %c0_33] : memref<3x256xf32, #tpu.memory_space<vmem>>, vector<1x256xf32>
    %61 = arith.subf %60, %57 : vector<1x256xf32>
    %62 = vector.broadcast %59 : vector<64x1xf32> to vector<64x256xf32>
    %63 = vector.broadcast %61 : vector<1x256xf32> to vector<64x256xf32>
    %64 = arith.mulf %62, %63 : vector<64x256xf32>
    %65 = vector.broadcast %58 : vector<64x1xf32> to vector<64x256xf32>
    %66 = arith.addf %65, %64 : vector<64x256xf32>
    %c0_34 = arith.constant 0 : index
    %c7 = arith.constant 7 : index
    %67 = vector.load %arg5[%c0_34, %c7] : memref<64x12xf32, #tpu.memory_space<vmem>>, vector<64x1xf32>
    %c1_35 = arith.constant 1 : index
    %c0_36 = arith.constant 0 : index
    %68 = vector.load %arg2[%c1_35, %c0_36] : memref<3x256xf32, #tpu.memory_space<vmem>>, vector<1x256xf32>
    %69 = arith.subf %68, %57 : vector<1x256xf32>
    %70 = vector.broadcast %67 : vector<64x1xf32> to vector<64x256xf32>
    %71 = vector.broadcast %69 : vector<1x256xf32> to vector<64x256xf32>
    %72 = arith.mulf %70, %71 : vector<64x256xf32>
    %73 = arith.addf %66, %72 : vector<64x256xf32>
    %c0_37 = arith.constant 0 : index
    %c8 = arith.constant 8 : index
    %74 = vector.load %arg5[%c0_37, %c8] : memref<64x12xf32, #tpu.memory_space<vmem>>, vector<64x1xf32>
    %c2_38 = arith.constant 2 : index
    %c0_39 = arith.constant 0 : index
    %75 = vector.load %arg2[%c2_38, %c0_39] : memref<3x256xf32, #tpu.memory_space<vmem>>, vector<1x256xf32>
    %76 = arith.subf %75, %57 : vector<1x256xf32>
    %77 = vector.broadcast %74 : vector<64x1xf32> to vector<64x256xf32>
    %78 = vector.broadcast %76 : vector<1x256xf32> to vector<64x256xf32>
    %79 = arith.mulf %77, %78 : vector<64x256xf32>
    %80 = arith.addf %73, %79 : vector<64x256xf32>
    %81 = math.tanh %80 : vector<64x256xf32>
    %c1_40 = arith.constant 1 : index
    %c0_41 = arith.constant 0 : index
    %c0_42 = arith.constant 0 : index
    %82 = vector.load %arg6[%c1_40, %c0_41, %c0_42] : memref<2x64x64xf32, #tpu.memory_space<vmem>>, vector<1x64x64xf32>
    %83 = vector.shape_cast %82 : vector<1x64x64xf32> to vector<64x64xf32>
    %cst_43 = arith.constant dense<0.000000e+00> : vector<64x256xf32>
    %84 = tpu.matmul %83, %81, %cst_43 {dimension_numbers = #tpu.dot_dimension_numbers<[1], [0], [0], [1], [0, 0, 1, 1], [], []>} : vector<64x64xf32>, vector<64x256xf32>, vector<64x256xf32> -> vector<64x256xf32>
    %c0_44 = arith.constant 0 : index
    %c10 = arith.constant 10 : index
    %85 = vector.load %arg5[%c0_44, %c10] : memref<64x12xf32, #tpu.memory_space<vmem>>, vector<64x1xf32>
    %86 = vector.broadcast %85 : vector<64x1xf32> to vector<64x256xf32>
    %87 = arith.addf %84, %86 : vector<64x256xf32>
    %cst_45 = arith.constant 5.000000e-01 : f32
    %88 = vector.broadcast %cst_45 : f32 to vector<64x256xf32>
    %89 = arith.mulf %88, %87 : vector<64x256xf32>
    %cst_46 = arith.constant 0.707106769 : f32
    %90 = vector.broadcast %cst_46 : f32 to vector<64x256xf32>
    %91 = arith.mulf %87, %90 : vector<64x256xf32>
    %92 = math.erf %91 : vector<64x256xf32>
    %cst_47 = arith.constant 1.000000e+00 : f32
    %93 = vector.broadcast %cst_47 : f32 to vector<64x256xf32>
    %94 = arith.addf %93, %92 : vector<64x256xf32>
    %95 = arith.mulf %89, %94 : vector<64x256xf32>
    %c0_48 = arith.constant 0 : index
    %c11 = arith.constant 11 : index
    %96 = vector.load %arg5[%c0_48, %c11] : memref<64x12xf32, #tpu.memory_space<vmem>>, vector<64x1xf32>
    %97 = vector.broadcast %96 : vector<64x1xf32> to vector<64x256xf32>
    %98 = arith.mulf %97, %95 : vector<64x256xf32>
    %cst_49 = arith.constant dense<0.000000e+00> : vector<256xf32>
    %99 = vector.multi_reduction <add>, %98, %cst_49 [0] : vector<64x256xf32> to vector<256xf32>
    %100 = vector.shape_cast %99 : vector<256xf32> to vector<1x256xf32>
    %c0_50 = arith.constant 0 : index
    %c1_51 = arith.constant 1 : index
    %101 = vector.load %arg7[%c0_50, %c1_51] : memref<1x2xf32, #tpu.memory_space<vmem>>, vector<1x1xf32>
    %102 = vector.broadcast %101 : vector<1x1xf32> to vector<1x256xf32>
    %103 = arith.addf %100, %102 : vector<1x256xf32>
    %104 = arith.addf %103, %57 : vector<1x256xf32>
    %c0_52 = arith.constant 0 : index
    %c0_53 = arith.constant 0 : index
    %105 = vector.load %arg8[%c0_52, %c0_53] : memref<1x256xf32, #tpu.memory_space<vmem>>, vector<1x256xf32>
    tpu.vector_store %arg8[%c0_52, %c0_53], %104 {strides = array<i32>} : memref<1x256xf32, #tpu.memory_space<vmem>>, vector<1x256xf32>,
    return
  }
  func.func @transform_0(%arg0: i32) -> (i32, i32) {
    %c0_i32 = arith.constant 0 : i32
    %c0_i32_0 = arith.constant 0 : i32
    return %c0_i32, %arg0 : i32, i32
  }
  func.func @transform_1(%arg0: i32) -> (i32, i32) {
    %c0_i32 = arith.constant 0 : i32
    %c0_i32_0 = arith.constant 0 : i32
    return %c0_i32, %arg0 : i32, i32
  }
  func.func @transform_2(%arg0: i32) -> (i32, i32) {
    %c0_i32 = arith.constant 0 : i32
    %c0_i32_0 = arith.constant 0 : i32
    return %c0_i32, %arg0 : i32, i32
  }
  func.func @transform_3(%arg0: i32) -> (i32, i32) {
    %c0_i32 = arith.constant 0 : i32
    %c0_i32_0 = arith.constant 0 : i32
    %c0_i32_1 = arith.constant 0 : i32
    return %c0_i32, %c0_i32_0 : i32, i32
  }
  func.func @transform_4(%arg0: i32) -> (i32, i32) {
    %c0_i32 = arith.constant 0 : i32
    %c0_i32_0 = arith.constant 0 : i32
    %c0_i32_1 = arith.constant 0 : i32
    return %c0_i32, %c0_i32_0 : i32, i32
  }
  func.func @transform_5(%arg0: i32) -> (i32, i32, i32) {
    %c0_i32 = arith.constant 0 : i32
    %c0_i32_0 = arith.constant 0 : i32
    %c0_i32_1 = arith.constant 0 : i32
    %c0_i32_2 = arith.constant 0 : i32
    return %c0_i32, %c0_i32_0, %c0_i32_1 : i32, i32, i32
  }
  func.func @transform_6(%arg0: i32) -> (i32, i32) {
    %c0_i32 = arith.constant 0 : i32
    %c0_i32_0 = arith.constant 0 : i32
    %c0_i32_1 = arith.constant 0 : i32
    return %c0_i32, %c0_i32_0 : i32, i32
  }
  func.func @transform_7(%arg0: i32) -> (i32, i32) {
    %c0_i32 = arith.constant 0 : i32
    %c0_i32_0 = arith.constant 0 : i32
    return %c0_i32, %arg0 : i32, i32
  }
}

</mosaic_0001>

<llo_original>
// kernel: tpu_custom_call.1
$region0: #{tpu_custom_call.1}
  #allocation0 [shape = 'u32[]', space=smem, size = 0x4, offset = 0x4, fixed_abs, tag = 'smem constant byte address 0x4 - core index']
  #allocation1 [shape = 'u32[72,128]{1,0:T(1,128)}', space=vmem, size = 0x9000, scoped, tag = 'internal scratch']
  %s0 = inlined_call_operand.vmem [shape: f32[1,1024], index: 0, kind: input, shape index: {}]
  %s1 = inlined_call_operand.vmem [shape: f32[3,1024], index: 1, kind: input, shape index: {}]
  %s2 = inlined_call_operand.vmem [shape: f32[3,1024], index: 2, kind: input, shape index: {}]
  %s3 = inlined_call_operand.vmem [shape: f32[5,3], index: 3, kind: input, shape index: {}]
  %s4 = inlined_call_operand.vmem [shape: f32[64,12], index: 4, kind: input, shape index: {}]
  %s5 = inlined_call_operand.hbm [shape: f32[2,64,64], index: 5, kind: input, shape index: {}]
  %s6 = inlined_call_operand.vmem [shape: f32[1,2], index: 6, kind: input, shape index: {}]
  %s7 = inlined_call_operand.hbm [shape: f32[1,1024], index: 7, kind: output, shape index: {}]
  %s8 = sld [smem:[#allocation0]]
  $region65: #{tpu_custom_call.1} parent=0
    _
  %s10 = ssub.s32 1, %s8
  %s11 = scalar_select 0, %s10, %s8
  $region1: #{tpu_custom_call.1} parent=0
    #allocation2 [shape = 'u8[65536]{0}', space=vmem, size = 0x10000, scoped, tag = 'input window, operand 5, single buffered']
    #allocation3 [shape = 's32[2]{0}', space=sflag, size = 0x8, scoped, tag = 'scoped memory for tpu_custom_call.1']
    #allocation4 [shape = 's32[2]{0}', space=sflag, size = 0x8, scoped, tag = 'scoped memory for tpu_custom_call.1']
    #allocation5 [shape = 'u8[2048]{0}', space=vmem, size = 0x800, scoped, tag = 'output window, operand 0']
    %12 = vsyncpa [#allocation3], 0
    %13 = vsyncpa [#allocation4], 0
    %s14 = scalar_lea.sflag [#allocation4], 1
    %15 = vsyncpa %s14, 0
    loop: start=0, step=1, limit=6
    $region2: #{tpu_custom_call.1} parent=1 // loop_pre_header
      _
    $region3: #{tpu_custom_call.1} parent=1 // loop_header
      %s17 = sphi 0, %s21
      %p18 = scmp.ge.s32.totalorder %s17, 6
      %s27 = sphi 0, %s29
      %s30 = sphi 0, %s27
      %s31 = sphi 0, %s30
      %s47 = sphi 0, %s31
      %s53 = sphi 0, %s55
      %s56 = sphi 0, %s53
      %s57 = sphi 0, %s56
      %s73 = sphi 0, %s57
      %s79 = sphi 0, %s81
      %s82 = sphi 0, %s79
      %s83 = sphi 0, %s82
      %s99 = sphi 0, %s83
      %s103 = sphi 0, %s103
      %s105 = sphi 0, %s103
      %s106 = sphi 0, %s105
      %s120 = sphi 0, %s106
      %s124 = sphi 0, %s124
      %s126 = sphi 0, %s124
      %s127 = sphi 0, %s126
      %s141 = sphi 0, %s127
      %s145 = sphi 0, %s145
      %s147 = sphi 0, %s145
      %s148 = sphi 0, %s147
      %s162 = sphi 0, %s148
      %s166 = sphi 0, %s166
      %s168 = sphi 0, %s166
      %s169 = sphi 0, %s168
      %s183 = sphi 0, %s169
      %s189 = sphi 0, %s191
      %s192 = sphi 0, %s189
      %s193 = sphi 0, %s192
      %s209 = sphi 0, %s193
    $region4: #{tpu_custom_call.1} parent=1 // loop_header_branch
      %20 = sbr.rel (%p18) target = $region8
    $region5: #{tpu_custom_call.1} parent=1 // loop_body
      %s22 = ssub.s32 %s17, 1
      %s23 = ssub.s32 %s17, 2
      %s24 = sadd.s32 %s17, 1
      %s25 = ssub.s32 %s17, %s24
      %p26 = scmp.eq.s32.totalorder %s25, 0
      %s28 = sadd.s32 %s27, 1
      %s29 = scalar_select %p26, %s27, %s28
      %p32 = pneg %p26
      %p33 = scmp.eq.s32.totalorder %s17, 3
      %p34 = por %p32, %p33
      %p35 = scmp.ne.s32.totalorder %s27, %s30
      %p36 = scmp.eq.s32.totalorder %s17, 0
      %p37 = por %p35, %p36
      %p38 = scmp.ne.s32.totalorder %s27, %s30
      %p39 = scmp.eq.s32.totalorder %s22, 3
      %p40 = por %p38, %p39
      %p41 = scmp.ne.s32.totalorder %s30, %s31
      %p42 = scmp.eq.s32.totalorder %s22, 0
      %p43 = por %p41, %p42
      %p44 = scmp.ne.s32.totalorder %s30, %s31
      %p45 = scmp.eq.s32.totalorder %s23, 3
      %p46 = por %p44, %p45
      %p48 = scmp.ne.s32.totalorder %s31, %s47
      %p49 = scmp.eq.s32.totalorder %s23, 0
      %p50 = por %p48, %p49
      %s51 = ssub.s32 %s17, %s24
      %p52 = scmp.eq.s32.totalorder %s51, 0
      %s54 = sadd.s32 %s53, 1
      %s55 = scalar_select %p52, %s53, %s54
      %p58 = pneg %p52
      %p59 = scmp.eq.s32.totalorder %s17, 3
      %p60 = por %p58, %p59
      %p61 = scmp.ne.s32.totalorder %s53, %s56
      %p62 = scmp.eq.s32.totalorder %s17, 0
      %p63 = por %p61, %p62
      %p64 = scmp.ne.s32.totalorder %s53, %s56
      %p65 = scmp.eq.s32.totalorder %s22, 3
      %p66 = por %p64, %p65
      %p67 = scmp.ne.s32.totalorder %s56, %s57
      %p68 = scmp.eq.s32.totalorder %s22, 0
      %p69 = por %p67, %p68
      %p70 = scmp.ne.s32.totalorder %s56, %s57
      %p71 = scmp.eq.s32.totalorder %s23, 3
      %p72 = por %p70, %p71
      %p74 = scmp.ne.s32.totalorder %s57, %s73
      %p75 = scmp.eq.s32.totalorder %s23, 0
      %p76 = por %p74, %p75
      %s77 = ssub.s32 %s17, %s24
      %p78 = scmp.eq.s32.totalorder %s77, 0
      %s80 = sadd.s32 %s79, 1
      %s81 = scalar_select %p78, %s79, %s80
      %p84 = pneg %p78
      %p85 = scmp.eq.s32.totalorder %s17, 3
      %p86 = por %p84, %p85
      %p87 = scmp.ne.s32.totalorder %s79, %s82
      %p88 = scmp.eq.s32.totalorder %s17, 0
      %p89 = por %p87, %p88
      %p90 = scmp.ne.s32.totalorder %s79, %s82
      %p91 = scmp.eq.s32.totalorder %s22, 3
      %p92 = por %p90, %p91
      %p93 = scmp.ne.s32.totalorder %s82, %s83
      %p94 = scmp.eq.s32.totalorder %s22, 0
      %p95 = por %p93, %p94
      %p96 = scmp.ne.s32.totalorder %s82, %s83
      %p97 = scmp.eq.s32.totalorder %s23, 3
      %p98 = por %p96, %p97
      %p100 = scmp.ne.s32.totalorder %s83, %s99
      %p101 = scmp.eq.s32.totalorder %s23, 0
      %p102 = por %p100, %p101
      %s104 = sadd.s32 %s103, 1
      %p107 = scmp.eq.s32.totalorder %s17, 3
      %p108 = scmp.ne.s32.totalorder %s103, %s105
      %p109 = scmp.eq.s32.totalorder %s17, 0
      %p110 = por %p108, %p109
      %p111 = scmp.ne.s32.totalorder %s103, %s105
      %p112 = scmp.eq.s32.totalorder %s22, 3
      %p113 = por %p111, %p112
      %p114 = scmp.ne.s32.totalorder %s105, %s106
      %p115 = scmp.eq.s32.totalorder %s22, 0
      %p116 = por %p114, %p115
      %p117 = scmp.ne.s32.totalorder %s105, %s106
      %p118 = scmp.eq.s32.totalorder %s23, 3
      %p119 = por %p117, %p118
      %p121 = scmp.ne.s32.totalorder %s106, %s120
      %p122 = scmp.eq.s32.totalorder %s23, 0
      %p123 = por %p121, %p122
      %s125 = sadd.s32 %s124, 1
      %p128 = scmp.eq.s32.totalorder %s17, 3
      %p129 = scmp.ne.s32.totalorder %s124, %s126
      %p130 = scmp.eq.s32.totalorder %s17, 0
      %p131 = por %p129, %p130
      %p132 = scmp.ne.s32.totalorder %s124, %s126
      %p133 = scmp.eq.s32.totalorder %s22, 3
      %p134 = por %p132, %p133
      %p135 = scmp.ne.s32.totalorder %s126, %s127
      %p136 = scmp.eq.s32.totalorder %s22, 0
      %p137 = por %p135, %p136
      %p138 = scmp.ne.s32.totalorder %s126, %s127
      %p139 = scmp.eq.s32.totalorder %s23, 3
      %p140 = por %p138, %p139
      %p142 = scmp.ne.s32.totalorder %s127, %s141
      %p143 = scmp.eq.s32.totalorder %s23, 0
      %p144 = por %p142, %p143
      %s146 = sadd.s32 %s145, 1
      %p149 = scmp.eq.s32.totalorder %s17, 3
      %p150 = scmp.ne.s32.totalorder %s145, %s147
      %p151 = scmp.eq.s32.totalorder %s17, 0
      %p152 = por %p150, %p151
      %p153 = scmp.ne.s32.totalorder %s145, %s147
      %p154 = scmp.eq.s32.totalorder %s22, 3
      %p155 = por %p153, %p154
      %p156 = scmp.ne.s32.totalorder %s147, %s148
      %p157 = scmp.eq.s32.totalorder %s22, 0
      %p158 = por %p156, %p157
      %p159 = scmp.ne.s32.totalorder %s147, %s148
      %p160 = scmp.eq.s32.totalorder %s23, 3
      %p161 = por %p159, %p160
      %p163 = scmp.ne.s32.totalorder %s148, %s162
      %p164 = scmp.eq.s32.totalorder %s23, 0
      %p165 = por %p163, %p164
      %s167 = sadd.s32 %s166, 1
      %p170 = scmp.eq.s32.totalorder %s17, 3
      %p171 = scmp.ne.s32.totalorder %s166, %s168
      %p172 = scmp.eq.s32.totalorder %s17, 0
      %p173 = por %p171, %p172
      %p174 = scmp.ne.s32.totalorder %s166, %s168
      %p175 = scmp.eq.s32.totalorder %s22, 3
      %p176 = por %p174, %p175
      %p177 = scmp.ne.s32.totalorder %s168, %s169
      %p178 = scmp.eq.s32.totalorder %s22, 0
      %p179 = por %p177, %p178
      %p180 = scmp.ne.s32.totalorder %s168, %s169
      %p181 = scmp.eq.s32.totalorder %s23, 3
      %p182 = por %p180, %p181
      %p184 = scmp.ne.s32.totalorder %s169, %s183
      %p185 = scmp.eq.s32.totalorder %s23, 0
      %p186 = por %p184, %p185
      %s187 = ssub.s32 %s17, %s24
      %p188 = scmp.eq.s32.totalorder %s187, 0
      %s190 = sadd.s32 %s189, 1
      %s191 = scalar_select %p188, %s189, %s190
      %p194 = pneg %p188
      %p195 = scmp.eq.s32.totalorder %s17, 3
      %p196 = por %p194, %p195
      %p197 = scmp.ne.s32.totalorder %s189, %s192
      %p198 = scmp.eq.s32.totalorder %s17, 0
      %p199 = por %p197, %p198
      %p200 = scmp.ne.s32.totalorder %s189, %s192
      %p201 = scmp.eq.s32.totalorder %s22, 3
      %p202 = por %p200, %p201
      %p203 = scmp.ne.s32.totalorder %s192, %s193
      %p204 = scmp.eq.s32.totalorder %s22, 0
      %p205 = por %p203, %p204
      %p206 = scmp.ne.s32.totalorder %s192, %s193
      %p207 = scmp.eq.s32.totalorder %s23, 3
      %p208 = por %p206, %p207
      %p210 = scmp.ne.s32.totalorder %s193, %s209
      %p211 = scmp.eq.s32.totalorder %s23, 0
      %p212 = por %p210, %p211
      %p213 = scmp.le.s32.totalorder 1, %s17
      %p214 = scmp.lt.s32.totalorder %s17, 5
      %p215 = pnand %p213, %p214
      %p216 = pneg %p215
      // Predicated region
      $region9: #{tpu_custom_call.1} parent=5 // pred_check
        _
      $region10: #{tpu_custom_call.1} parent=5 // pred_check_branch
        %218 = sbr.rel (%p215) target = $region12
      $region11: #{tpu_custom_call.1} parent=5 // pred_region
        %s219 = ssub.s32 %s17, 1
        // Predicated region
        $region13: #{tpu_custom_call.1} parent=11 // pred_check
          %p220 = pneg %p116
        $region14: #{tpu_custom_call.1} parent=11 // pred_check_branch
          %222 = sbr.rel (%p220) target = $region16
        $region15: #{tpu_custom_call.1} parent=11 // pred_region
          _
        $region16: #{tpu_custom_call.1} parent=11 // pred_fallthru
          _
        // Predicated region
        $region17: #{tpu_custom_call.1} parent=11 // pred_check
          %p223 = pneg %p137
        $region18: #{tpu_custom_call.1} parent=11 // pred_check_branch
          %225 = sbr.rel (%p223) target = $region20
        $region19: #{tpu_custom_call.1} parent=11 // pred_region
          _
        $region20: #{tpu_custom_call.1} parent=11 // pred_fallthru
          _
        // Predicated region
        $region21: #{tpu_custom_call.1} parent=11 // pred_check
          %p226 = pneg %p158
        $region22: #{tpu_custom_call.1} parent=11 // pred_check_branch
          %228 = sbr.rel (%p226) target = $region24
        $region23: #{tpu_custom_call.1} parent=11 // pred_region
          %230 = vsyncadd [#allocation3], 0
          %s231 = sshll.u32 %s5, 4
          %s232 = int_to_ptr.hbm [resolvable:$true] %s231
          %s233 = sshll.u32 [#allocation2], 4
          %s234 = int_to_ptr.vmem [resolvable:$true] %s233
          %239 = dma.hbm_to_vmem [thread:$0]  %s232, 2048, %s234, [#allocation3], 128, 128, 8
        $region24: #{tpu_custom_call.1} parent=11 // pred_fallthru
          _
        // Predicated region
        $region25: #{tpu_custom_call.1} parent=11 // pred_check
          %p240 = pneg %p179
        $region26: #{tpu_custom_call.1} parent=11 // pred_check_branch
          %242 = sbr.rel (%p240) target = $region28
        $region27: #{tpu_custom_call.1} parent=11 // pred_region
          _
        $region28: #{tpu_custom_call.1} parent=11 // pred_fallthru
          _
      $region12: #{tpu_custom_call.1} parent=5 // pred_fallthru
        _
      %p243 = scmp.lt.s32.totalorder %s17, 4
      // Predicated region
      $region29: #{tpu_custom_call.1} parent=5 // pred_check
        %p244 = pneg %p243
      $region30: #{tpu_custom_call.1} parent=5 // pred_check_branch
        %246 = sbr.rel (%p244) target = $region32
      $region31: #{tpu_custom_call.1} parent=5 // pred_region
        // Predicated region
        $region33: #{tpu_custom_call.1} parent=31 // pred_check
          %p247 = pneg %p37
        $region34: #{tpu_custom_call.1} parent=31 // pred_check_branch
          %249 = sbr.rel (%p247) target = $region36
        $region35: #{tpu_custom_call.1} parent=31 // pred_region
          %s250 = smul.u32 2, %s17
          %p251 = scmp.lt.s32.totalorder %s250, 7
          %s252 = scalar_select %p251, %s250, 7
          %s253 = scalar_lea.vmem %s0, %s252
          %s254 = smul.u32 2, %s17
        $region36: #{tpu_custom_call.1} parent=31 // pred_fallthru
          _
        // Predicated region
        $region37: #{tpu_custom_call.1} parent=31 // pred_check
          %p255 = pneg %p63
        $region38: #{tpu_custom_call.1} parent=31 // pred_check_branch
          %257 = sbr.rel (%p255) target = $region40
        $region39: #{tpu_custom_call.1} parent=31 // pred_region
          %s258 = smul.u32 2, %s17
          %p259 = scmp.lt.s32.totalorder %s258, 7
          %s260 = scalar_select %p259, %s258, 7
          %s261 = smul.addr %s260, 4
          %s262 = scalar_lea.vmem %s1, %s261
          %s263 = smul.u32 2, %s17
        $region40: #{tpu_custom_call.1} parent=31 // pred_fallthru
          _
        // Predicated region
        $region41: #{tpu_custom_call.1} parent=31 // pred_check
          %p264 = pneg %p89
        $region42: #{tpu_custom_call.1} parent=31 // pred_check_branch
          %266 = sbr.rel (%p264) target = $region44
        $region43: #{tpu_custom_call.1} parent=31 // pred_region
          %s267 = smul.u32 2, %s17
          %p268 = scmp.lt.s32.totalorder %s267, 7
          %s269 = scalar_select %p268, %s267, 7
          %s270 = smul.addr %s269, 4
          %s271 = scalar_lea.vmem %s2, %s270
          %s272 = smul.u32 2, %s17
        $region44: #{tpu_custom_call.1} parent=31 // pred_fallthru
          _
      $region32: #{tpu_custom_call.1} parent=5 // pred_fallthru
        _
      %p273 = scmp.le.s32.totalorder 1, %s17
      %p274 = scmp.lt.s32.totalorder %s17, 5
      %p275 = pnand %p273, %p274
      %p276 = pneg %p275
      // Predicated region
      $region45: #{tpu_custom_call.1} parent=5 // pred_check
        _
      $region46: #{tpu_custom_call.1} parent=5 // pred_check_branch
        %278 = sbr.rel (%p275) target = $region48
      $region47: #{tpu_custom_call.1} parent=5 // pred_region
        %s279 = ssub.s32 %s17, 1
        // Predicated region
        $region49: #{tpu_custom_call.1} parent=47 // pred_check
          %p280 = pneg %p158
        $region50: #{tpu_custom_call.1} parent=47 // pred_check_branch
          %282 = sbr.rel (%p280) target = $region52
        $region51: #{tpu_custom_call.1} parent=47 // pred_region
          %284 = dma.done [#allocation3], 2048
        $region52: #{tpu_custom_call.1} parent=47 // pred_fallthru
          _
        %s285 = smul.u32 2, %s22
        %p286 = scmp.lt.s32.totalorder %s285, 7
        %s287 = scalar_select %p286, %s285, 7
        %s288 = scalar_lea.vmem %s0, %s287
        %p289 = pneg %p43
        %p290 = pneg %p40
        %s291 = smul.u32 2, %s22
        %p292 = scmp.lt.s32.totalorder %s291, 7
        %s293 = scalar_select %p292, %s291, 7
        %s294 = smul.addr %s293, 4
        %s295 = scalar_lea.vmem %s1, %s294
        %p296 = pneg %p69
        %p297 = pneg %p66
        %s298 = smul.u32 2, %s22
        %p299 = scmp.lt.s32.totalorder %s298, 7
        %s300 = scalar_select %p299, %s298, 7
        %s301 = smul.addr %s300, 4
        %s302 = scalar_lea.vmem %s2, %s301
        %p303 = pneg %p95
        %p304 = pneg %p92
        %p305 = pneg %p116
        %p306 = pneg %p113
        %p307 = pneg %p137
        %p308 = pneg %p134
        %p309 = pneg %p158
        %p310 = pneg %p155
        %p311 = pneg %p179
        %p312 = pneg %p176
        %p313 = pneg %p205
        %p314 = pneg %p202
        %s315 = sand.u32 %s192, 1
        %s316 = scalar_lea.sflag [#allocation4], %s315
        %s317 = sand.u32 %s192, 1
        %s318 = smul.addr %s317, 2
        %s319 = scalar_lea.vmem [#allocation5], %s318
        %s320 = smul.u32 2, %s22
        %p321 = scmp.lt.s32.totalorder %s320, 7
        %s322 = scalar_select %p321, %s320, 7
        %s323 = scalar_lea.vmem %s0, %s322
        %s324 = smul.u32 2, %s22
        %s325 = smul.u32 2, %s22
        %p326 = scmp.lt.s32.totalorder %s325, 7
        %s327 = scalar_select %p326, %s325, 7
        %s328 = smul.addr %s327, 4
        %s329 = scalar_lea.vmem %s1, %s328
        %s330 = smul.u32 2, %s22
        %s331 = smul.u32 2, %s22
        %p332 = scmp.lt.s32.totalorder %s331, 7
        %s333 = scalar_select %p332, %s331, 7
        %s334 = smul.addr %s333, 4
        %s335 = scalar_lea.vmem %s2, %s334
        %s336 = smul.u32 2, %s22
        %s337 = smul.u32 2, %s22
        %v338 = vld [vmem:[%s323] sm:$0x3]
        %v339 = vld [vmem:[%s3] sm:$0x1f]
        %341 = vset.pattern.permute.xlu0 0
        %342 = vperm.xlu0 %341, %v339
        %v343 = vpop.permute.xlu0 %342
        %v346 = vperm.slane %v338, 0
        %v347 = vperm.slane %v338, 1
        %v350 = vmul.f32 %v343, %v346
        %v351 = vmul.f32 %v343, %v347
        %352 = vset.pattern.permute.xlu0 2
        %353 = vperm.xlu0 %352, %v339
        %v354 = vpop.permute.xlu0 %353
        %v356 = vadd.f32 %v350, %v354
        %v357 = vadd.f32 %v351, %v354
        %v358 = vand.u32 2147483647, %v356
        %vm359 = vcmp.le.f32.partialorder %v358, 0.7853982
        %vm360 = vcmp.lt.s32.totalorder %v356, 0
        %v361 = vand.u32 %v356, 2139095040
        %v362 = vshrl.u32 %v361, 23
        %v363 = vsub.s32 %v362, 127
        %v364 = vand.u32 2147483647, %v356
        %v365 = vand.u32 %v364, 8388607
        %v366 = vor.u32 %v365, 8388608
        %v367 = vsub.s32 0, %v366
        %v368 = vadd.s32 %v363, 1
        %vm369 = vcmp.gt.s32.totalorder %v368, 0
        %v370 = vsel %vm369, %v368, 0
        %v371 = vshrl.u32 %v370, 5
        %v372 = vand.u32 %v370, 31
        %v373 = vsub.s32 32, %v372
        %v374 = vshrl.u32 683565275, %v373
        %v375 = vshll.u32 683565275, %v372
        %v376 = vshrl.u32 2475754826, %v373
        %v377 = vor.u32 %v375, %v376
        %v378 = vshll.u32 2475754826, %v372
        %v379 = vshrl.u32 2131351028, %v373
        %v380 = vor.u32 %v378, %v379
        %v381 = vshll.u32 2131351028, %v372
        %v382 = vshrl.u32 2102212464, %v373
        %v383 = vor.u32 %v381, %v382
        %v384 = vshll.u32 2102212464, %v372
        %v385 = vshrl.u32 920167782, %v373
        %v386 = vor.u32 %v384, %v385
        %v387 = vshll.u32 920167782, %v372
        %v388 = vshrl.u32 1326507024, %v373
        %v389 = vor.u32 %v387, %v388
        %vm390 = vcmp.lt.s32.totalorder %v371, 1
        %vm391 = vcmp.lt.s32.totalorder %v371, 2
        %vm392 = vcmp.lt.s32.totalorder %v371, 3
        %vm393 = vcmp.lt.s32.totalorder %v371, 4
        %v394 = vsel %vm390, %v374, %v377
        %v395 = vsel %vm393, %v383, 2102212464
        %v396 = vsel %vm392, %v380, %v395
        %v397 = vsel %vm391, %v394, %v396
        %v398 = vsel %vm390, %v377, %v380
        %v399 = vsel %vm393, %v386, 920167782
        %v400 = vsel %vm392, %v383, %v399
        %v401 = vsel %vm391, %v398, %v400
        %v402 = vsel %vm390, %v380, %v383
        %v403 = vsel %vm393, %v389, 1326507024
        %v404 = vsel %vm392, %v386, %v403
        %v405 = vsel %vm391, %v402, %v404
        %v406 = vshll.u32 %v366, 8
        %v407 = vand.u32 %v406, 65535
        %v408 = vshrl.u32 %v406, 16
        %v409 = vand.u32 %v405, 65535
        %v410 = vshrl.u32 %v405, 16
        %v411 = vmul.u32 %v407, %v409
        %v412 = vmul.u32 %v407, %v410
        %v413 = vmul.u32 %v408, %v409
        %v414 = vmul.u32 %v408, %v410
        %v415 = vshll.u32 %v412, 16
        %v416 = vshrl.u32 %v412, 16
        %v417 = vshll.u32 %v413, 16
        %v418 = vshrl.u32 %v413, 16
        %vm419 = vc.u32 %v411, %v415
        %v420 = vsel %vm419, 1, 0
        %v421 = vadd.s32 %v411, %v415
        %v422 = vadd.s32 %v414, %v420
        %vm423 = vc.u32 %v421, %v417
        %v424 = vsel %vm423, 1, 0
        %v425 = vadd.s32 %v421, %v417
        %v426 = vadd.s32 %v422, %v424
        %v427 = vadd.s32 %v426, %v416
        %v428 = vadd.s32 %v427, %v418
        %v429 = vand.u32 %v406, 65535
        %v430 = vshrl.u32 %v406, 16
        %v431 = vand.u32 %v401, 65535
        %v432 = vshrl.u32 %v401, 16
        %v433 = vmul.u32 %v429, %v431
        %v434 = vmul.u32 %v429, %v432
        %v435 = vmul.u32 %v430, %v431
        %v436 = vmul.u32 %v430, %v432
        %v437 = vshll.u32 %v434, 16
        %v438 = vshrl.u32 %v434, 16
        %v439 = vshll.u32 %v435, 16
        %v440 = vshrl.u32 %v435, 16
        %vm441 = vc.u32 %v433, %v437
        %v442 = vsel %vm441, 1, 0
        %v443 = vadd.s32 %v433, %v437
        %v444 = vadd.s32 %v436, %v442
        %vm445 = vc.u32 %v443, %v439
        %v446 = vsel %vm445, 1, 0
        %v447 = vadd.s32 %v443, %v439
        %v448 = vadd.s32 %v444, %v446
        %v449 = vadd.s32 %v448, %v438
        %v450 = vadd.s32 %v449, %v440
        %v451 = vmul.u32 %v406, %v397
        %v452 = vadd.s32 %v428, %v447
        %vm453 = vc.u32 %v428, %v447
        %v454 = vadd.s32 %v450, 1
        %v455 = vsel %vm453, %v454, %v450
        %v456 = vadd.s32 %v451, %v455
        %v457 = vadd.s32 %v456, 536870912
        %v458 = vshrl.u32 %v457, 30
        %v459 = vshll.u32 %v458, 30
        %v460 = vsub.s32 %v456, %v459
        %vm461 = vcmp.lt.s32.totalorder %v460, 0
        %v462 = vsub.s32 0, %v460
        %v463 = vsel %vm461, %v462, %v460
        %v464 = vclz %v463
        %v465 = vsub.s32 %v464, 2
        %vm466 = vcmp.gt.s32.totalorder 0, %v465
        %v467 = vsel %vm466, 0, %v465
        %v468 = vsub.s32 32, %v467
        %v469 = vshll.u32 %v460, %v467
        %v470 = vshrl.u32 %v452, %v468
        %v471 = vor.u32 %v469, %v470
        %v472 = vsub.s32 4294967266, %v467
        %v473 = vadd.s32 %v472, 127
        %v474 = vshll.u32 %v473, 23
        %v475 = vor.u32 4788187, %v474
        %v476 = vand.u32 2147483647, %v475
        %v478 = vcvt.s32.f32 %v471
        %v479 = vmul.f32 %v478, %v476
        %v480 = vxor.u32 %v479, 2147483648
        %v481 = vsel %vm360, %v480, %v479
        %v482 = vsub.s32 4, %v458
        %v483 = vsel %vm360, %v482, %v458
        %v484 = vsel %vm359, %v356, %v481
        %v485 = vsel %vm359, 0, %v483
        %v486 = vmul.f32 %v484, %v484
        %v487 = vmul.f32 %v486, -0.001358992
        %v488 = vadd.f32 %v487, 0.041655596
        %v489 = vmul.f32 %v486, %v488
        %v490 = vadd.f32 %v489, -0.4999988
        %v491 = vmul.f32 %v486, %v490
        %v492 = vadd.f32 1.0, %v491
        %v493 = vmul.f32 %v484, %v484
        %v494 = vmul.f32 %v493, -0.00019511016
        %v495 = vadd.f32 %v494, 0.008332121
        %v496 = vmul.f32 %v493, %v495
        %v497 = vadd.f32 %v496, -0.16666654
        %v498 = vmul.f32 %v493, %v497
        %v499 = vadd.f32 %v498, 1.0
        %v500 = vmul.f32 %v499, %v484
        %vm501 = vweird.f32 %v356
        %v502 = vadd.s32 %v485, 3
        %v503 = vand.u32 %v502, 3
        %vm504 = vcmp.lt.s32.totalorder %v503, 2
        %vm505 = vcmp.eq.s32.totalorder %v503, 0
        %v506 = vxor.u32 %v500, 2147483648
        %v507 = vsel %vm505, %v492, %v506
        %vm508 = vcmp.eq.s32.totalorder %v503, 2
        %v509 = vxor.u32 %v492, 2147483648
        %v510 = vsel %vm508, %v509, %v500
        %v511 = vsel %vm504, %v507, %v510
        %v512 = vsel %vm501, nan, %v511
        %v513 = vand.u32 2147483647, %v357
        %vm514 = vcmp.le.f32.partialorder %v513, 0.7853982
        %vm515 = vcmp.lt.s32.totalorder %v357, 0
        %v516 = vand.u32 %v357, 2139095040
        %v517 = vshrl.u32 %v516, 23
        %v518 = vsub.s32 %v517, 127
        %v519 = vand.u32 2147483647, %v357
        %v520 = vand.u32 %v519, 8388607
        %v521 = vor.u32 %v520, 8388608
        %v522 = vsub.s32 0, %v521
        %v523 = vadd.s32 %v518, 1
        %vm524 = vcmp.gt.s32.totalorder %v523, 0
        %v525 = vsel %vm524, %v523, 0
        %v526 = vshrl.u32 %v525, 5
        %v527 = vand.u32 %v525, 31
        %v528 = vsub.s32 32, %v527
        %v529 = vshrl.u32 683565275, %v528
        %v530 = vshll.u32 683565275, %v527
        %v531 = vshrl.u32 2475754826, %v528
        %v532 = vor.u32 %v530, %v531
        %v533 = vshll.u32 2475754826, %v527
        %v534 = vshrl.u32 2131351028, %v528
        %v535 = vor.u32 %v533, %v534
        %v536 = vshll.u32 2131351028, %v527
        %v537 = vshrl.u32 2102212464, %v528
        %v538 = vor.u32 %v536, %v537
        %v539 = vshll.u32 2102212464, %v527
        %v540 = vshrl.u32 920167782, %v528
        %v541 = vor.u32 %v539, %v540
        %v542 = vshll.u32 920167782, %v527
        %v543 = vshrl.u32 1326507024, %v528
        %v544 = vor.u32 %v542, %v543
        %vm545 = vcmp.lt.s32.totalorder %v526, 1
        %vm546 = vcmp.lt.s32.totalorder %v526, 2
        %vm547 = vcmp.lt.s32.totalorder %v526, 3
        %vm548 = vcmp.lt.s32.totalorder %v526, 4
        %v549 = vsel %vm545, %v529, %v532
        %v550 = vsel %vm548, %v538, 2102212464
        %v551 = vsel %vm547, %v535, %v550
        %v552 = vsel %vm546, %v549, %v551
        %v553 = vsel %vm545, %v532, %v535
        %v554 = vsel %vm548, %v541, 920167782
        %v555 = vsel %vm547, %v538, %v554
        %v556 = vsel %vm546, %v553, %v555
        %v557 = vsel %vm545, %v535, %v538
        %v558 = vsel %vm548, %v544, 1326507024
        %v559 = vsel %vm547, %v541, %v558
        %v560 = vsel %vm546, %v557, %v559
        %v561 = vshll.u32 %v521, 8
        %v562 = vand.u32 %v561, 65535
        %v563 = vshrl.u32 %v561, 16
        %v564 = vand.u32 %v560, 65535
        %v565 = vshrl.u32 %v560, 16
        %v566 = vmul.u32 %v562, %v564
        %v567 = vmul.u32 %v562, %v565
        %v568 = vmul.u32 %v563, %v564
        %v569 = vmul.u32 %v563, %v565
        %v570 = vshll.u32 %v567, 16
        %v571 = vshrl.u32 %v567, 16
        %v572 = vshll.u32 %v568, 16
        %v573 = vshrl.u32 %v568, 16
        %vm574 = vc.u32 %v566, %v570
        %v575 = vsel %vm574, 1, 0
        %v576 = vadd.s32 %v566, %v570
        %v577 = vadd.s32 %v569, %v575
        %vm578 = vc.u32 %v576, %v572
        %v579 = vsel %vm578, 1, 0
        %v580 = vadd.s32 %v576, %v572
        %v581 = vadd.s32 %v577, %v579
        %v582 = vadd.s32 %v581, %v571
        %v583 = vadd.s32 %v582, %v573
        %v584 = vand.u32 %v561, 65535
        %v585 = vshrl.u32 %v561, 16
        %v586 = vand.u32 %v556, 65535
        %v587 = vshrl.u32 %v556, 16
        %v588 = vmul.u32 %v584, %v586
        %v589 = vmul.u32 %v584, %v587
        %v590 = vmul.u32 %v585, %v586
        %v591 = vmul.u32 %v585, %v587
        %v592 = vshll.u32 %v589, 16
        %v593 = vshrl.u32 %v589, 16
        %v594 = vshll.u32 %v590, 16
        %v595 = vshrl.u32 %v590, 16
        %vm596 = vc.u32 %v588, %v592
        %v597 = vsel %vm596, 1, 0
        %v598 = vadd.s32 %v588, %v592
        %v599 = vadd.s32 %v591, %v597
        %vm600 = vc.u32 %v598, %v594
        %v601 = vsel %vm600, 1, 0
        %v602 = vadd.s32 %v598, %v594
        %v603 = vadd.s32 %v599, %v601
        %v604 = vadd.s32 %v603, %v593
        %v605 = vadd.s32 %v604, %v595
        %v606 = vmul.u32 %v561, %v552
        %v607 = vadd.s32 %v583, %v602
        %vm608 = vc.u32 %v583, %v602
        %v609 = vadd.s32 %v605, 1
        %v610 = vsel %vm608, %v609, %v605
        %v611 = vadd.s32 %v606, %v610
        %v612 = vadd.s32 %v611, 536870912
        %v613 = vshrl.u32 %v612, 30
        %v614 = vshll.u32 %v613, 30
        %v615 = vsub.s32 %v611, %v614
        %vm616 = vcmp.lt.s32.totalorder %v615, 0
        %v617 = vsub.s32 0, %v615
        %v618 = vsel %vm616, %v617, %v615
        %v619 = vclz %v618
        %v620 = vsub.s32 %v619, 2
        %vm621 = vcmp.gt.s32.totalorder 0, %v620
        %v622 = vsel %vm621, 0, %v620
        %v623 = vsub.s32 32, %v622
        %v624 = vshll.u32 %v615, %v622
        %v625 = vshrl.u32 %v607, %v623
        %v626 = vor.u32 %v624, %v625
        %v627 = vsub.s32 4294967266, %v622
        %v628 = vadd.s32 %v627, 127
        %v629 = vshll.u32 %v628, 23
        %v630 = vor.u32 4788187, %v629
        %v631 = vand.u32 2147483647, %v630
        %v633 = vcvt.s32.f32 %v626
        %v634 = vmul.f32 %v633, %v631
        %v635 = vxor.u32 %v634, 2147483648
        %v636 = vsel %vm515, %v635, %v634
        %v637 = vsub.s32 4, %v613
        %v638 = vsel %vm515, %v637, %v613
        %v639 = vsel %vm514, %v357, %v636
        %v640 = vsel %vm514, 0, %v638
        %v641 = vmul.f32 %v639, %v639
        %v642 = vmul.f32 %v641, -0.001358992
        %v643 = vadd.f32 %v642, 0.041655596
        %v644 = vmul.f32 %v641, %v643
        %v645 = vadd.f32 %v644, -0.4999988
        %v646 = vmul.f32 %v641, %v645
        %v647 = vadd.f32 1.0, %v646
        %v648 = vmul.f32 %v639, %v639
        %v649 = vmul.f32 %v648, -0.00019511016
        %v650 = vadd.f32 %v649, 0.008332121
        %v651 = vmul.f32 %v648, %v650
        %v652 = vadd.f32 %v651, -0.16666654
        %v653 = vmul.f32 %v648, %v652
        %v654 = vadd.f32 %v653, 1.0
        %v655 = vmul.f32 %v654, %v639
        %vm656 = vweird.f32 %v357
        %v657 = vadd.s32 %v640, 3
        %v658 = vand.u32 %v657, 3
        %vm659 = vcmp.lt.s32.totalorder %v658, 2
        %vm660 = vcmp.eq.s32.totalorder %v658, 0
        %v661 = vxor.u32 %v655, 2147483648
        %v662 = vsel %vm660, %v647, %v661
        %vm663 = vcmp.eq.s32.totalorder %v658, 2
        %v664 = vxor.u32 %v647, 2147483648
        %v665 = vsel %vm663, %v664, %v655
        %v666 = vsel %vm659, %v662, %v665
        %v667 = vsel %vm656, nan, %v666
        %668 = vset.pattern.permute.xlu0 1
        %669 = vperm.xlu0 %668, %v339
        %v670 = vpop.permute.xlu0 %669
        %v672 = vmul.f32 %v670, %v512
        %v673 = vmul.f32 %v670, %v667
        %vm674 = vcmask 1044480
        %v675 = vsel %vm674, %v672, 0.0
        %v676 = vrot.slane %v675, 4
        %v677 = vadd.f32 %v675, %v676
        %v678 = vrot.slane %v677, 2
        %v679 = vadd.f32 %v677, %v678
        %v680 = vrot.slane %v679, 1
        %v681 = vadd.f32 %v679, %v680
        %v682 = vsel %vm674, %v673, 0.0
        %v683 = vrot.slane %v682, 4
        %v684 = vadd.f32 %v682, %v683
        %v685 = vrot.slane %v684, 2
        %v686 = vadd.f32 %v684, %v685
        %v687 = vrot.slane %v686, 1
        %v688 = vadd.f32 %v686, %v687
        %v689 = vld [vmem:[%s4] sm:$0xff]
        %v690 = vld [vmem:[%s4 + $0x8] sm:$0xff]
        %v691 = vld [vmem:[%s4 + $0x10] sm:$0xff]
        %v692 = vld [vmem:[%s4 + $0x18] sm:$0xff]
        %v693 = vld [vmem:[%s4 + $0x20] sm:$0xff]
        %v694 = vld [vmem:[%s4 + $0x28] sm:$0xff]
        %v695 = vld [vmem:[%s4 + $0x30] sm:$0xff]
        %v696 = vld [vmem:[%s4 + $0x38] sm:$0xff]
        %v697 = vld [vmem:[%s335] ss:$4 sm:$0x3]
        %699 = vset.pattern.permute.xlu0 0
        %700 = vperm.xlu0 %699, %v689
        %v701 = vpop.permute.xlu0 %700
        %704 = vset.pattern.permute.xlu0 0
        %705 = vperm.xlu0 %704, %v690
        %v706 = vpop.permute.xlu0 %705
        %709 = vset.pattern.permute.xlu0 0
        %710 = vperm.xlu0 %709, %v691
        %v711 = vpop.permute.xlu0 %710
        %714 = vset.pattern.permute.xlu0 0
        %715 = vperm.xlu0 %714, %v692
        %v716 = vpop.permute.xlu0 %715
        %719 = vset.pattern.permute.xlu0 0
        %720 = vperm.xlu0 %719, %v693
        %v721 = vpop.permute.xlu0 %720
        %724 = vset.pattern.permute.xlu0 0
        %725 = vperm.xlu0 %724, %v694
        %v726 = vpop.permute.xlu0 %725
        %729 = vset.pattern.permute.xlu0 0
        %730 = vperm.xlu0 %729, %v695
        %v731 = vpop.permute.xlu0 %730
        %734 = vset.pattern.permute.xlu0 0
        %735 = vperm.xlu0 %734, %v696
        %v736 = vpop.permute.xlu0 %735
        %v739 = vperm.slane %v697, 0
        %v740 = vperm.slane %v697, 1
        %v743 = vmul.f32 %v701, %v739
        %v744 = vmul.f32 %v701, %v740
        %v745 = vmul.f32 %v706, %v739
        %v746 = vmul.f32 %v706, %v740
        %v747 = vmul.f32 %v711, %v739
        %v748 = vmul.f32 %v711, %v740
        %v749 = vmul.f32 %v716, %v739
        %v750 = vmul.f32 %v716, %v740
        %v751 = vmul.f32 %v721, %v739
        %v752 = vmul.f32 %v721, %v740
        %v753 = vmul.f32 %v726, %v739
        %v754 = vmul.f32 %v726, %v740
        %v755 = vmul.f32 %v731, %v739
        %v756 = vmul.f32 %v731, %v740
        %v757 = vmul.f32 %v736, %v739
        %v758 = vmul.f32 %v736, %v740
        %759 = vset.pattern.permute.xlu0 3
        %760 = vperm.xlu0 %759, %v689
        %v761 = vpop.permute.xlu0 %760
        %763 = vset.pattern.permute.xlu0 3
        %764 = vperm.xlu0 %763, %v690
        %v765 = vpop.permute.xlu0 %764
        %767 = vset.pattern.permute.xlu0 3
        %768 = vperm.xlu0 %767, %v691
        %v769 = vpop.permute.xlu0 %768
        %771 = vset.pattern.permute.xlu0 3
        %772 = vperm.xlu0 %771, %v692
        %v773 = vpop.permute.xlu0 %772
        %775 = vset.pattern.permute.xlu0 3
        %776 = vperm.xlu0 %775, %v693
        %v777 = vpop.permute.xlu0 %776
        %779 = vset.pattern.permute.xlu0 3
        %780 = vperm.xlu0 %779, %v694
        %v781 = vpop.permute.xlu0 %780
        %783 = vset.pattern.permute.xlu0 3
        %784 = vperm.xlu0 %783, %v695
        %v785 = vpop.permute.xlu0 %784
        %787 = vset.pattern.permute.xlu0 3
        %788 = vperm.xlu0 %787, %v696
        %v789 = vpop.permute.xlu0 %788
        %v791 = vadd.f32 %v761, %v743
        %v792 = vadd.f32 %v761, %v744
        %v793 = vadd.f32 %v765, %v745
        %v794 = vadd.f32 %v765, %v746
        %v795 = vadd.f32 %v769, %v747
        %v796 = vadd.f32 %v769, %v748
        %v797 = vadd.f32 %v773, %v749
        %v798 = vadd.f32 %v773, %v750
        %v799 = vadd.f32 %v777, %v751
        %v800 = vadd.f32 %v777, %v752
        %v801 = vadd.f32 %v781, %v753
        %v802 = vadd.f32 %v781, %v754
        %v803 = vadd.f32 %v785, %v755
        %v804 = vadd.f32 %v785, %v756
        %v805 = vadd.f32 %v789, %v757
        %v806 = vadd.f32 %v789, %v758
        %s807 = scalar_lea.vmem %s335, 1
        %v808 = vld [vmem:[%s807] ss:$4 sm:$0x3]
        %809 = vset.pattern.permute.xlu0 1
        %810 = vperm.xlu0 %809, %v689
        %v811 = vpop.permute.xlu0 %810
        %813 = vset.pattern.permute.xlu0 1
        %814 = vperm.xlu0 %813, %v690
        %v815 = vpop.permute.xlu0 %814
        %817 = vset.pattern.permute.xlu0 1
        %818 = vperm.xlu0 %817, %v691
        %v819 = vpop.permute.xlu0 %818
        %821 = vset.pattern.permute.xlu0 1
        %822 = vperm.xlu0 %821, %v692
        %v823 = vpop.permute.xlu0 %822
        %825 = vset.pattern.permute.xlu0 1
        %826 = vperm.xlu0 %825, %v693
        %v827 = vpop.permute.xlu0 %826
        %829 = vset.pattern.permute.xlu0 1
        %830 = vperm.xlu0 %829, %v694
        %v831 = vpop.permute.xlu0 %830
        %833 = vset.pattern.permute.xlu0 1
        %834 = vperm.xlu0 %833, %v695
        %v835 = vpop.permute.xlu0 %834
        %837 = vset.pattern.permute.xlu0 1
        %838 = vperm.xlu0 %837, %v696
        %v839 = vpop.permute.xlu0 %838
        %v842 = vperm.slane %v808, 0
        %v843 = vperm.slane %v808, 1
        %v846 = vmul.f32 %v811, %v842
        %v847 = vmul.f32 %v811, %v843
        %v848 = vmul.f32 %v815, %v842
        %v849 = vmul.f32 %v815, %v843
        %v850 = vmul.f32 %v819, %v842
        %v851 = vmul.f32 %v819, %v843
        %v852 = vmul.f32 %v823, %v842
        %v853 = vmul.f32 %v823, %v843
        %v854 = vmul.f32 %v827, %v842
        %v855 = vmul.f32 %v827, %v843
        %v856 = vmul.f32 %v831, %v842
        %v857 = vmul.f32 %v831, %v843
        %v858 = vmul.f32 %v835, %v842
        %v859 = vmul.f32 %v835, %v843
        %v860 = vmul.f32 %v839, %v842
        %v861 = vmul.f32 %v839, %v843
        %v862 = vadd.f32 %v791, %v846
        %v863 = vadd.f32 %v792, %v847
        %v864 = vadd.f32 %v793, %v848
        %v865 = vadd.f32 %v794, %v849
        %v866 = vadd.f32 %v795, %v850
        %v867 = vadd.f32 %v796, %v851
        %v868 = vadd.f32 %v797, %v852
        %v869 = vadd.f32 %v798, %v853
        %v870 = vadd.f32 %v799, %v854
        %v871 = vadd.f32 %v800, %v855
        %v872 = vadd.f32 %v801, %v856
        %v873 = vadd.f32 %v802, %v857
        %v874 = vadd.f32 %v803, %v858
        %v875 = vadd.f32 %v804, %v859
        %v876 = vadd.f32 %v805, %v860
        %v877 = vadd.f32 %v806, %v861
        %s878 = scalar_lea.vmem %s335, 2
        %v879 = vld [vmem:[%s878] ss:$4 sm:$0x3]
        %880 = vset.pattern.permute.xlu0 2
        %881 = vperm.xlu0 %880, %v689
        %v882 = vpop.permute.xlu0 %881
        %884 = vset.pattern.permute.xlu0 2
        %885 = vperm.xlu0 %884, %v690
        %v886 = vpop.permute.xlu0 %885
        %888 = vset.pattern.permute.xlu0 2
        %889 = vperm.xlu0 %888, %v691
        %v890 = vpop.permute.xlu0 %889
        %892 = vset.pattern.permute.xlu0 2
        %893 = vperm.xlu0 %892, %v692
        %v894 = vpop.permute.xlu0 %893
        %896 = vset.pattern.permute.xlu0 2
        %897 = vperm.xlu0 %896, %v693
        %v898 = vpop.permute.xlu0 %897
        %900 = vset.pattern.permute.xlu0 2
        %901 = vperm.xlu0 %900, %v694
        %v902 = vpop.permute.xlu0 %901
        %904 = vset.pattern.permute.xlu0 2
        %905 = vperm.xlu0 %904, %v695
        %v906 = vpop.permute.xlu0 %905
        %908 = vset.pattern.permute.xlu0 2
        %909 = vperm.xlu0 %908, %v696
        %v910 = vpop.permute.xlu0 %909
        %v913 = vperm.slane %v879, 0
        %v914 = vperm.slane %v879, 1
        %v917 = vmul.f32 %v882, %v913
        %v918 = vmul.f32 %v882, %v914
        %v919 = vmul.f32 %v886, %v913
        %v920 = vmul.f32 %v886, %v914
        %v921 = vmul.f32 %v890, %v913
        %v922 = vmul.f32 %v890, %v914
        %v923 = vmul.f32 %v894, %v913
        %v924 = vmul.f32 %v894, %v914
        %v925 = vmul.f32 %v898, %v913
        %v926 = vmul.f32 %v898, %v914
        %v927 = vmul.f32 %v902, %v913
        %v928 = vmul.f32 %v902, %v914
        %v929 = vmul.f32 %v906, %v913
        %v930 = vmul.f32 %v906, %v914
        %v931 = vmul.f32 %v910, %v913
        %v932 = vmul.f32 %v910, %v914
        %v933 = vadd.f32 %v862, %v917
        %v934 = vadd.f32 %v863, %v918
        %v935 = vadd.f32 %v864, %v919
        %v936 = vadd.f32 %v865, %v920
        %v937 = vadd.f32 %v866, %v921
        %v938 = vadd.f32 %v867, %v922
        %v939 = vadd.f32 %v868, %v923
        %v940 = vadd.f32 %v869, %v924
        %v941 = vadd.f32 %v870, %v925
        %v942 = vadd.f32 %v871, %v926
        %v943 = vadd.f32 %v872, %v927
        %v944 = vadd.f32 %v873, %v928
        %v945 = vadd.f32 %v874, %v929
        %v946 = vadd.f32 %v875, %v930
        %v947 = vadd.f32 %v876, %v931
        %v948 = vadd.f32 %v877, %v932
        %v949 = vtanh.pop %v933
        %v950 = vtanh.pop %v934
        %v951 = vtanh.pop %v935
        %v952 = vtanh.pop %v936
        %v953 = vtanh.pop %v937
        %v954 = vtanh.pop %v938
        %v955 = vtanh.pop %v939
        %v956 = vtanh.pop %v940
        %v957 = vtanh.pop %v941
        %v958 = vtanh.pop %v942
        %v959 = vtanh.pop %v943
        %v960 = vtanh.pop %v944
        %v961 = vtanh.pop %v945
        %v962 = vtanh.pop %v946
        %v963 = vtanh.pop %v947
        %v964 = vtanh.pop %v948
        %v965 = vld [vmem:[#allocation2] sm:$0xff]
        %v966 = vld [vmem:[#allocation2 + $0x8] sm:$0xff]
        %v967 = vld [vmem:[#allocation2 + $0x10] sm:$0xff]
        %v968 = vld [vmem:[#allocation2 + $0x18] sm:$0xff]
        %v969 = vld [vmem:[#allocation2 + $0x20] sm:$0xff]
        %v970 = vld [vmem:[#allocation2 + $0x28] sm:$0xff]
        %v971 = vld [vmem:[#allocation2 + $0x30] sm:$0xff]
        %v972 = vld [vmem:[#allocation2 + $0x38] sm:$0xff]
        %973 = vset.pattern.permute.xlu0 4
        %974 = vperm.xlu0 %973, %v689
        %v975 = vpop.permute.xlu0 %974
        %977 = vset.pattern.permute.xlu0 4
        %978 = vperm.xlu0 %977, %v690
        %v979 = vpop.permute.xlu0 %978
        %981 = vset.pattern.permute.xlu0 4
        %982 = vperm.xlu0 %981, %v691
        %v983 = vpop.permute.xlu0 %982
        %985 = vset.pattern.permute.xlu0 4
        %986 = vperm.xlu0 %985, %v692
        %v987 = vpop.permute.xlu0 %986
        %989 = vset.pattern.permute.xlu0 4
        %990 = vperm.xlu0 %989, %v693
        %v991 = vpop.permute.xlu0 %990
        %993 = vset.pattern.permute.xlu0 4
        %994 = vperm.xlu0 %993, %v694
        %v995 = vpop.permute.xlu0 %994
        %997 = vset.pattern.permute.xlu0 4
        %998 = vperm.xlu0 %997, %v695
        %v999 = vpop.permute.xlu0 %998
        %1001 = vset.pattern.permute.xlu0 4
        %1002 = vperm.xlu0 %1001, %v696
        %v1003 = vpop.permute.xlu0 %1002
        %vm1005 = vcmask 523264
        %v1007 = vsel %vm1005, %v965, 0
        %v1010 = vsel %vm1005, %v966, 0
        %v1013 = vsel %vm1005, %v967, 0
        %v1016 = vsel %vm1005, %v968, 0
        %v1019 = vsel %vm1005, %v969, 0
        %v1022 = vsel %vm1005, %v970, 0
        %v1025 = vsel %vm1005, %v971, 0
        %v1028 = vsel %vm1005, %v972, 0
        %1030 = vmatpush.msra.mxu0 0.0
        %1031 = vmatpush.msra.mxu0 0.0
        %1032 = vmatpush.msra.mxu0 0.0
        %1033 = vmatpush.msra.mxu0 0.0
        %1034 = vmatpush.msra.mxu0 0.0
        %1035 = vmatpush.msra.mxu0 0.0
        %1036 = vmatpush.msra.mxu0 0.0
        %1037 = vmatpush.msra.mxu0 0.0
        %1038 = vmatpush.msra.mxu0 %v963
        %1039 = vmatpush.msra.mxu0 %v961
        %1040 = vmatpush.msra.mxu0 %v959
        %1041 = vmatpush.msra.mxu0 %v957
        %1042 = vmatpush.msra.mxu0 %v955
        %1043 = vmatpush.msra.mxu0 %v953
        %1044 = vmatpush.msra.mxu0 %v951
        %1045 = vmatpush.msra.mxu0 %v949
        %1046 = vmatmul.f32.gmra.mxu0 %v1007
        %v1047 = vpop.f32.mrf.mxu0
        %v1048 = vadd.f32 %v975, %v1047
        %1049 = vmatmul.f32.gmra.mxu0 %v1010
        %v1050 = vpop.f32.mrf.mxu0
        %v1051 = vadd.f32 %v979, %v1050
        %1052 = vmatmul.f32.gmra.mxu0 %v1013
        %v1053 = vpop.f32.mrf.mxu0
        %v1054 = vadd.f32 %v983, %v1053
        %1055 = vmatmul.f32.gmra.mxu0 %v1016
        %v1056 = vpop.f32.mrf.mxu0
        %v1057 = vadd.f32 %v987, %v1056
        %1058 = vmatmul.f32.gmra.mxu0 %v1019
        %v1059 = vpop.f32.mrf.mxu0
        %v1060 = vadd.f32 %v991, %v1059
        %1061 = vmatmul.f32.gmra.mxu0 %v1022
        %v1062 = vpop.f32.mrf.mxu0
        %v1063 = vadd.f32 %v995, %v1062
        %1064 = vmatmul.f32.gmra.mxu0 %v1025
        %v1065 = vpop.f32.mrf.mxu0
        %v1066 = vadd.f32 %v999, %v1065
        %1067 = vmatmul.f32.gmra.mxu0 %v1028
        %v1068 = vpop.f32.mrf.mxu0
        %v1069 = vadd.f32 %v1003, %v1068
        %1070 = vdwg.mxu0
        %1071 = vmatpush.msra.mxu0 0.0
        %1072 = vmatpush.msra.mxu0 0.0
        %1073 = vmatpush.msra.mxu0 0.0
        %1074 = vmatpush.msra.mxu0 0.0
        %1075 = vmatpush.msra.mxu0 0.0
        %1076 = vmatpush.msra.mxu0 0.0
        %1077 = vmatpush.msra.mxu0 0.0
        %1078 = vmatpush.msra.mxu0 0.0
        %1079 = vmatpush.msra.mxu0 %v964
        %1080 = vmatpush.msra.mxu0 %v962
        %1081 = vmatpush.msra.mxu0 %v960
        %1082 = vmatpush.msra.mxu0 %v958
        %1083 = vmatpush.msra.mxu0 %v956
        %1084 = vmatpush.msra.mxu0 %v954
        %1085 = vmatpush.msra.mxu0 %v952
        %1086 = vmatpush.msra.mxu0 %v950
        %1087 = vmatmul.f32.gmra.mxu0 %v1007
        %v1088 = vpop.f32.mrf.mxu0
        %v1089 = vadd.f32 %v975, %v1088
        %1090 = vmatmul.f32.gmra.mxu0 %v1010
        %v1091 = vpop.f32.mrf.mxu0
        %v1092 = vadd.f32 %v979, %v1091
        %1093 = vmatmul.f32.gmra.mxu0 %v1013
        %v1094 = vpop.f32.mrf.mxu0
        %v1095 = vadd.f32 %v983, %v1094
        %1096 = vmatmul.f32.gmra.mxu0 %v1016
        %v1097 = vpop.f32.mrf.mxu0
        %v1098 = vadd.f32 %v987, %v1097
        %1099 = vmatmul.f32.gmra.mxu0 %v1019
        %v1100 = vpop.f32.mrf.mxu0
        %v1101 = vadd.f32 %v991, %v1100
        %1102 = vmatmul.f32.gmra.mxu0 %v1022
        %v1103 = vpop.f32.mrf.mxu0
        %v1104 = vadd.f32 %v995, %v1103
        %1105 = vmatmul.f32.gmra.mxu0 %v1025
        %v1106 = vpop.f32.mrf.mxu0
        %v1107 = vadd.f32 %v999, %v1106
        %1108 = vmatmul.f32.gmra.mxu0 %v1028
        %v1109 = vpop.f32.mrf.mxu0
        %v1110 = vadd.f32 %v1003, %v1109
        %1111 = vdwg.mxu0
        %v1112 = vmul.f32 %v1048, 0.5
        %v1113 = vmul.f32 %v1089, 0.5
        %v1114 = vmul.f32 %v1051, 0.5
        %v1115 = vmul.f32 %v1092, 0.5
        %v1116 = vmul.f32 %v1054, 0.5
        %v1117 = vmul.f32 %v1095, 0.5
        %v1118 = vmul.f32 %v1057, 0.5
        %v1119 = vmul.f32 %v1098, 0.5
        %v1120 = vmul.f32 %v1060, 0.5
        %v1121 = vmul.f32 %v1101, 0.5
        %v1122 = vmul.f32 %v1063, 0.5
        %v1123 = vmul.f32 %v1104, 0.5
        %v1124 = vmul.f32 %v1066, 0.5
        %v1125 = vmul.f32 %v1107, 0.5
        %v1126 = vmul.f32 %v1069, 0.5
        %v1127 = vmul.f32 %v1110, 0.5
        %v1128 = vmul.f32 %v1048, 0.70710677
        %v1129 = vmul.f32 %v1089, 0.70710677
        %v1130 = vmul.f32 %v1051, 0.70710677
        %v1131 = vmul.f32 %v1092, 0.70710677
        %v1132 = vmul.f32 %v1054, 0.70710677
        %v1133 = vmul.f32 %v1095, 0.70710677
        %v1134 = vmul.f32 %v1057, 0.70710677
        %v1135 = vmul.f32 %v1098, 0.70710677
        %v1136 = vmul.f32 %v1060, 0.70710677
        %v1137 = vmul.f32 %v1101, 0.70710677
        %v1138 = vmul.f32 %v1063, 0.70710677
        %v1139 = vmul.f32 %v1104, 0.70710677
        %v1140 = vmul.f32 %v1066, 0.70710677
        %v1141 = vmul.f32 %v1107, 0.70710677
        %v1142 = vmul.f32 %v1069, 0.70710677
        %v1143 = vmul.f32 %v1110, 0.70710677
        %v1144 = vmul.f32 %v1128, %v1128
        %v1145 = vmin.f32 16.0, %v1144
        %v1146 = vmul.f32 %v1145, 2.1237322e-06
        %v1147 = vadd.f32 %v1146, 0.00028619796
        %v1148 = vmul.f32 %v1145, %v1147
        %v1149 = vadd.f32 %v1148, 0.0036580483
        %v1150 = vmul.f32 %v1145, %v1149
        %v1151 = vadd.f32 %v1150, 0.05243302
        %v1152 = vmul.f32 %v1145, %v1151
        %v1153 = vadd.f32 %v1152, 0.18741608
        %v1154 = vmul.f32 %v1145, %v1153
        %v1155 = vadd.f32 %v1154, 1.1283791
        %v1156 = vmul.f32 %v1128, %v1155
        %v1157 = vmul.f32 %v1145, 3.8918573e-05
        %v1158 = vadd.f32 %v1157, 0.001143296
        %v1159 = vmul.f32 %v1145, %v1158
        %v1160 = vadd.f32 %v1159, 0.014752088
        %v1161 = vmul.f32 %v1145, %v1160
        %v1162 = vadd.f32 %v1161, 0.112945676
        %v1163 = vmul.f32 %v1145, %v1162
        %v1164 = vadd.f32 %v1163, 0.4994258
        %v1165 = vmul.f32 %v1145, %v1164
        %v1166 = vadd.f32 %v1165, 1.0
        %v1167 = vrcp.pop %v1166
        %v1168 = vmul.f32 %v1166, %v1167
        %v1169 = vsub.f32 1.0, %v1168
        %v1170 = vmul.f32 %v1167, %v1169
        %v1171 = vadd.f32 %v1167, %v1170
        %vm1172 = vweird.f32 %v1166
        %vm1173 = vweird.f32 %v1167
        %vm1174 = vmor %vm1172, %vm1173
        %v1175 = vsel %vm1174, %v1167, %v1171
        %v1176 = vand.u32 2147483647, %v1166
        %vm1177 = vcmp.eq.f32.partialorder %v1176, 8.507059e+37
        %v1178 = vand.u32 %v1166, 2147483648
        %v1179 = vor.u32 1.1754944e-38, %v1178
        %v1180 = vsel %vm1177, %v1179, %v1175
        %v1181 = vmul.f32 %v1156, %v1180
        %v1182 = vmin.f32 %v1181, 1.0
        %v1183 = vmax.f32 %v1182, -1.0
        %v1184 = vmul.f32 %v1129, %v1129
        %v1185 = vmin.f32 16.0, %v1184
        %v1186 = vmul.f32 %v1185, 2.1237322e-06
        %v1187 = vadd.f32 %v1186, 0.00028619796
        %v1188 = vmul.f32 %v1185, %v1187
        %v1189 = vadd.f32 %v1188, 0.0036580483
        %v1190 = vmul.f32 %v1185, %v1189
        %v1191 = vadd.f32 %v1190, 0.05243302
        %v1192 = vmul.f32 %v1185, %v1191
        %v1193 = vadd.f32 %v1192, 0.18741608
        %v1194 = vmul.f32 %v1185, %v1193
        %v1195 = vadd.f32 %v1194, 1.1283791
        %v1196 = vmul.f32 %v1129, %v1195
        %v1197 = vmul.f32 %v1185, 3.8918573e-05
        %v1198 = vadd.f32 %v1197, 0.001143296
        %v1199 = vmul.f32 %v1185, %v1198
        %v1200 = vadd.f32 %v1199, 0.014752088
        %v1201 = vmul.f32 %v1185, %v1200
        %v1202 = vadd.f32 %v1201, 0.112945676
        %v1203 = vmul.f32 %v1185, %v1202
        %v1204 = vadd.f32 %v1203, 0.4994258
        %v1205 = vmul.f32 %v1185, %v1204
        %v1206 = vadd.f32 %v1205, 1.0
        %v1207 = vrcp.pop %v1206
        %v1208 = vmul.f32 %v1206, %v1207
        %v1209 = vsub.f32 1.0, %v1208
        %v1210 = vmul.f32 %v1207, %v1209
        %v1211 = vadd.f32 %v1207, %v1210
        %vm1212 = vweird.f32 %v1206
        %vm1213 = vweird.f32 %v1207
        %vm1214 = vmor %vm1212, %vm1213
        %v1215 = vsel %vm1214, %v1207, %v1211
        %v1216 = vand.u32 2147483647, %v1206
        %vm1217 = vcmp.eq.f32.partialorder %v1216, 8.507059e+37
        %v1218 = vand.u32 %v1206, 2147483648
        %v1219 = vor.u32 1.1754944e-38, %v1218
        %v1220 = vsel %vm1217, %v1219, %v1215
        %v1221 = vmul.f32 %v1196, %v1220
        %v1222 = vmin.f32 %v1221, 1.0
        %v1223 = vmax.f32 %v1222, -1.0
        %v1224 = vmul.f32 %v1130, %v1130
        %v1225 = vmin.f32 16.0, %v1224
        %v1226 = vmul.f32 %v1225, 2.1237322e-06
        %v1227 = vadd.f32 %v1226, 0.00028619796
        %v1228 = vmul.f32 %v1225, %v1227
        %v1229 = vadd.f32 %v1228, 0.0036580483
        %v1230 = vmul.f32 %v1225, %v1229
        %v1231 = vadd.f32 %v1230, 0.05243302
        %v1232 = vmul.f32 %v1225, %v1231
        %v1233 = vadd.f32 %v1232, 0.18741608
        %v1234 = vmul.f32 %v1225, %v1233
        %v1235 = vadd.f32 %v1234, 1.1283791
        %v1236 = vmul.f32 %v1130, %v1235
        %v1237 = vmul.f32 %v1225, 3.8918573e-05
        %v1238 = vadd.f32 %v1237, 0.001143296
        %v1239 = vmul.f32 %v1225, %v1238
        %v1240 = vadd.f32 %v1239, 0.014752088
        %v1241 = vmul.f32 %v1225, %v1240
        %v1242 = vadd.f32 %v1241, 0.112945676
        %v1243 = vmul.f32 %v1225, %v1242
        %v1244 = vadd.f32 %v1243, 0.4994258
        %v1245 = vmul.f32 %v1225, %v1244
        %v1246 = vadd.f32 %v1245, 1.0
        %v1247 = vrcp.pop %v1246
        %v1248 = vmul.f32 %v1246, %v1247
        %v1249 = vsub.f32 1.0, %v1248
        %v1250 = vmul.f32 %v1247, %v1249
        %v1251 = vadd.f32 %v1247, %v1250
        %vm1252 = vweird.f32 %v1246
        %vm1253 = vweird.f32 %v1247
        %vm1254 = vmor %vm1252, %vm1253
        %v1255 = vsel %vm1254, %v1247, %v1251
        %v1256 = vand.u32 2147483647, %v1246
        %vm1257 = vcmp.eq.f32.partialorder %v1256, 8.507059e+37
        %v1258 = vand.u32 %v1246, 2147483648
        %v1259 = vor.u32 1.1754944e-38, %v1258
        %v1260 = vsel %vm1257, %v1259, %v1255
        %v1261 = vmul.f32 %v1236, %v1260
        %v1262 = vmin.f32 %v1261, 1.0
        %v1263 = vmax.f32 %v1262, -1.0
        %v1264 = vmul.f32 %v1131, %v1131
        %v1265 = vmin.f32 16.0, %v1264
        %v1266 = vmul.f32 %v1265, 2.1237322e-06
        %v1267 = vadd.f32 %v1266, 0.00028619796
        %v1268 = vmul.f32 %v1265, %v1267
        %v1269 = vadd.f32 %v1268, 0.0036580483
        %v1270 = vmul.f32 %v1265, %v1269
        %v1271 = vadd.f32 %v1270, 0.05243302
        %v1272 = vmul.f32 %v1265, %v1271
        %v1273 = vadd.f32 %v1272, 0.18741608
        %v1274 = vmul.f32 %v1265, %v1273
        %v1275 = vadd.f32 %v1274, 1.1283791
        %v1276 = vmul.f32 %v1131, %v1275
        %v1277 = vmul.f32 %v1265, 3.8918573e-05
        %v1278 = vadd.f32 %v1277, 0.001143296
        %v1279 = vmul.f32 %v1265, %v1278
        %v1280 = vadd.f32 %v1279, 0.014752088
        %v1281 = vmul.f32 %v1265, %v1280
        %v1282 = vadd.f32 %v1281, 0.112945676
        %v1283 = vmul.f32 %v1265, %v1282
        %v1284 = vadd.f32 %v1283, 0.4994258
        %v1285 = vmul.f32 %v1265, %v1284
        %v1286 = vadd.f32 %v1285, 1.0
        %v1287 = vrcp.pop %v1286
        %v1288 = vmul.f32 %v1286, %v1287
        %v1289 = vsub.f32 1.0, %v1288
        %v1290 = vmul.f32 %v1287, %v1289
        %v1291 = vadd.f32 %v1287, %v1290
        %vm1292 = vweird.f32 %v1286
        %vm1293 = vweird.f32 %v1287
        %vm1294 = vmor %vm1292, %vm1293
        %v1295 = vsel %vm1294, %v1287, %v1291
        %v1296 = vand.u32 2147483647, %v1286
        %vm1297 = vcmp.eq.f32.partialorder %v1296, 8.507059e+37
        %v1298 = vand.u32 %v1286, 2147483648
        %v1299 = vor.u32 1.1754944e-38, %v1298
        %v1300 = vsel %vm1297, %v1299, %v1295
        %v1301 = vmul.f32 %v1276, %v1300
        %v1302 = vmin.f32 %v1301, 1.0
        %v1303 = vmax.f32 %v1302, -1.0
        %v1304 = vmul.f32 %v1132, %v1132
        %v1305 = vmin.f32 16.0, %v1304
        %v1306 = vmul.f32 %v1305, 2.1237322e-06
        %v1307 = vadd.f32 %v1306, 0.00028619796
        %v1308 = vmul.f32 %v1305, %v1307
        %v1309 = vadd.f32 %v1308, 0.0036580483
        %v1310 = vmul.f32 %v1305, %v1309
        %v1311 = vadd.f32 %v1310, 0.05243302
        %v1312 = vmul.f32 %v1305, %v1311
        %v1313 = vadd.f32 %v1312, 0.18741608
        %v1314 = vmul.f32 %v1305, %v1313
        %v1315 = vadd.f32 %v1314, 1.1283791
        %v1316 = vmul.f32 %v1132, %v1315
        %v1317 = vmul.f32 %v1305, 3.8918573e-05
        %v1318 = vadd.f32 %v1317, 0.001143296
        %v1319 = vmul.f32 %v1305, %v1318
        %v1320 = vadd.f32 %v1319, 0.014752088
        %v1321 = vmul.f32 %v1305, %v1320
        %v1322 = vadd.f32 %v1321, 0.112945676
        %v1323 = vmul.f32 %v1305, %v1322
        %v1324 = vadd.f32 %v1323, 0.4994258
        %v1325 = vmul.f32 %v1305, %v1324
        %v1326 = vadd.f32 %v1325, 1.0
        %v1327 = vrcp.pop %v1326
        %v1328 = vmul.f32 %v1326, %v1327
        %v1329 = vsub.f32 1.0, %v1328
        %v1330 = vmul.f32 %v1327, %v1329
        %v1331 = vadd.f32 %v1327, %v1330
        %vm1332 = vweird.f32 %v1326
        %vm1333 = vweird.f32 %v1327
        %vm1334 = vmor %vm1332, %vm1333
        %v1335 = vsel %vm1334, %v1327, %v1331
        %v1336 = vand.u32 2147483647, %v1326
        %vm1337 = vcmp.eq.f32.partialorder %v1336, 8.507059e+37
        %v1338 = vand.u32 %v1326, 2147483648
        %v1339 = vor.u32 1.1754944e-38, %v1338
        %v1340 = vsel %vm1337, %v1339, %v1335
        %v1341 = vmul.f32 %v1316, %v1340
        %v1342 = vmin.f32 %v1341, 1.0
        %v1343 = vmax.f32 %v1342, -1.0
        %v1344 = vmul.f32 %v1133, %v1133
        %v1345 = vmin.f32 16.0, %v1344
        %v1346 = vmul.f32 %v1345, 2.1237322e-06
        %v1347 = vadd.f32 %v1346, 0.00028619796
        %v1348 = vmul.f32 %v1345, %v1347
        %v1349 = vadd.f32 %v1348, 0.0036580483
        %v1350 = vmul.f32 %v1345, %v1349
        %v1351 = vadd.f32 %v1350, 0.05243302
        %v1352 = vmul.f32 %v1345, %v1351
        %v1353 = vadd.f32 %v1352, 0.18741608
        %v1354 = vmul.f32 %v1345, %v1353
        %v1355 = vadd.f32 %v1354, 1.1283791
        %v1356 = vmul.f32 %v1133, %v1355
        %v1357 = vmul.f32 %v1345, 3.8918573e-05
        %v1358 = vadd.f32 %v1357, 0.001143296
        %v1359 = vmul.f32 %v1345, %v1358
        %v1360 = vadd.f32 %v1359, 0.014752088
        %v1361 = vmul.f32 %v1345, %v1360
        %v1362 = vadd.f32 %v1361, 0.112945676
        %v1363 = vmul.f32 %v1345, %v1362
        %v1364 = vadd.f32 %v1363, 0.4994258
        %v1365 = vmul.f32 %v1345, %v1364
        %v1366 = vadd.f32 %v1365, 1.0
        %v1367 = vrcp.pop %v1366
        %v1368 = vmul.f32 %v1366, %v1367
        %v1369 = vsub.f32 1.0, %v1368
        %v1370 = vmul.f32 %v1367, %v1369
        %v1371 = vadd.f32 %v1367, %v1370
        %vm1372 = vweird.f32 %v1366
        %vm1373 = vweird.f32 %v1367
        %vm1374 = vmor %vm1372, %vm1373
        %v1375 = vsel %vm1374, %v1367, %v1371
        %v1376 = vand.u32 2147483647, %v1366
        %vm1377 = vcmp.eq.f32.partialorder %v1376, 8.507059e+37
        %v1378 = vand.u32 %v1366, 2147483648
        %v1379 = vor.u32 1.1754944e-38, %v1378
        %v1380 = vsel %vm1377, %v1379, %v1375
        %v1381 = vmul.f32 %v1356, %v1380
        %v1382 = vmin.f32 %v1381, 1.0
        %v1383 = vmax.f32 %v1382, -1.0
        %v1384 = vmul.f32 %v1134, %v1134
        %v1385 = vmin.f32 16.0, %v1384
        %v1386 = vmul.f32 %v1385, 2.1237322e-06
        %v1387 = vadd.f32 %v1386, 0.00028619796
        %v1388 = vmul.f32 %v1385, %v1387
        %v1389 = vadd.f32 %v1388, 0.0036580483
        %v1390 = vmul.f32 %v1385, %v1389
        %v1391 = vadd.f32 %v1390, 0.05243302
        %v1392 = vmul.f32 %v1385, %v1391
        %v1393 = vadd.f32 %v1392, 0.18741608
        %v1394 = vmul.f32 %v1385, %v1393
        %v1395 = vadd.f32 %v1394, 1.1283791
        %v1396 = vmul.f32 %v1134, %v1395
        %v1397 = vmul.f32 %v1385, 3.8918573e-05
        %v1398 = vadd.f32 %v1397, 0.001143296
        %v1399 = vmul.f32 %v1385, %v1398
        %v1400 = vadd.f32 %v1399, 0.014752088
        %v1401 = vmul.f32 %v1385, %v1400
        %v1402 = vadd.f32 %v1401, 0.112945676
        %v1403 = vmul.f32 %v1385, %v1402
        %v1404 = vadd.f32 %v1403, 0.4994258
        %v1405 = vmul.f32 %v1385, %v1404
        %v1406 = vadd.f32 %v1405, 1.0
        %v1407 = vrcp.pop %v1406
        %v1408 = vmul.f32 %v1406, %v1407
        %v1409 = vsub.f32 1.0, %v1408
        %v1410 = vmul.f32 %v1407, %v1409
        %v1411 = vadd.f32 %v1407, %v1410
        %vm1412 = vweird.f32 %v1406
        %vm1413 = vweird.f32 %v1407
        %vm1414 = vmor %vm1412, %vm1413
        %v1415 = vsel %vm1414, %v1407, %v1411
        %v1416 = vand.u32 2147483647, %v1406
        %vm1417 = vcmp.eq.f32.partialorder %v1416, 8.507059e+37
        %v1418 = vand.u32 %v1406, 2147483648
        %v1419 = vor.u32 1.1754944e-38, %v1418
        %v1420 = vsel %vm1417, %v1419, %v1415
        %v1421 = vmul.f32 %v1396, %v1420
        %v1422 = vmin.f32 %v1421, 1.0
        %v1423 = vmax.f32 %v1422, -1.0
        %v1424 = vmul.f32 %v1135, %v1135
        %v1425 = vmin.f32 16.0, %v1424
        %v1426 = vmul.f32 %v1425, 2.1237322e-06
        %v1427 = vadd.f32 %v1426, 0.00028619796
        %v1428 = vmul.f32 %v1425, %v1427
        %v1429 = vadd.f32 %v1428, 0.0036580483
        %v1430 = vmul.f32 %v1425, %v1429
        %v1431 = vadd.f32 %v1430, 0.05243302
        %v1432 = vmul.f32 %v1425, %v1431
        %v1433 = vadd.f32 %v1432, 0.18741608
        %v1434 = vmul.f32 %v1425, %v1433
        %v1435 = vadd.f32 %v1434, 1.1283791
        %v1436 = vmul.f32 %v1135, %v1435
        %v1437 = vmul.f32 %v1425, 3.8918573e-05
        %v1438 = vadd.f32 %v1437, 0.001143296
        %v1439 = vmul.f32 %v1425, %v1438
        %v1440 = vadd.f32 %v1439, 0.014752088
        %v1441 = vmul.f32 %v1425, %v1440
        %v1442 = vadd.f32 %v1441, 0.112945676
        %v1443 = vmul.f32 %v1425, %v1442
        %v1444 = vadd.f32 %v1443, 0.4994258
        %v1445 = vmul.f32 %v1425, %v1444
        %v1446 = vadd.f32 %v1445, 1.0
        %v1447 = vrcp.pop %v1446
        %v1448 = vmul.f32 %v1446, %v1447
        %v1449 = vsub.f32 1.0, %v1448
        %v1450 = vmul.f32 %v1447, %v1449
        %v1451 = vadd.f32 %v1447, %v1450
        %vm1452 = vweird.f32 %v1446
        %vm1453 = vweird.f32 %v1447
        %vm1454 = vmor %vm1452, %vm1453
        %v1455 = vsel %vm1454, %v1447, %v1451
        %v1456 = vand.u32 2147483647, %v1446
        %vm1457 = vcmp.eq.f32.partialorder %v1456, 8.507059e+37
        %v1458 = vand.u32 %v1446, 2147483648
        %v1459 = vor.u32 1.1754944e-38, %v1458
        %v1460 = vsel %vm1457, %v1459, %v1455
        %v1461 = vmul.f32 %v1436, %v1460
        %v1462 = vmin.f32 %v1461, 1.0
        %v1463 = vmax.f32 %v1462, -1.0
        %v1464 = vmul.f32 %v1136, %v1136
        %v1465 = vmin.f32 16.0, %v1464
        %v1466 = vmul.f32 %v1465, 2.1237322e-06
        %v1467 = vadd.f32 %v1466, 0.00028619796
        %v1468 = vmul.f32 %v1465, %v1467
        %v1469 = vadd.f32 %v1468, 0.0036580483
        %v1470 = vmul.f32 %v1465, %v1469
        %v1471 = vadd.f32 %v1470, 0.05243302
        %v1472 = vmul.f32 %v1465, %v1471
        %v1473 = vadd.f32 %v1472, 0.18741608
        %v1474 = vmul.f32 %v1465, %v1473
        %v1475 = vadd.f32 %v1474, 1.1283791
        %v1476 = vmul.f32 %v1136, %v1475
        %v1477 = vmul.f32 %v1465, 3.8918573e-05
        %v1478 = vadd.f32 %v1477, 0.001143296
        %v1479 = vmul.f32 %v1465, %v1478
        %v1480 = vadd.f32 %v1479, 0.014752088
        %v1481 = vmul.f32 %v1465, %v1480
        %v1482 = vadd.f32 %v1481, 0.112945676
        %v1483 = vmul.f32 %v1465, %v1482
        %v1484 = vadd.f32 %v1483, 0.4994258
        %v1485 = vmul.f32 %v1465, %v1484
        %v1486 = vadd.f32 %v1485, 1.0
        %v1487 = vrcp.pop %v1486
        %v1488 = vmul.f32 %v1486, %v1487
        %v1489 = vsub.f32 1.0, %v1488
        %v1490 = vmul.f32 %v1487, %v1489
        %v1491 = vadd.f32 %v1487, %v1490
        %vm1492 = vweird.f32 %v1486
        %vm1493 = vweird.f32 %v1487
        %vm1494 = vmor %vm1492, %vm1493
        %v1495 = vsel %vm1494, %v1487, %v1491
        %v1496 = vand.u32 2147483647, %v1486
        %vm1497 = vcmp.eq.f32.partialorder %v1496, 8.507059e+37
        %v1498 = vand.u32 %v1486, 2147483648
        %v1499 = vor.u32 1.1754944e-38, %v1498
        %v1500 = vsel %vm1497, %v1499, %v1495
        %v1501 = vmul.f32 %v1476, %v1500
        %v1502 = vmin.f32 %v1501, 1.0
        %v1503 = vmax.f32 %v1502, -1.0
        %v1504 = vmul.f32 %v1137, %v1137
        %v1505 = vmin.f32 16.0, %v1504
        %v1506 = vmul.f32 %v1505, 2.1237322e-06
        %v1507 = vadd.f32 %v1506, 0.00028619796
        %v1508 = vmul.f32 %v1505, %v1507
        %v1509 = vadd.f32 %v1508, 0.0036580483
        %v1510 = vmul.f32 %v1505, %v1509
        %v1511 = vadd.f32 %v1510, 0.05243302
        %v1512 = vmul.f32 %v1505, %v1511
        %v1513 = vadd.f32 %v1512, 0.18741608
        %v1514 = vmul.f32 %v1505, %v1513
        %v1515 = vadd.f32 %v1514, 1.1283791
        %v1516 = vmul.f32 %v1137, %v1515
        %v1517 = vmul.f32 %v1505, 3.8918573e-05
        %v1518 = vadd.f32 %v1517, 0.001143296
        %v1519 = vmul.f32 %v1505, %v1518
        %v1520 = vadd.f32 %v1519, 0.014752088
        %v1521 = vmul.f32 %v1505, %v1520
        %v1522 = vadd.f32 %v1521, 0.112945676
        %v1523 = vmul.f32 %v1505, %v1522
        %v1524 = vadd.f32 %v1523, 0.4994258
        %v1525 = vmul.f32 %v1505, %v1524
        %v1526 = vadd.f32 %v1525, 1.0
        %v1527 = vrcp.pop %v1526
        %v1528 = vmul.f32 %v1526, %v1527
        %v1529 = vsub.f32 1.0, %v1528
        %v1530 = vmul.f32 %v1527, %v1529
        %v1531 = vadd.f32 %v1527, %v1530
        %vm1532 = vweird.f32 %v1526
        %vm1533 = vweird.f32 %v1527
        %vm1534 = vmor %vm1532, %vm1533
        %v1535 = vsel %vm1534, %v1527, %v1531
        %v1536 = vand.u32 2147483647, %v1526
        %vm1537 = vcmp.eq.f32.partialorder %v1536, 8.507059e+37
        %v1538 = vand.u32 %v1526, 2147483648
        %v1539 = vor.u32 1.1754944e-38, %v1538
        %v1540 = vsel %vm1537, %v1539, %v1535
        %v1541 = vmul.f32 %v1516, %v1540
        %v1542 = vmin.f32 %v1541, 1.0
        %v1543 = vmax.f32 %v1542, -1.0
        %v1544 = vmul.f32 %v1138, %v1138
        %v1545 = vmin.f32 16.0, %v1544
        %v1546 = vmul.f32 %v1545, 2.1237322e-06
        %v1547 = vadd.f32 %v1546, 0.00028619796
        %v1548 = vmul.f32 %v1545, %v1547
        %v1549 = vadd.f32 %v1548, 0.0036580483
        %v1550 = vmul.f32 %v1545, %v1549
        %v1551 = vadd.f32 %v1550, 0.05243302
        %v1552 = vmul.f32 %v1545, %v1551
        %v1553 = vadd.f32 %v1552, 0.18741608
        %v1554 = vmul.f32 %v1545, %v1553
        %v1555 = vadd.f32 %v1554, 1.1283791
        %v1556 = vmul.f32 %v1138, %v1555
        %v1557 = vmul.f32 %v1545, 3.8918573e-05
        %v1558 = vadd.f32 %v1557, 0.001143296
        %v1559 = vmul.f32 %v1545, %v1558
        %v1560 = vadd.f32 %v1559, 0.014752088
        %v1561 = vmul.f32 %v1545, %v1560
        %v1562 = vadd.f32 %v1561, 0.112945676
        %v1563 = vmul.f32 %v1545, %v1562
        %v1564 = vadd.f32 %v1563, 0.4994258
        %v1565 = vmul.f32 %v1545, %v1564
        %v1566 = vadd.f32 %v1565, 1.0
        %v1567 = vrcp.pop %v1566
        %v1568 = vmul.f32 %v1566, %v1567
        %v1569 = vsub.f32 1.0, %v1568
        %v1570 = vmul.f32 %v1567, %v1569
        %v1571 = vadd.f32 %v1567, %v1570
        %vm1572 = vweird.f32 %v1566
        %vm1573 = vweird.f32 %v1567
        %vm1574 = vmor %vm1572, %vm1573
        %v1575 = vsel %vm1574, %v1567, %v1571
        %v1576 = vand.u32 2147483647, %v1566
        %vm1577 = vcmp.eq.f32.partialorder %v1576, 8.507059e+37
        %v1578 = vand.u32 %v1566, 2147483648
        %v1579 = vor.u32 1.1754944e-38, %v1578
        %v1580 = vsel %vm1577, %v1579, %v1575
        %v1581 = vmul.f32 %v1556, %v1580
        %v1582 = vmin.f32 %v1581, 1.0
        %v1583 = vmax.f32 %v1582, -1.0
        %v1584 = vmul.f32 %v1139, %v1139
        %v1585 = vmin.f32 16.0, %v1584
        %v1586 = vmul.f32 %v1585, 2.1237322e-06
        %v1587 = vadd.f32 %v1586, 0.00028619796
        %v1588 = vmul.f32 %v1585, %v1587
        %v1589 = vadd.f32 %v1588, 0.0036580483
        %v1590 = vmul.f32 %v1585, %v1589
        %v1591 = vadd.f32 %v1590, 0.05243302
        %v1592 = vmul.f32 %v1585, %v1591
        %v1593 = vadd.f32 %v1592, 0.18741608
        %v1594 = vmul.f32 %v1585, %v1593
        %v1595 = vadd.f32 %v1594, 1.1283791
        %v1596 = vmul.f32 %v1139, %v1595
        %v1597 = vmul.f32 %v1585, 3.8918573e-05
        %v1598 = vadd.f32 %v1597, 0.001143296
        %v1599 = vmul.f32 %v1585, %v1598
        %v1600 = vadd.f32 %v1599, 0.014752088
        %v1601 = vmul.f32 %v1585, %v1600
        %v1602 = vadd.f32 %v1601, 0.112945676
        %v1603 = vmul.f32 %v1585, %v1602
        %v1604 = vadd.f32 %v1603, 0.4994258
        %v1605 = vmul.f32 %v1585, %v1604
        %v1606 = vadd.f32 %v1605, 1.0
        %v1607 = vrcp.pop %v1606
        %v1608 = vmul.f32 %v1606, %v1607
        %v1609 = vsub.f32 1.0, %v1608
        %v1610 = vmul.f32 %v1607, %v1609
        %v1611 = vadd.f32 %v1607, %v1610
        %vm1612 = vweird.f32 %v1606
        %vm1613 = vweird.f32 %v1607
        %vm1614 = vmor %vm1612, %vm1613
        %v1615 = vsel %vm1614, %v1607, %v1611
        %v1616 = vand.u32 2147483647, %v1606
        %vm1617 = vcmp.eq.f32.partialorder %v1616, 8.507059e+37
        %v1618 = vand.u32 %v1606, 2147483648
        %v1619 = vor.u32 1.1754944e-38, %v1618
        %v1620 = vsel %vm1617, %v1619, %v1615
        %v1621 = vmul.f32 %v1596, %v1620
        %v1622 = vmin.f32 %v1621, 1.0
        %v1623 = vmax.f32 %v1622, -1.0
        %v1624 = vmul.f32 %v1140, %v1140
        %v1625 = vmin.f32 16.0, %v1624
        %v1626 = vmul.f32 %v1625, 2.1237322e-06
        %v1627 = vadd.f32 %v1626, 0.00028619796
        %v1628 = vmul.f32 %v1625, %v1627
        %v1629 = vadd.f32 %v1628, 0.0036580483
        %v1630 = vmul.f32 %v1625, %v1629
        %v1631 = vadd.f32 %v1630, 0.05243302
        %v1632 = vmul.f32 %v1625, %v1631
        %v1633 = vadd.f32 %v1632, 0.18741608
        %v1634 = vmul.f32 %v1625, %v1633
        %v1635 = vadd.f32 %v1634, 1.1283791
        %v1636 = vmul.f32 %v1140, %v1635
        %v1637 = vmul.f32 %v1625, 3.8918573e-05
        %v1638 = vadd.f32 %v1637, 0.001143296
        %v1639 = vmul.f32 %v1625, %v1638
        %v1640 = vadd.f32 %v1639, 0.014752088
        %v1641 = vmul.f32 %v1625, %v1640
        %v1642 = vadd.f32 %v1641, 0.112945676
        %v1643 = vmul.f32 %v1625, %v1642
        %v1644 = vadd.f32 %v1643, 0.4994258
        %v1645 = vmul.f32 %v1625, %v1644
        %v1646 = vadd.f32 %v1645, 1.0
        %v1647 = vrcp.pop %v1646
        %v1648 = vmul.f32 %v1646, %v1647
        %v1649 = vsub.f32 1.0, %v1648
        %v1650 = vmul.f32 %v1647, %v1649
        %v1651 = vadd.f32 %v1647, %v1650
        %vm1652 = vweird.f32 %v1646
        %vm1653 = vweird.f32 %v1647
        %vm1654 = vmor %vm1652, %vm1653
        %v1655 = vsel %vm1654, %v1647, %v1651
        %v1656 = vand.u32 2147483647, %v1646
        %vm1657 = vcmp.eq.f32.partialorder %v1656, 8.507059e+37
        %v1658 = vand.u32 %v1646, 2147483648
        %v1659 = vor.u32 1.1754944e-38, %v1658
        %v1660 = vsel %vm1657, %v1659, %v1655
        %v1661 = vmul.f32 %v1636, %v1660
        %v1662 = vmin.f32 %v1661, 1.0
        %v1663 = vmax.f32 %v1662, -1.0
        %v1664 = vmul.f32 %v1141, %v1141
        %v1665 = vmin.f32 16.0, %v1664
        %v1666 = vmul.f32 %v1665, 2.1237322e-06
        %v1667 = vadd.f32 %v1666, 0.00028619796
        %v1668 = vmul.f32 %v1665, %v1667
        %v1669 = vadd.f32 %v1668, 0.0036580483
        %v1670 = vmul.f32 %v1665, %v1669
        %v1671 = vadd.f32 %v1670, 0.05243302
        %v1672 = vmul.f32 %v1665, %v1671
        %v1673 = vadd.f32 %v1672, 0.18741608
        %v1674 = vmul.f32 %v1665, %v1673
        %v1675 = vadd.f32 %v1674, 1.1283791
        %v1676 = vmul.f32 %v1141, %v1675
        %v1677 = vmul.f32 %v1665, 3.8918573e-05
        %v1678 = vadd.f32 %v1677, 0.001143296
        %v1679 = vmul.f32 %v1665, %v1678
        %v1680 = vadd.f32 %v1679, 0.014752088
        %v1681 = vmul.f32 %v1665, %v1680
        %v1682 = vadd.f32 %v1681, 0.112945676
        %v1683 = vmul.f32 %v1665, %v1682
        %v1684 = vadd.f32 %v1683, 0.4994258
        %v1685 = vmul.f32 %v1665, %v1684
        %v1686 = vadd.f32 %v1685, 1.0
        %v1687 = vrcp.pop %v1686
        %v1688 = vmul.f32 %v1686, %v1687
        %v1689 = vsub.f32 1.0, %v1688
        %v1690 = vmul.f32 %v1687, %v1689
        %v1691 = vadd.f32 %v1687, %v1690
        %vm1692 = vweird.f32 %v1686
        %vm1693 = vweird.f32 %v1687
        %vm1694 = vmor %vm1692, %vm1693
        %v1695 = vsel %vm1694, %v1687, %v1691
        %v1696 = vand.u32 2147483647, %v1686
        %vm1697 = vcmp.eq.f32.partialorder %v1696, 8.507059e+37
        %v1698 = vand.u32 %v1686, 2147483648
        %v1699 = vor.u32 1.1754944e-38, %v1698
        %v1700 = vsel %vm1697, %v1699, %v1695
        %v1701 = vmul.f32 %v1676, %v1700
        %v1702 = vmin.f32 %v1701, 1.0
        %v1703 = vmax.f32 %v1702, -1.0
        %v1704 = vmul.f32 %v1142, %v1142
        %v1705 = vmin.f32 16.0, %v1704
        %v1706 = vmul.f32 %v1705, 2.1237322e-06
        %v1707 = vadd.f32 %v1706, 0.00028619796
        %v1708 = vmul.f32 %v1705, %v1707
        %v1709 = vadd.f32 %v1708, 0.0036580483
        %v1710 = vmul.f32 %v1705, %v1709
        %v1711 = vadd.f32 %v1710, 0.05243302
        %v1712 = vmul.f32 %v1705, %v1711
        %v1713 = vadd.f32 %v1712, 0.18741608
        %v1714 = vmul.f32 %v1705, %v1713
        %v1715 = vadd.f32 %v1714, 1.1283791
        %v1716 = vmul.f32 %v1142, %v1715
        %v1717 = vmul.f32 %v1705, 3.8918573e-05
        %v1718 = vadd.f32 %v1717, 0.001143296
        %v1719 = vmul.f32 %v1705, %v1718
        %v1720 = vadd.f32 %v1719, 0.014752088
        %v1721 = vmul.f32 %v1705, %v1720
        %v1722 = vadd.f32 %v1721, 0.112945676
        %v1723 = vmul.f32 %v1705, %v1722
        %v1724 = vadd.f32 %v1723, 0.4994258
        %v1725 = vmul.f32 %v1705, %v1724
        %v1726 = vadd.f32 %v1725, 1.0
        %v1727 = vrcp.pop %v1726
        %v1728 = vmul.f32 %v1726, %v1727
        %v1729 = vsub.f32 1.0, %v1728
        %v1730 = vmul.f32 %v1727, %v1729
        %v1731 = vadd.f32 %v1727, %v1730
        %vm1732 = vweird.f32 %v1726
        %vm1733 = vweird.f32 %v1727
        %vm1734 = vmor %vm1732, %vm1733
        %v1735 = vsel %vm1734, %v1727, %v1731
        %v1736 = vand.u32 2147483647, %v1726
        %vm1737 = vcmp.eq.f32.partialorder %v1736, 8.507059e+37
        %v1738 = vand.u32 %v1726, 2147483648
        %v1739 = vor.u32 1.1754944e-38, %v1738
        %v1740 = vsel %vm1737, %v1739, %v1735
        %v1741 = vmul.f32 %v1716, %v1740
        %v1742 = vmin.f32 %v1741, 1.0
        %v1743 = vmax.f32 %v1742, -1.0
        %v1744 = vmul.f32 %v1143, %v1143
        %v1745 = vmin.f32 16.0, %v1744
        %v1746 = vmul.f32 %v1745, 2.1237322e-06
        %v1747 = vadd.f32 %v1746, 0.00028619796
        %v1748 = vmul.f32 %v1745, %v1747
        %v1749 = vadd.f32 %v1748, 0.0036580483
        %v1750 = vmul.f32 %v1745, %v1749
        %v1751 = vadd.f32 %v1750, 0.05243302
        %v1752 = vmul.f32 %v1745, %v1751
        %v1753 = vadd.f32 %v1752, 0.18741608
        %v1754 = vmul.f32 %v1745, %v1753
        %v1755 = vadd.f32 %v1754, 1.1283791
        %v1756 = vmul.f32 %v1143, %v1755
        %v1757 = vmul.f32 %v1745, 3.8918573e-05
        %v1758 = vadd.f32 %v1757, 0.001143296
        %v1759 = vmul.f32 %v1745, %v1758
        %v1760 = vadd.f32 %v1759, 0.014752088
        %v1761 = vmul.f32 %v1745, %v1760
        %v1762 = vadd.f32 %v1761, 0.112945676
        %v1763 = vmul.f32 %v1745, %v1762
        %v1764 = vadd.f32 %v1763, 0.4994258
        %v1765 = vmul.f32 %v1745, %v1764
        %v1766 = vadd.f32 %v1765, 1.0
        %v1767 = vrcp.pop %v1766
        %v1768 = vmul.f32 %v1766, %v1767
        %v1769 = vsub.f32 1.0, %v1768
        %v1770 = vmul.f32 %v1767, %v1769
        %v1771 = vadd.f32 %v1767, %v1770
        %vm1772 = vweird.f32 %v1766
        %vm1773 = vweird.f32 %v1767
        %vm1774 = vmor %vm1772, %vm1773
        %v1775 = vsel %vm1774, %v1767, %v1771
        %v1776 = vand.u32 2147483647, %v1766
        %vm1777 = vcmp.eq.f32.partialorder %v1776, 8.507059e+37
        %v1778 = vand.u32 %v1766, 2147483648
        %v1779 = vor.u32 1.1754944e-38, %v1778
        %v1780 = vsel %vm1777, %v1779, %v1775
        %v1781 = vmul.f32 %v1756, %v1780
        %v1782 = vmin.f32 %v1781, 1.0
        %v1783 = vmax.f32 %v1782, -1.0
        %v1784 = vadd.f32 %v1183, 1.0
        %v1785 = vadd.f32 %v1223, 1.0
        %v1786 = vadd.f32 %v1263, 1.0
        %v1787 = vadd.f32 %v1303, 1.0
        %v1788 = vadd.f32 %v1343, 1.0
        %v1789 = vadd.f32 %v1383, 1.0
        %v1790 = vadd.f32 %v1423, 1.0
        %v1791 = vadd.f32 %v1463, 1.0
        %v1792 = vadd.f32 %v1503, 1.0
        %v1793 = vadd.f32 %v1543, 1.0
        %v1794 = vadd.f32 %v1583, 1.0
        %v1795 = vadd.f32 %v1623, 1.0
        %v1796 = vadd.f32 %v1663, 1.0
        %v1797 = vadd.f32 %v1703, 1.0
        %v1798 = vadd.f32 %v1743, 1.0
        %v1799 = vadd.f32 %v1783, 1.0
        %v1800 = vmul.f32 %v1112, %v1784
        %v1801 = vmul.f32 %v1113, %v1785
        %v1802 = vmul.f32 %v1114, %v1786
        %v1803 = vmul.f32 %v1115, %v1787
        %v1804 = vmul.f32 %v1116, %v1788
        %v1805 = vmul.f32 %v1117, %v1789
        %v1806 = vmul.f32 %v1118, %v1790
        %v1807 = vmul.f32 %v1119, %v1791
        %v1808 = vmul.f32 %v1120, %v1792
        %v1809 = vmul.f32 %v1121, %v1793
        %v1810 = vmul.f32 %v1122, %v1794
        %v1811 = vmul.f32 %v1123, %v1795
        %v1812 = vmul.f32 %v1124, %v1796
        %v1813 = vmul.f32 %v1125, %v1797
        %v1814 = vmul.f32 %v1126, %v1798
        %v1815 = vmul.f32 %v1127, %v1799
        %1816 = vset.pattern.permute.xlu0 5
        %1817 = vperm.xlu0 %1816, %v689
        %v1818 = vpop.permute.xlu0 %1817
        %1820 = vset.pattern.permute.xlu0 5
        %1821 = vperm.xlu0 %1820, %v690
        %v1822 = vpop.permute.xlu0 %1821
        %1824 = vset.pattern.permute.xlu0 5
        %1825 = vperm.xlu0 %1824, %v691
        %v1826 = vpop.permute.xlu0 %1825
        %1828 = vset.pattern.permute.xlu0 5
        %1829 = vperm.xlu0 %1828, %v692
        %v1830 = vpop.permute.xlu0 %1829
        %1832 = vset.pattern.permute.xlu0 5
        %1833 = vperm.xlu0 %1832, %v693
        %v1834 = vpop.permute.xlu0 %1833
        %1836 = vset.pattern.permute.xlu0 5
        %1837 = vperm.xlu0 %1836, %v694
        %v1838 = vpop.permute.xlu0 %1837
        %1840 = vset.pattern.permute.xlu0 5
        %1841 = vperm.xlu0 %1840, %v695
        %v1842 = vpop.permute.xlu0 %1841
        %1844 = vset.pattern.permute.xlu0 5
        %1845 = vperm.xlu0 %1844, %v696
        %v1846 = vpop.permute.xlu0 %1845
        %v1848 = vmul.f32 %v1818, %v1800
        %v1849 = vmul.f32 %v1818, %v1801
        %v1850 = vmul.f32 %v1822, %v1802
        %v1851 = vmul.f32 %v1822, %v1803
        %v1852 = vmul.f32 %v1826, %v1804
        %v1853 = vmul.f32 %v1826, %v1805
        %v1854 = vmul.f32 %v1830, %v1806
        %v1855 = vmul.f32 %v1830, %v1807
        %v1856 = vmul.f32 %v1834, %v1808
        %v1857 = vmul.f32 %v1834, %v1809
        %v1858 = vmul.f32 %v1838, %v1810
        %v1859 = vmul.f32 %v1838, %v1811
        %v1860 = vmul.f32 %v1842, %v1812
        %v1861 = vmul.f32 %v1842, %v1813
        %v1862 = vmul.f32 %v1846, %v1814
        %v1863 = vmul.f32 %v1846, %v1815
        %v1864 = vadd.f32 %v1848, %v1850
        %v1865 = vadd.f32 %v1864, %v1852
        %v1866 = vadd.f32 %v1865, %v1854
        %v1867 = vadd.f32 %v1866, %v1856
        %v1868 = vadd.f32 %v1867, %v1858
        %v1869 = vadd.f32 %v1868, %v1860
        %v1870 = vadd.f32 %v1869, %v1862
        %v1871 = vrot.slane %v1870, 4
        %v1872 = vadd.f32 %v1870, %v1871
        %v1873 = vrot.slane %v1872, 2
        %v1874 = vadd.f32 %v1872, %v1873
        %v1875 = vrot.slane %v1874, 1
        %v1876 = vadd.f32 %v1874, %v1875
        %v1877 = vadd.f32 %v1849, %v1851
        %v1878 = vadd.f32 %v1877, %v1853
        %v1879 = vadd.f32 %v1878, %v1855
        %v1880 = vadd.f32 %v1879, %v1857
        %v1881 = vadd.f32 %v1880, %v1859
        %v1882 = vadd.f32 %v1881, %v1861
        %v1883 = vadd.f32 %v1882, %v1863
        %v1884 = vrot.slane %v1883, 4
        %v1885 = vadd.f32 %v1883, %v1884
        %v1886 = vrot.slane %v1885, 2
        %v1887 = vadd.f32 %v1885, %v1886
        %v1888 = vrot.slane %v1887, 1
        %v1889 = vadd.f32 %v1887, %v1888
        %v1890 = vld [vmem:[%s6] sm:$0x1]
        %1892 = vset.pattern.permute.xlu0 0
        %1893 = vperm.xlu0 %1892, %v1890
        %v1894 = vpop.permute.xlu0 %1893
        %v1896 = vperm.slane %v1894, 0
        %v1897 = vadd.f32 %v1876, %v1896
        %v1898 = vadd.f32 %v1889, %v1896
        %v1899 = vadd.f32 %v1897, %v681
        %v1900 = vadd.f32 %v1898, %v688
        %v1901 = vld [vmem:[%s329] ss:$4 sm:$0x3]
        %v1904 = vrot.slane %v1900, 7
        %vm1905 = vcmask 1040384
        %v1906 = vsel %vm1905, %v1899, %v1904
        %v1908 = vsub.f32 %v1901, %v1906
        %1909 = vset.pattern.permute.xlu0 6
        %1910 = vperm.xlu0 %1909, %v689
        %v1911 = vpop.permute.xlu0 %1910
        %1913 = vset.pattern.permute.xlu0 6
        %1914 = vperm.xlu0 %1913, %v690
        %v1915 = vpop.permute.xlu0 %1914
        %1917 = vset.pattern.permute.xlu0 6
        %1918 = vperm.xlu0 %1917, %v691
        %v1919 = vpop.permute.xlu0 %1918
        %1921 = vset.pattern.permute.xlu0 6
        %1922 = vperm.xlu0 %1921, %v692
        %v1923 = vpop.permute.xlu0 %1922
        %1925 = vset.pattern.permute.xlu0 6
        %1926 = vperm.xlu0 %1925, %v693
        %v1927 = vpop.permute.xlu0 %1926
        %1929 = vset.pattern.permute.xlu0 6
        %1930 = vperm.xlu0 %1929, %v694
        %v1931 = vpop.permute.xlu0 %1930
        %1933 = vset.pattern.permute.xlu0 6
        %1934 = vperm.xlu0 %1933, %v695
        %v1935 = vpop.permute.xlu0 %1934
        %1937 = vset.pattern.permute.xlu0 6
        %1938 = vperm.xlu0 %1937, %v696
        %v1939 = vpop.permute.xlu0 %1938
        %v1942 = vperm.slane %v1908, 0
        %v1943 = vperm.slane %v1908, 1
        %v1946 = vmul.f32 %v1911, %v1942
        %v1947 = vmul.f32 %v1911, %v1943
        %v1948 = vmul.f32 %v1915, %v1942
        %v1949 = vmul.f32 %v1915, %v1943
        %v1950 = vmul.f32 %v1919, %v1942
        %v1951 = vmul.f32 %v1919, %v1943
        %v1952 = vmul.f32 %v1923, %v1942
        %v1953 = vmul.f32 %v1923, %v1943
        %v1954 = vmul.f32 %v1927, %v1942
        %v1955 = vmul.f32 %v1927, %v1943
        %v1956 = vmul.f32 %v1931, %v1942
        %v1957 = vmul.f32 %v1931, %v1943
        %v1958 = vmul.f32 %v1935, %v1942
        %v1959 = vmul.f32 %v1935, %v1943
        %v1960 = vmul.f32 %v1939, %v1942
        %v1961 = vmul.f32 %v1939, %v1943
        %1962 = vset.pattern.permute.xlu0 9
        %1963 = vperm.xlu0 %1962, %v689
        %v1964 = vpop.permute.xlu0 %1963
        %1966 = vset.pattern.permute.xlu0 9
        %1967 = vperm.xlu0 %1966, %v690
        %v1968 = vpop.permute.xlu0 %1967
        %1970 = vset.pattern.permute.xlu0 9
        %1971 = vperm.xlu0 %1970, %v691
        %v1972 = vpop.permute.xlu0 %1971
        %1974 = vset.pattern.permute.xlu0 9
        %1975 = vperm.xlu0 %1974, %v692
        %v1976 = vpop.permute.xlu0 %1975
        %1978 = vset.pattern.permute.xlu0 9
        %1979 = vperm.xlu0 %1978, %v693
        %v1980 = vpop.permute.xlu0 %1979
        %1982 = vset.pattern.permute.xlu0 9
        %1983 = vperm.xlu0 %1982, %v694
        %v1984 = vpop.permute.xlu0 %1983
        %1986 = vset.pattern.permute.xlu0 9
        %1987 = vperm.xlu0 %1986, %v695
        %v1988 = vpop.permute.xlu0 %1987
        %1990 = vset.pattern.permute.xlu0 9
        %1991 = vperm.xlu0 %1990, %v696
        %v1992 = vpop.permute.xlu0 %1991
        %v1994 = vadd.f32 %v1964, %v1946
        %v1995 = vadd.f32 %v1964, %v1947
        %v1996 = vadd.f32 %v1968, %v1948
        %v1997 = vadd.f32 %v1968, %v1949
        %v1998 = vadd.f32 %v1972, %v1950
        %v1999 = vadd.f32 %v1972, %v1951
        %v2000 = vadd.f32 %v1976, %v1952
        %v2001 = vadd.f32 %v1976, %v1953
        %v2002 = vadd.f32 %v1980, %v1954
        %v2003 = vadd.f32 %v1980, %v1955
        %v2004 = vadd.f32 %v1984, %v1956
        %v2005 = vadd.f32 %v1984, %v1957
        %v2006 = vadd.f32 %v1988, %v1958
        %v2007 = vadd.f32 %v1988, %v1959
        %v2008 = vadd.f32 %v1992, %v1960
        %v2009 = vadd.f32 %v1992, %v1961
        %s2010 = scalar_lea.vmem %s329, 1
        %v2011 = vld [vmem:[%s2010] ss:$4 sm:$0x3]
        %v2012 = vsub.f32 %v2011, %v1906
        %2013 = vset.pattern.permute.xlu0 7
        %2014 = vperm.xlu0 %2013, %v689
        %v2015 = vpop.permute.xlu0 %2014
        %2017 = vset.pattern.permute.xlu0 7
        %2018 = vperm.xlu0 %2017, %v690
        %v2019 = vpop.permute.xlu0 %2018
        %2021 = vset.pattern.permute.xlu0 7
        %2022 = vperm.xlu0 %2021, %v691
        %v2023 = vpop.permute.xlu0 %2022
        %2025 = vset.pattern.permute.xlu0 7
        %2026 = vperm.xlu0 %2025, %v692
        %v2027 = vpop.permute.xlu0 %2026
        %2029 = vset.pattern.permute.xlu0 7
        %2030 = vperm.xlu0 %2029, %v693
        %v2031 = vpop.permute.xlu0 %2030
        %2033 = vset.pattern.permute.xlu0 7
        %2034 = vperm.xlu0 %2033, %v694
        %v2035 = vpop.permute.xlu0 %2034
        %2037 = vset.pattern.permute.xlu0 7
        %2038 = vperm.xlu0 %2037, %v695
        %v2039 = vpop.permute.xlu0 %2038
        %2041 = vset.pattern.permute.xlu0 7
        %2042 = vperm.xlu0 %2041, %v696
        %v2043 = vpop.permute.xlu0 %2042
        %v2046 = vperm.slane %v2012, 0
        %v2047 = vperm.slane %v2012, 1
        %v2050 = vmul.f32 %v2015, %v2046
        %v2051 = vmul.f32 %v2015, %v2047
        %v2052 = vmul.f32 %v2019, %v2046
        %v2053 = vmul.f32 %v2019, %v2047
        %v2054 = vmul.f32 %v2023, %v2046
        %v2055 = vmul.f32 %v2023, %v2047
        %v2056 = vmul.f32 %v2027, %v2046
        %v2057 = vmul.f32 %v2027, %v2047
        %v2058 = vmul.f32 %v2031, %v2046
        %v2059 = vmul.f32 %v2031, %v2047
        %v2060 = vmul.f32 %v2035, %v2046
        %v2061 = vmul.f32 %v2035, %v2047
        %v2062 = vmul.f32 %v2039, %v2046
        %v2063 = vmul.f32 %v2039, %v2047
        %v2064 = vmul.f32 %v2043, %v2046
        %v2065 = vmul.f32 %v2043, %v2047
        %v2066 = vadd.f32 %v1994, %v2050
        %v2067 = vadd.f32 %v1995, %v2051
        %v2068 = vadd.f32 %v1996, %v2052
        %v2069 = vadd.f32 %v1997, %v2053
        %v2070 = vadd.f32 %v1998, %v2054
        %v2071 = vadd.f32 %v1999, %v2055
        %v2072 = vadd.f32 %v2000, %v2056
        %v2073 = vadd.f32 %v2001, %v2057
        %v2074 = vadd.f32 %v2002, %v2058
        %v2075 = vadd.f32 %v2003, %v2059
        %v2076 = vadd.f32 %v2004, %v2060
        %v2077 = vadd.f32 %v2005, %v2061
        %v2078 = vadd.f32 %v2006, %v2062
        %v2079 = vadd.f32 %v2007, %v2063
        %v2080 = vadd.f32 %v2008, %v2064
        %v2081 = vadd.f32 %v2009, %v2065
        %s2082 = scalar_lea.vmem %s329, 2
        %v2083 = vld [vmem:[%s2082] ss:$4 sm:$0x3]
        %v2084 = vsub.f32 %v2083, %v1906
        %2085 = vset.pattern.permute.xlu0 8
        %2086 = vperm.xlu0 %2085, %v689
        %v2087 = vpop.permute.xlu0 %2086
        %2089 = vset.pattern.permute.xlu0 8
        %2090 = vperm.xlu0 %2089, %v690
        %v2091 = vpop.permute.xlu0 %2090
        %2093 = vset.pattern.permute.xlu0 8
        %2094 = vperm.xlu0 %2093, %v691
        %v2095 = vpop.permute.xlu0 %2094
        %2097 = vset.pattern.permute.xlu0 8
        %2098 = vperm.xlu0 %2097, %v692
        %v2099 = vpop.permute.xlu0 %2098
        %2101 = vset.pattern.permute.xlu0 8
        %2102 = vperm.xlu0 %2101, %v693
        %v2103 = vpop.permute.xlu0 %2102
        %2105 = vset.pattern.permute.xlu0 8
        %2106 = vperm.xlu0 %2105, %v694
        %v2107 = vpop.permute.xlu0 %2106
        %2109 = vset.pattern.permute.xlu0 8
        %2110 = vperm.xlu0 %2109, %v695
        %v2111 = vpop.permute.xlu0 %2110
        %2113 = vset.pattern.permute.xlu0 8
        %2114 = vperm.xlu0 %2113, %v696
        %v2115 = vpop.permute.xlu0 %2114
        %v2118 = vperm.slane %v2084, 0
        %v2119 = vperm.slane %v2084, 1
        %v2122 = vmul.f32 %v2087, %v2118
        %v2123 = vmul.f32 %v2087, %v2119
        %v2124 = vmul.f32 %v2091, %v2118
        %v2125 = vmul.f32 %v2091, %v2119
        %v2126 = vmul.f32 %v2095, %v2118
        %v2127 = vmul.f32 %v2095, %v2119
        %v2128 = vmul.f32 %v2099, %v2118
        %v2129 = vmul.f32 %v2099, %v2119
        %v2130 = vmul.f32 %v2103, %v2118
        %v2131 = vmul.f32 %v2103, %v2119
        %v2132 = vmul.f32 %v2107, %v2118
        %v2133 = vmul.f32 %v2107, %v2119
        %v2134 = vmul.f32 %v2111, %v2118
        %v2135 = vmul.f32 %v2111, %v2119
        %v2136 = vmul.f32 %v2115, %v2118
        %v2137 = vmul.f32 %v2115, %v2119
        %v2138 = vadd.f32 %v2066, %v2122
        %v2139 = vadd.f32 %v2067, %v2123
        %v2140 = vadd.f32 %v2068, %v2124
        %v2141 = vadd.f32 %v2069, %v2125
        %v2142 = vadd.f32 %v2070, %v2126
        %v2143 = vadd.f32 %v2071, %v2127
        %v2144 = vadd.f32 %v2072, %v2128
        %v2145 = vadd.f32 %v2073, %v2129
        %v2146 = vadd.f32 %v2074, %v2130
        %v2147 = vadd.f32 %v2075, %v2131
        %v2148 = vadd.f32 %v2076, %v2132
        %v2149 = vadd.f32 %v2077, %v2133
        %v2150 = vadd.f32 %v2078, %v2134
        %v2151 = vadd.f32 %v2079, %v2135
        %v2152 = vadd.f32 %v2080, %v2136
        %v2153 = vadd.f32 %v2081, %v2137
        %v2154 = vtanh.pop %v2138
        %v2155 = vtanh.pop %v2139
        %v2156 = vtanh.pop %v2140
        %v2157 = vtanh.pop %v2141
        %v2158 = vtanh.pop %v2142
        %v2159 = vtanh.pop %v2143
        %v2160 = vtanh.pop %v2144
        %v2161 = vtanh.pop %v2145
        %v2162 = vtanh.pop %v2146
        %v2163 = vtanh.pop %v2147
        %v2164 = vtanh.pop %v2148
        %v2165 = vtanh.pop %v2149
        %v2166 = vtanh.pop %v2150
        %v2167 = vtanh.pop %v2151
        %v2168 = vtanh.pop %v2152
        %v2169 = vtanh.pop %v2153
        %s2170 = scalar_lea.vmem [#allocation2], 64
        %v2171 = vld [vmem:[%s2170] sm:$0xff]
        %v2172 = vld [vmem:[%s2170 + $0x8] sm:$0xff]
        %v2173 = vld [vmem:[%s2170 + $0x10] sm:$0xff]
        %v2174 = vld [vmem:[%s2170 + $0x18] sm:$0xff]
        %v2175 = vld [vmem:[%s2170 + $0x20] sm:$0xff]
        %v2176 = vld [vmem:[%s2170 + $0x28] sm:$0xff]
        %v2177 = vld [vmem:[%s2170 + $0x30] sm:$0xff]
        %v2178 = vld [vmem:[%s2170 + $0x38] sm:$0xff]
        %2179 = vset.pattern.permute.xlu0 10
        %2180 = vperm.xlu0 %2179, %v689
        %v2181 = vpop.permute.xlu0 %2180
        %2183 = vset.pattern.permute.xlu0 10
        %2184 = vperm.xlu0 %2183, %v690
        %v2185 = vpop.permute.xlu0 %2184
        %2187 = vset.pattern.permute.xlu0 10
        %2188 = vperm.xlu0 %2187, %v691
        %v2189 = vpop.permute.xlu0 %2188
        %2191 = vset.pattern.permute.xlu0 10
        %2192 = vperm.xlu0 %2191, %v692
        %v2193 = vpop.permute.xlu0 %2192
        %2195 = vset.pattern.permute.xlu0 10
        %2196 = vperm.xlu0 %2195, %v693
        %v2197 = vpop.permute.xlu0 %2196
        %2199 = vset.pattern.permute.xlu0 10
        %2200 = vperm.xlu0 %2199, %v694
        %v2201 = vpop.permute.xlu0 %2200
        %2203 = vset.pattern.permute.xlu0 10
        %2204 = vperm.xlu0 %2203, %v695
        %v2205 = vpop.permute.xlu0 %2204
        %2207 = vset.pattern.permute.xlu0 10
        %2208 = vperm.xlu0 %2207, %v696
        %v2209 = vpop.permute.xlu0 %2208
        %v2212 = vsel %vm1005, %v2171, 0
        %v2215 = vsel %vm1005, %v2172, 0
        %v2218 = vsel %vm1005, %v2173, 0
        %v2221 = vsel %vm1005, %v2174, 0
        %v2224 = vsel %vm1005, %v2175, 0
        %v2227 = vsel %vm1005, %v2176, 0
        %v2230 = vsel %vm1005, %v2177, 0
        %v2233 = vsel %vm1005, %v2178, 0
        %2235 = vmatpush.msra.mxu0 0.0
        %2236 = vmatpush.msra.mxu0 0.0
        %2237 = vmatpush.msra.mxu0 0.0
        %2238 = vmatpush.msra.mxu0 0.0
        %2239 = vmatpush.msra.mxu0 0.0
        %2240 = vmatpush.msra.mxu0 0.0
        %2241 = vmatpush.msra.mxu0 0.0
        %2242 = vmatpush.msra.mxu0 0.0
        %2243 = vmatpush.msra.mxu0 %v2168
        %2244 = vmatpush.msra.mxu0 %v2166
        %2245 = vmatpush.msra.mxu0 %v2164
        %2246 = vmatpush.msra.mxu0 %v2162
        %2247 = vmatpush.msra.mxu0 %v2160
        %2248 = vmatpush.msra.mxu0 %v2158
        %2249 = vmatpush.msra.mxu0 %v2156
        %2250 = vmatpush.msra.mxu0 %v2154
        %2251 = vmatmul.f32.gmra.mxu0 %v2212
        %v2252 = vpop.f32.mrf.mxu0
        %v2253 = vadd.f32 %v2181, %v2252
        %2254 = vmatmul.f32.gmra.mxu0 %v2215
        %v2255 = vpop.f32.mrf.mxu0
        %v2256 = vadd.f32 %v2185, %v2255
        %2257 = vmatmul.f32.gmra.mxu0 %v2218
        %v2258 = vpop.f32.mrf.mxu0
        %v2259 = vadd.f32 %v2189, %v2258
        %2260 = vmatmul.f32.gmra.mxu0 %v2221
        %v2261 = vpop.f32.mrf.mxu0
        %v2262 = vadd.f32 %v2193, %v2261
        %2263 = vmatmul.f32.gmra.mxu0 %v2224
        %v2264 = vpop.f32.mrf.mxu0
        %v2265 = vadd.f32 %v2197, %v2264
        %2266 = vmatmul.f32.gmra.mxu0 %v2227
        %v2267 = vpop.f32.mrf.mxu0
        %v2268 = vadd.f32 %v2201, %v2267
        %2269 = vmatmul.f32.gmra.mxu0 %v2230
        %v2270 = vpop.f32.mrf.mxu0
        %v2271 = vadd.f32 %v2205, %v2270
        %2272 = vmatmul.f32.gmra.mxu0 %v2233
        %v2273 = vpop.f32.mrf.mxu0
        %v2274 = vadd.f32 %v2209, %v2273
        %2275 = vdwg.mxu0
        %2276 = vmatpush.msra.mxu0 0.0
        %2277 = vmatpush.msra.mxu0 0.0
        %2278 = vmatpush.msra.mxu0 0.0
        %2279 = vmatpush.msra.mxu0 0.0
        %2280 = vmatpush.msra.mxu0 0.0
        %2281 = vmatpush.msra.mxu0 0.0
        %2282 = vmatpush.msra.mxu0 0.0
        %2283 = vmatpush.msra.mxu0 0.0
        %2284 = vmatpush.msra.mxu0 %v2169
        %2285 = vmatpush.msra.mxu0 %v2167
        %2286 = vmatpush.msra.mxu0 %v2165
        %2287 = vmatpush.msra.mxu0 %v2163
        %2288 = vmatpush.msra.mxu0 %v2161
        %2289 = vmatpush.msra.mxu0 %v2159
        %2290 = vmatpush.msra.mxu0 %v2157
        %2291 = vmatpush.msra.mxu0 %v2155
        %2292 = vmatmul.f32.gmra.mxu0 %v2212
        %v2293 = vpop.f32.mrf.mxu0
        %v2294 = vadd.f32 %v2181, %v2293
        %2295 = vmatmul.f32.gmra.mxu0 %v2215
        %v2296 = vpop.f32.mrf.mxu0
        %v2297 = vadd.f32 %v2185, %v2296
        %2298 = vmatmul.f32.gmra.mxu0 %v2218
        %v2299 = vpop.f32.mrf.mxu0
        %v2300 = vadd.f32 %v2189, %v2299
        %2301 = vmatmul.f32.gmra.mxu0 %v2221
        %v2302 = vpop.f32.mrf.mxu0
        %v2303 = vadd.f32 %v2193, %v2302
        %2304 = vmatmul.f32.gmra.mxu0 %v2224
        %v2305 = vpop.f32.mrf.mxu0
        %v2306 = vadd.f32 %v2197, %v2305
        %2307 = vmatmul.f32.gmra.mxu0 %v2227
        %v2308 = vpop.f32.mrf.mxu0
        %v2309 = vadd.f32 %v2201, %v2308
        %2310 = vmatmul.f32.gmra.mxu0 %v2230
        %v2311 = vpop.f32.mrf.mxu0
        %v2312 = vadd.f32 %v2205, %v2311
        %2313 = vmatmul.f32.gmra.mxu0 %v2233
        %v2314 = vpop.f32.mrf.mxu0
        %v2315 = vadd.f32 %v2209, %v2314
        %2316 = vdwg.mxu0
        %v2317 = vmul.f32 %v2253, 0.5
        %v2318 = vmul.f32 %v2294, 0.5
        %v2319 = vmul.f32 %v2256, 0.5
        %v2320 = vmul.f32 %v2297, 0.5
        %v2321 = vmul.f32 %v2259, 0.5
        %v2322 = vmul.f32 %v2300, 0.5
        %v2323 = vmul.f32 %v2262, 0.5
        %v2324 = vmul.f32 %v2303, 0.5
        %v2325 = vmul.f32 %v2265, 0.5
        %v2326 = vmul.f32 %v2306, 0.5
        %v2327 = vmul.f32 %v2268, 0.5
        %v2328 = vmul.f32 %v2309, 0.5
        %v2329 = vmul.f32 %v2271, 0.5
        %v2330 = vmul.f32 %v2312, 0.5
        %v2331 = vmul.f32 %v2274, 0.5
        %v2332 = vmul.f32 %v2315, 0.5
        %v2333 = vmul.f32 %v2253, 0.70710677
        %v2334 = vmul.f32 %v2294, 0.70710677
        %v2335 = vmul.f32 %v2256, 0.70710677
        %v2336 = vmul.f32 %v2297, 0.70710677
        %v2337 = vmul.f32 %v2259, 0.70710677
        %v2338 = vmul.f32 %v2300, 0.70710677
        %v2339 = vmul.f32 %v2262, 0.70710677
        %v2340 = vmul.f32 %v2303, 0.70710677
        %v2341 = vmul.f32 %v2265, 0.70710677
        %v2342 = vmul.f32 %v2306, 0.70710677
        %v2343 = vmul.f32 %v2268, 0.70710677
        %v2344 = vmul.f32 %v2309, 0.70710677
        %v2345 = vmul.f32 %v2271, 0.70710677
        %v2346 = vmul.f32 %v2312, 0.70710677
        %v2347 = vmul.f32 %v2274, 0.70710677
        %v2348 = vmul.f32 %v2315, 0.70710677
        %v2349 = vmul.f32 %v2333, %v2333
        %v2350 = vmin.f32 16.0, %v2349
        %v2351 = vmul.f32 %v2350, 2.1237322e-06
        %v2352 = vadd.f32 %v2351, 0.00028619796
        %v2353 = vmul.f32 %v2350, %v2352
        %v2354 = vadd.f32 %v2353, 0.0036580483
        %v2355 = vmul.f32 %v2350, %v2354
        %v2356 = vadd.f32 %v2355, 0.05243302
        %v2357 = vmul.f32 %v2350, %v2356
        %v2358 = vadd.f32 %v2357, 0.18741608
        %v2359 = vmul.f32 %v2350, %v2358
        %v2360 = vadd.f32 %v2359, 1.1283791
        %v2361 = vmul.f32 %v2333, %v2360
        %v2362 = vmul.f32 %v2350, 3.8918573e-05
        %v2363 = vadd.f32 %v2362, 0.001143296
        %v2364 = vmul.f32 %v2350, %v2363
        %v2365 = vadd.f32 %v2364, 0.014752088
        %v2366 = vmul.f32 %v2350, %v2365
        %v2367 = vadd.f32 %v2366, 0.112945676
        %v2368 = vmul.f32 %v2350, %v2367
        %v2369 = vadd.f32 %v2368, 0.4994258
        %v2370 = vmul.f32 %v2350, %v2369
        %v2371 = vadd.f32 %v2370, 1.0
        %v2372 = vrcp.pop %v2371
        %v2373 = vmul.f32 %v2371, %v2372
        %v2374 = vsub.f32 1.0, %v2373
        %v2375 = vmul.f32 %v2372, %v2374
        %v2376 = vadd.f32 %v2372, %v2375
        %vm2377 = vweird.f32 %v2371
        %vm2378 = vweird.f32 %v2372
        %vm2379 = vmor %vm2377, %vm2378
        %v2380 = vsel %vm2379, %v2372, %v2376
        %v2381 = vand.u32 2147483647, %v2371
        %vm2382 = vcmp.eq.f32.partialorder %v2381, 8.507059e+37
        %v2383 = vand.u32 %v2371, 2147483648
        %v2384 = vor.u32 1.1754944e-38, %v2383
        %v2385 = vsel %vm2382, %v2384, %v2380
        %v2386 = vmul.f32 %v2361, %v2385
        %v2387 = vmin.f32 %v2386, 1.0
        %v2388 = vmax.f32 %v2387, -1.0
        %v2389 = vmul.f32 %v2334, %v2334
        %v2390 = vmin.f32 16.0, %v2389
        %v2391 = vmul.f32 %v2390, 2.1237322e-06
        %v2392 = vadd.f32 %v2391, 0.00028619796
        %v2393 = vmul.f32 %v2390, %v2392
        %v2394 = vadd.f32 %v2393, 0.0036580483
        %v2395 = vmul.f32 %v2390, %v2394
        %v2396 = vadd.f32 %v2395, 0.05243302
        %v2397 = vmul.f32 %v2390, %v2396
        %v2398 = vadd.f32 %v2397, 0.18741608
        %v2399 = vmul.f32 %v2390, %v2398
        %v2400 = vadd.f32 %v2399, 1.1283791
        %v2401 = vmul.f32 %v2334, %v2400
        %v2402 = vmul.f32 %v2390, 3.8918573e-05
        %v2403 = vadd.f32 %v2402, 0.001143296
        %v2404 = vmul.f32 %v2390, %v2403
        %v2405 = vadd.f32 %v2404, 0.014752088
        %v2406 = vmul.f32 %v2390, %v2405
        %v2407 = vadd.f32 %v2406, 0.112945676
        %v2408 = vmul.f32 %v2390, %v2407
        %v2409 = vadd.f32 %v2408, 0.4994258
        %v2410 = vmul.f32 %v2390, %v2409
        %v2411 = vadd.f32 %v2410, 1.0
        %v2412 = vrcp.pop %v2411
        %v2413 = vmul.f32 %v2411, %v2412
        %v2414 = vsub.f32 1.0, %v2413
        %v2415 = vmul.f32 %v2412, %v2414
        %v2416 = vadd.f32 %v2412, %v2415
        %vm2417 = vweird.f32 %v2411
        %vm2418 = vweird.f32 %v2412
        %vm2419 = vmor %vm2417, %vm2418
        %v2420 = vsel %vm2419, %v2412, %v2416
        %v2421 = vand.u32 2147483647, %v2411
        %vm2422 = vcmp.eq.f32.partialorder %v2421, 8.507059e+37
        %v2423 = vand.u32 %v2411, 2147483648
        %v2424 = vor.u32 1.1754944e-38, %v2423
        %v2425 = vsel %vm2422, %v2424, %v2420
        %v2426 = vmul.f32 %v2401, %v2425
        %v2427 = vmin.f32 %v2426, 1.0
        %v2428 = vmax.f32 %v2427, -1.0
        %v2429 = vmul.f32 %v2335, %v2335
        %v2430 = vmin.f32 16.0, %v2429
        %v2431 = vmul.f32 %v2430, 2.1237322e-06
        %v2432 = vadd.f32 %v2431, 0.00028619796
        %v2433 = vmul.f32 %v2430, %v2432
        %v2434 = vadd.f32 %v2433, 0.0036580483
        %v2435 = vmul.f32 %v2430, %v2434
        %v2436 = vadd.f32 %v2435, 0.05243302
        %v2437 = vmul.f32 %v2430, %v2436
        %v2438 = vadd.f32 %v2437, 0.18741608
        %v2439 = vmul.f32 %v2430, %v2438
        %v2440 = vadd.f32 %v2439, 1.1283791
        %v2441 = vmul.f32 %v2335, %v2440
        %v2442 = vmul.f32 %v2430, 3.8918573e-05
        %v2443 = vadd.f32 %v2442, 0.001143296
        %v2444 = vmul.f32 %v2430, %v2443
        %v2445 = vadd.f32 %v2444, 0.014752088
        %v2446 = vmul.f32 %v2430, %v2445
        %v2447 = vadd.f32 %v2446, 0.112945676
        %v2448 = vmul.f32 %v2430, %v2447
        %v2449 = vadd.f32 %v2448, 0.4994258
        %v2450 = vmul.f32 %v2430, %v2449
        %v2451 = vadd.f32 %v2450, 1.0
        %v2452 = vrcp.pop %v2451
        %v2453 = vmul.f32 %v2451, %v2452
        %v2454 = vsub.f32 1.0, %v2453
        %v2455 = vmul.f32 %v2452, %v2454
        %v2456 = vadd.f32 %v2452, %v2455
        %vm2457 = vweird.f32 %v2451
        %vm2458 = vweird.f32 %v2452
        %vm2459 = vmor %vm2457, %vm2458
        %v2460 = vsel %vm2459, %v2452, %v2456
        %v2461 = vand.u32 2147483647, %v2451
        %vm2462 = vcmp.eq.f32.partialorder %v2461, 8.507059e+37
        %v2463 = vand.u32 %v2451, 2147483648
        %v2464 = vor.u32 1.1754944e-38, %v2463
        %v2465 = vsel %vm2462, %v2464, %v2460
        %v2466 = vmul.f32 %v2441, %v2465
        %v2467 = vmin.f32 %v2466, 1.0
        %v2468 = vmax.f32 %v2467, -1.0
        %v2469 = vmul.f32 %v2336, %v2336
        %v2470 = vmin.f32 16.0, %v2469
        %v2471 = vmul.f32 %v2470, 2.1237322e-06
        %v2472 = vadd.f32 %v2471, 0.00028619796
        %v2473 = vmul.f32 %v2470, %v2472
        %v2474 = vadd.f32 %v2473, 0.0036580483
        %v2475 = vmul.f32 %v2470, %v2474
        %v2476 = vadd.f32 %v2475, 0.05243302
        %v2477 = vmul.f32 %v2470, %v2476
        %v2478 = vadd.f32 %v2477, 0.18741608
        %v2479 = vmul.f32 %v2470, %v2478
        %v2480 = vadd.f32 %v2479, 1.1283791
        %v2481 = vmul.f32 %v2336, %v2480
        %v2482 = vmul.f32 %v2470, 3.8918573e-05
        %v2483 = vadd.f32 %v2482, 0.001143296
        %v2484 = vmul.f32 %v2470, %v2483
        %v2485 = vadd.f32 %v2484, 0.014752088
        %v2486 = vmul.f32 %v2470, %v2485
        %v2487 = vadd.f32 %v2486, 0.112945676
        %v2488 = vmul.f32 %v2470, %v2487
        %v2489 = vadd.f32 %v2488, 0.4994258
        %v2490 = vmul.f32 %v2470, %v2489
        %v2491 = vadd.f32 %v2490, 1.0
        %v2492 = vrcp.pop %v2491
        %v2493 = vmul.f32 %v2491, %v2492
        %v2494 = vsub.f32 1.0, %v2493
        %v2495 = vmul.f32 %v2492, %v2494
        %v2496 = vadd.f32 %v2492, %v2495
        %vm2497 = vweird.f32 %v2491
        %vm2498 = vweird.f32 %v2492
        %vm2499 = vmor %vm2497, %vm2498
        %v2500 = vsel %vm2499, %v2492, %v2496
        %v2501 = vand.u32 2147483647, %v2491
        %vm2502 = vcmp.eq.f32.partialorder %v2501, 8.507059e+37
        %v2503 = vand.u32 %v2491, 2147483648
        %v2504 = vor.u32 1.1754944e-38, %v2503
        %v2505 = vsel %vm2502, %v2504, %v2500
        %v2506 = vmul.f32 %v2481, %v2505
        %v2507 = vmin.f32 %v2506, 1.0
        %v2508 = vmax.f32 %v2507, -1.0
        %v2509 = vmul.f32 %v2337, %v2337
        %v2510 = vmin.f32 16.0, %v2509
        %v2511 = vmul.f32 %v2510, 2.1237322e-06
        %v2512 = vadd.f32 %v2511, 0.00028619796
        %v2513 = vmul.f32 %v2510, %v2512
        %v2514 = vadd.f32 %v2513, 0.0036580483
        %v2515 = vmul.f32 %v2510, %v2514
        %v2516 = vadd.f32 %v2515, 0.05243302
        %v2517 = vmul.f32 %v2510, %v2516
        %v2518 = vadd.f32 %v2517, 0.18741608
        %v2519 = vmul.f32 %v2510, %v2518
        %v2520 = vadd.f32 %v2519, 1.1283791
        %v2521 = vmul.f32 %v2337, %v2520
        %v2522 = vmul.f32 %v2510, 3.8918573e-05
        %v2523 = vadd.f32 %v2522, 0.001143296
        %v2524 = vmul.f32 %v2510, %v2523
        %v2525 = vadd.f32 %v2524, 0.014752088
        %v2526 = vmul.f32 %v2510, %v2525
        %v2527 = vadd.f32 %v2526, 0.112945676
        %v2528 = vmul.f32 %v2510, %v2527
        %v2529 = vadd.f32 %v2528, 0.4994258
        %v2530 = vmul.f32 %v2510, %v2529
        %v2531 = vadd.f32 %v2530, 1.0
        %v2532 = vrcp.pop %v2531
        %v2533 = vmul.f32 %v2531, %v2532
        %v2534 = vsub.f32 1.0, %v2533
        %v2535 = vmul.f32 %v2532, %v2534
        %v2536 = vadd.f32 %v2532, %v2535
        %vm2537 = vweird.f32 %v2531
        %vm2538 = vweird.f32 %v2532
        %vm2539 = vmor %vm2537, %vm2538
        %v2540 = vsel %vm2539, %v2532, %v2536
        %v2541 = vand.u32 2147483647, %v2531
        %vm2542 = vcmp.eq.f32.partialorder %v2541, 8.507059e+37
        %v2543 = vand.u32 %v2531, 2147483648
        %v2544 = vor.u32 1.1754944e-38, %v2543
        %v2545 = vsel %vm2542, %v2544, %v2540
        %v2546 = vmul.f32 %v2521, %v2545
        %v2547 = vmin.f32 %v2546, 1.0
        %v2548 = vmax.f32 %v2547, -1.0
        %v2549 = vmul.f32 %v2338, %v2338
        %v2550 = vmin.f32 16.0, %v2549
        %v2551 = vmul.f32 %v2550, 2.1237322e-06
        %v2552 = vadd.f32 %v2551, 0.00028619796
        %v2553 = vmul.f32 %v2550, %v2552
        %v2554 = vadd.f32 %v2553, 0.0036580483
        %v2555 = vmul.f32 %v2550, %v2554
        %v2556 = vadd.f32 %v2555, 0.05243302
        %v2557 = vmul.f32 %v2550, %v2556
        %v2558 = vadd.f32 %v2557, 0.18741608
        %v2559 = vmul.f32 %v2550, %v2558
        %v2560 = vadd.f32 %v2559, 1.1283791
        %v2561 = vmul.f32 %v2338, %v2560
        %v2562 = vmul.f32 %v2550, 3.8918573e-05
        %v2563 = vadd.f32 %v2562, 0.001143296
        %v2564 = vmul.f32 %v2550, %v2563
        %v2565 = vadd.f32 %v2564, 0.014752088
        %v2566 = vmul.f32 %v2550, %v2565
        %v2567 = vadd.f32 %v2566, 0.112945676
        %v2568 = vmul.f32 %v2550, %v2567
        %v2569 = vadd.f32 %v2568, 0.4994258
        %v2570 = vmul.f32 %v2550, %v2569
        %v2571 = vadd.f32 %v2570, 1.0
        %v2572 = vrcp.pop %v2571
        %v2573 = vmul.f32 %v2571, %v2572
        %v2574 = vsub.f32 1.0, %v2573
        %v2575 = vmul.f32 %v2572, %v2574
        %v2576 = vadd.f32 %v2572, %v2575
        %vm2577 = vweird.f32 %v2571
        %vm2578 = vweird.f32 %v2572
        %vm2579 = vmor %vm2577, %vm2578
        %v2580 = vsel %vm2579, %v2572, %v2576
        %v2581 = vand.u32 2147483647, %v2571
        %vm2582 = vcmp.eq.f32.partialorder %v2581, 8.507059e+37
        %v2583 = vand.u32 %v2571, 2147483648
        %v2584 = vor.u32 1.1754944e-38, %v2583
        %v2585 = vsel %vm2582, %v2584, %v2580
        %v2586 = vmul.f32 %v2561, %v2585
        %v2587 = vmin.f32 %v2586, 1.0
        %v2588 = vmax.f32 %v2587, -1.0
        %v2589 = vmul.f32 %v2339, %v2339
        %v2590 = vmin.f32 16.0, %v2589
        %v2591 = vmul.f32 %v2590, 2.1237322e-06
        %v2592 = vadd.f32 %v2591, 0.00028619796
        %v2593 = vmul.f32 %v2590, %v2592
        %v2594 = vadd.f32 %v2593, 0.0036580483
        %v2595 = vmul.f32 %v2590, %v2594
        %v2596 = vadd.f32 %v2595, 0.05243302
        %v2597 = vmul.f32 %v2590, %v2596
        %v2598 = vadd.f32 %v2597, 0.18741608
        %v2599 = vmul.f32 %v2590, %v2598
        %v2600 = vadd.f32 %v2599, 1.1283791
        %v2601 = vmul.f32 %v2339, %v2600
        %v2602 = vmul.f32 %v2590, 3.8918573e-05
        %v2603 = vadd.f32 %v2602, 0.001143296
        %v2604 = vmul.f32 %v2590, %v2603
        %v2605 = vadd.f32 %v2604, 0.014752088
        %v2606 = vmul.f32 %v2590, %v2605
        %v2607 = vadd.f32 %v2606, 0.112945676
        %v2608 = vmul.f32 %v2590, %v2607
        %v2609 = vadd.f32 %v2608, 0.4994258
        %v2610 = vmul.f32 %v2590, %v2609
        %v2611 = vadd.f32 %v2610, 1.0
        %v2612 = vrcp.pop %v2611
        %v2613 = vmul.f32 %v2611, %v2612
        %v2614 = vsub.f32 1.0, %v2613
        %v2615 = vmul.f32 %v2612, %v2614
        %v2616 = vadd.f32 %v2612, %v2615
        %vm2617 = vweird.f32 %v2611
        %vm2618 = vweird.f32 %v2612
        %vm2619 = vmor %vm2617, %vm2618
        %v2620 = vsel %vm2619, %v2612, %v2616
        %v2621 = vand.u32 2147483647, %v2611
        %vm2622 = vcmp.eq.f32.partialorder %v2621, 8.507059e+37
        %v2623 = vand.u32 %v2611, 2147483648
        %v2624 = vor.u32 1.1754944e-38, %v2623
        %v2625 = vsel %vm2622, %v2624, %v2620
        %v2626 = vmul.f32 %v2601, %v2625
        %v2627 = vmin.f32 %v2626, 1.0
        %v2628 = vmax.f32 %v2627, -1.0
        %v2629 = vmul.f32 %v2340, %v2340
        %v2630 = vmin.f32 16.0, %v2629
        %v2631 = vmul.f32 %v2630, 2.1237322e-06
        %v2632 = vadd.f32 %v2631, 0.00028619796
        %v2633 = vmul.f32 %v2630, %v2632
        %v2634 = vadd.f32 %v2633, 0.0036580483
        %v2635 = vmul.f32 %v2630, %v2634
        %v2636 = vadd.f32 %v2635, 0.05243302
        %v2637 = vmul.f32 %v2630, %v2636
        %v2638 = vadd.f32 %v2637, 0.18741608
        %v2639 = vmul.f32 %v2630, %v2638
        %v2640 = vadd.f32 %v2639, 1.1283791
        %v2641 = vmul.f32 %v2340, %v2640
        %v2642 = vmul.f32 %v2630, 3.8918573e-05
        %v2643 = vadd.f32 %v2642, 0.001143296
        %v2644 = vmul.f32 %v2630, %v2643
        %v2645 = vadd.f32 %v2644, 0.014752088
        %v2646 = vmul.f32 %v2630, %v2645
        %v2647 = vadd.f32 %v2646, 0.112945676
        %v2648 = vmul.f32 %v2630, %v2647
        %v2649 = vadd.f32 %v2648, 0.4994258
        %v2650 = vmul.f32 %v2630, %v2649
        %v2651 = vadd.f32 %v2650, 1.0
        %v2652 = vrcp.pop %v2651
        %v2653 = vmul.f32 %v2651, %v2652
        %v2654 = vsub.f32 1.0, %v2653
        %v2655 = vmul.f32 %v2652, %v2654
        %v2656 = vadd.f32 %v2652, %v2655
        %vm2657 = vweird.f32 %v2651
        %vm2658 = vweird.f32 %v2652
        %vm2659 = vmor %vm2657, %vm2658
        %v2660 = vsel %vm2659, %v2652, %v2656
        %v2661 = vand.u32 2147483647, %v2651
        %vm2662 = vcmp.eq.f32.partialorder %v2661, 8.507059e+37
        %v2663 = vand.u32 %v2651, 2147483648
        %v2664 = vor.u32 1.1754944e-38, %v2663
        %v2665 = vsel %vm2662, %v2664, %v2660
        %v2666 = vmul.f32 %v2641, %v2665
        %v2667 = vmin.f32 %v2666, 1.0
        %v2668 = vmax.f32 %v2667, -1.0
        %v2669 = vmul.f32 %v2341, %v2341
        %v2670 = vmin.f32 16.0, %v2669
        %v2671 = vmul.f32 %v2670, 2.1237322e-06
        %v2672 = vadd.f32 %v2671, 0.00028619796
        %v2673 = vmul.f32 %v2670, %v2672
        %v2674 = vadd.f32 %v2673, 0.0036580483
        %v2675 = vmul.f32 %v2670, %v2674
        %v2676 = vadd.f32 %v2675, 0.05243302
        %v2677 = vmul.f32 %v2670, %v2676
        %v2678 = vadd.f32 %v2677, 0.18741608
        %v2679 = vmul.f32 %v2670, %v2678
        %v2680 = vadd.f32 %v2679, 1.1283791
        %v2681 = vmul.f32 %v2341, %v2680
        %v2682 = vmul.f32 %v2670, 3.8918573e-05
        %v2683 = vadd.f32 %v2682, 0.001143296
        %v2684 = vmul.f32 %v2670, %v2683
        %v2685 = vadd.f32 %v2684, 0.014752088
        %v2686 = vmul.f32 %v2670, %v2685
        %v2687 = vadd.f32 %v2686, 0.112945676
        %v2688 = vmul.f32 %v2670, %v2687
        %v2689 = vadd.f32 %v2688, 0.4994258
        %v2690 = vmul.f32 %v2670, %v2689
        %v2691 = vadd.f32 %v2690, 1.0
        %v2692 = vrcp.pop %v2691
        %v2693 = vmul.f32 %v2691, %v2692
        %v2694 = vsub.f32 1.0, %v2693
        %v2695 = vmul.f32 %v2692, %v2694
        %v2696 = vadd.f32 %v2692, %v2695
        %vm2697 = vweird.f32 %v2691
        %vm2698 = vweird.f32 %v2692
        %vm2699 = vmor %vm2697, %vm2698
        %v2700 = vsel %vm2699, %v2692, %v2696
        %v2701 = vand.u32 2147483647, %v2691
        %vm2702 = vcmp.eq.f32.partialorder %v2701, 8.507059e+37
        %v2703 = vand.u32 %v2691, 2147483648
        %v2704 = vor.u32 1.1754944e-38, %v2703
        %v2705 = vsel %vm2702, %v2704, %v2700
        %v2706 = vmul.f32 %v2681, %v2705
        %v2707 = vmin.f32 %v2706, 1.0
        %v2708 = vmax.f32 %v2707, -1.0
        %v2709 = vmul.f32 %v2342, %v2342
        %v2710 = vmin.f32 16.0, %v2709
        %v2711 = vmul.f32 %v2710, 2.1237322e-06
        %v2712 = vadd.f32 %v2711, 0.00028619796
        %v2713 = vmul.f32 %v2710, %v2712
        %v2714 = vadd.f32 %v2713, 0.0036580483
        %v2715 = vmul.f32 %v2710, %v2714
        %v2716 = vadd.f32 %v2715, 0.05243302
        %v2717 = vmul.f32 %v2710, %v2716
        %v2718 = vadd.f32 %v2717, 0.18741608
        %v2719 = vmul.f32 %v2710, %v2718
        %v2720 = vadd.f32 %v2719, 1.1283791
        %v2721 = vmul.f32 %v2342, %v2720
        %v2722 = vmul.f32 %v2710, 3.8918573e-05
        %v2723 = vadd.f32 %v2722, 0.001143296
        %v2724 = vmul.f32 %v2710, %v2723
        %v2725 = vadd.f32 %v2724, 0.014752088
        %v2726 = vmul.f32 %v2710, %v2725
        %v2727 = vadd.f32 %v2726, 0.112945676
        %v2728 = vmul.f32 %v2710, %v2727
        %v2729 = vadd.f32 %v2728, 0.4994258
        %v2730 = vmul.f32 %v2710, %v2729
        %v2731 = vadd.f32 %v2730, 1.0
        %v2732 = vrcp.pop %v2731
        %v2733 = vmul.f32 %v2731, %v2732
        %v2734 = vsub.f32 1.0, %v2733
        %v2735 = vmul.f32 %v2732, %v2734
        %v2736 = vadd.f32 %v2732, %v2735
        %vm2737 = vweird.f32 %v2731
        %vm2738 = vweird.f32 %v2732
        %vm2739 = vmor %vm2737, %vm2738
        %v2740 = vsel %vm2739, %v2732, %v2736
        %v2741 = vand.u32 2147483647, %v2731
        %vm2742 = vcmp.eq.f32.partialorder %v2741, 8.507059e+37
        %v2743 = vand.u32 %v2731, 2147483648
        %v2744 = vor.u32 1.1754944e-38, %v2743
        %v2745 = vsel %vm2742, %v2744, %v2740
        %v2746 = vmul.f32 %v2721, %v2745
        %v2747 = vmin.f32 %v2746, 1.0
        %v2748 = vmax.f32 %v2747, -1.0
        %v2749 = vmul.f32 %v2343, %v2343
        %v2750 = vmin.f32 16.0, %v2749
        %v2751 = vmul.f32 %v2750, 2.1237322e-06
        %v2752 = vadd.f32 %v2751, 0.00028619796
        %v2753 = vmul.f32 %v2750, %v2752
        %v2754 = vadd.f32 %v2753, 0.0036580483
        %v2755 = vmul.f32 %v2750, %v2754
        %v2756 = vadd.f32 %v2755, 0.05243302
        %v2757 = vmul.f32 %v2750, %v2756
        %v2758 = vadd.f32 %v2757, 0.18741608
        %v2759 = vmul.f32 %v2750, %v2758
        %v2760 = vadd.f32 %v2759, 1.1283791
        %v2761 = vmul.f32 %v2343, %v2760
        %v2762 = vmul.f32 %v2750, 3.8918573e-05
        %v2763 = vadd.f32 %v2762, 0.001143296
        %v2764 = vmul.f32 %v2750, %v2763
        %v2765 = vadd.f32 %v2764, 0.014752088
        %v2766 = vmul.f32 %v2750, %v2765
        %v2767 = vadd.f32 %v2766, 0.112945676
        %v2768 = vmul.f32 %v2750, %v2767
        %v2769 = vadd.f32 %v2768, 0.4994258
        %v2770 = vmul.f32 %v2750, %v2769
        %v2771 = vadd.f32 %v2770, 1.0
        %v2772 = vrcp.pop %v2771
        %v2773 = vmul.f32 %v2771, %v2772
        %v2774 = vsub.f32 1.0, %v2773
        %v2775 = vmul.f32 %v2772, %v2774
        %v2776 = vadd.f32 %v2772, %v2775
        %vm2777 = vweird.f32 %v2771
        %vm2778 = vweird.f32 %v2772
        %vm2779 = vmor %vm2777, %vm2778
        %v2780 = vsel %vm2779, %v2772, %v2776
        %v2781 = vand.u32 2147483647, %v2771
        %vm2782 = vcmp.eq.f32.partialorder %v2781, 8.507059e+37
        %v2783 = vand.u32 %v2771, 2147483648
        %v2784 = vor.u32 1.1754944e-38, %v2783
        %v2785 = vsel %vm2782, %v2784, %v2780
        %v2786 = vmul.f32 %v2761, %v2785
        %v2787 = vmin.f32 %v2786, 1.0
        %v2788 = vmax.f32 %v2787, -1.0
        %v2789 = vmul.f32 %v2344, %v2344
        %v2790 = vmin.f32 16.0, %v2789
        %v2791 = vmul.f32 %v2790, 2.1237322e-06
        %v2792 = vadd.f32 %v2791, 0.00028619796
        %v2793 = vmul.f32 %v2790, %v2792
        %v2794 = vadd.f32 %v2793, 0.0036580483
        %v2795 = vmul.f32 %v2790, %v2794
        %v2796 = vadd.f32 %v2795, 0.05243302
        %v2797 = vmul.f32 %v2790, %v2796
        %v2798 = vadd.f32 %v2797, 0.18741608
        %v2799 = vmul.f32 %v2790, %v2798
        %v2800 = vadd.f32 %v2799, 1.1283791
        %v2801 = vmul.f32 %v2344, %v2800
        %v2802 = vmul.f32 %v2790, 3.8918573e-05
        %v2803 = vadd.f32 %v2802, 0.001143296
        %v2804 = vmul.f32 %v2790, %v2803
        %v2805 = vadd.f32 %v2804, 0.014752088
        %v2806 = vmul.f32 %v2790, %v2805
        %v2807 = vadd.f32 %v2806, 0.112945676
        %v2808 = vmul.f32 %v2790, %v2807
        %v2809 = vadd.f32 %v2808, 0.4994258
        %v2810 = vmul.f32 %v2790, %v2809
        %v2811 = vadd.f32 %v2810, 1.0
        %v2812 = vrcp.pop %v2811
        %v2813 = vmul.f32 %v2811, %v2812
        %v2814 = vsub.f32 1.0, %v2813
        %v2815 = vmul.f32 %v2812, %v2814
        %v2816 = vadd.f32 %v2812, %v2815
        %vm2817 = vweird.f32 %v2811
        %vm2818 = vweird.f32 %v2812
        %vm2819 = vmor %vm2817, %vm2818
        %v2820 = vsel %vm2819, %v2812, %v2816
        %v2821 = vand.u32 2147483647, %v2811
        %vm2822 = vcmp.eq.f32.partialorder %v2821, 8.507059e+37
        %v2823 = vand.u32 %v2811, 2147483648
        %v2824 = vor.u32 1.1754944e-38, %v2823
        %v2825 = vsel %vm2822, %v2824, %v2820
        %v2826 = vmul.f32 %v2801, %v2825
        %v2827 = vmin.f32 %v2826, 1.0
        %v2828 = vmax.f32 %v2827, -1.0
        %v2829 = vmul.f32 %v2345, %v2345
        %v2830 = vmin.f32 16.0, %v2829
        %v2831 = vmul.f32 %v2830, 2.1237322e-06
        %v2832 = vadd.f32 %v2831, 0.00028619796
        %v2833 = vmul.f32 %v2830, %v2832
        %v2834 = vadd.f32 %v2833, 0.0036580483
        %v2835 = vmul.f32 %v2830, %v2834
        %v2836 = vadd.f32 %v2835, 0.05243302
        %v2837 = vmul.f32 %v2830, %v2836
        %v2838 = vadd.f32 %v2837, 0.18741608
        %v2839 = vmul.f32 %v2830, %v2838
        %v2840 = vadd.f32 %v2839, 1.1283791
        %v2841 = vmul.f32 %v2345, %v2840
        %v2842 = vmul.f32 %v2830, 3.8918573e-05
        %v2843 = vadd.f32 %v2842, 0.001143296
        %v2844 = vmul.f32 %v2830, %v2843
        %v2845 = vadd.f32 %v2844, 0.014752088
        %v2846 = vmul.f32 %v2830, %v2845
        %v2847 = vadd.f32 %v2846, 0.112945676
        %v2848 = vmul.f32 %v2830, %v2847
        %v2849 = vadd.f32 %v2848, 0.4994258
        %v2850 = vmul.f32 %v2830, %v2849
        %v2851 = vadd.f32 %v2850, 1.0
        %v2852 = vrcp.pop %v2851
        %v2853 = vmul.f32 %v2851, %v2852
        %v2854 = vsub.f32 1.0, %v2853
        %v2855 = vmul.f32 %v2852, %v2854
        %v2856 = vadd.f32 %v2852, %v2855
        %vm2857 = vweird.f32 %v2851
        %vm2858 = vweird.f32 %v2852
        %vm2859 = vmor %vm2857, %vm2858
        %v2860 = vsel %vm2859, %v2852, %v2856
        %v2861 = vand.u32 2147483647, %v2851
        %vm2862 = vcmp.eq.f32.partialorder %v2861, 8.507059e+37
        %v2863 = vand.u32 %v2851, 2147483648
        %v2864 = vor.u32 1.1754944e-38, %v2863
        %v2865 = vsel %vm2862, %v2864, %v2860
        %v2866 = vmul.f32 %v2841, %v2865
        %v2867 = vmin.f32 %v2866, 1.0
        %v2868 = vmax.f32 %v2867, -1.0
        %v2869 = vmul.f32 %v2346, %v2346
        %v2870 = vmin.f32 16.0, %v2869
        %v2871 = vmul.f32 %v2870, 2.1237322e-06
        %v2872 = vadd.f32 %v2871, 0.00028619796
        %v2873 = vmul.f32 %v2870, %v2872
        %v2874 = vadd.f32 %v2873, 0.0036580483
        %v2875 = vmul.f32 %v2870, %v2874
        %v2876 = vadd.f32 %v2875, 0.05243302
        %v2877 = vmul.f32 %v2870, %v2876
        %v2878 = vadd.f32 %v2877, 0.18741608
        %v2879 = vmul.f32 %v2870, %v2878
        %v2880 = vadd.f32 %v2879, 1.1283791
        %v2881 = vmul.f32 %v2346, %v2880
        %v2882 = vmul.f32 %v2870, 3.8918573e-05
        %v2883 = vadd.f32 %v2882, 0.001143296
        %v2884 = vmul.f32 %v2870, %v2883
        %v2885 = vadd.f32 %v2884, 0.014752088
        %v2886 = vmul.f32 %v2870, %v2885
        %v2887 = vadd.f32 %v2886, 0.112945676
        %v2888 = vmul.f32 %v2870, %v2887
        %v2889 = vadd.f32 %v2888, 0.4994258
        %v2890 = vmul.f32 %v2870, %v2889
        %v2891 = vadd.f32 %v2890, 1.0
        %v2892 = vrcp.pop %v2891
        %v2893 = vmul.f32 %v2891, %v2892
        %v2894 = vsub.f32 1.0, %v2893
        %v2895 = vmul.f32 %v2892, %v2894
        %v2896 = vadd.f32 %v2892, %v2895
        %vm2897 = vweird.f32 %v2891
        %vm2898 = vweird.f32 %v2892
        %vm2899 = vmor %vm2897, %vm2898
        %v2900 = vsel %vm2899, %v2892, %v2896
        %v2901 = vand.u32 2147483647, %v2891
        %vm2902 = vcmp.eq.f32.partialorder %v2901, 8.507059e+37
        %v2903 = vand.u32 %v2891, 2147483648
        %v2904 = vor.u32 1.1754944e-38, %v2903
        %v2905 = vsel %vm2902, %v2904, %v2900
        %v2906 = vmul.f32 %v2881, %v2905
        %v2907 = vmin.f32 %v2906, 1.0
        %v2908 = vmax.f32 %v2907, -1.0
        %v2909 = vmul.f32 %v2347, %v2347
        %v2910 = vmin.f32 16.0, %v2909
        %v2911 = vmul.f32 %v2910, 2.1237322e-06
        %v2912 = vadd.f32 %v2911, 0.00028619796
        %v2913 = vmul.f32 %v2910, %v2912
        %v2914 = vadd.f32 %v2913, 0.0036580483
        %v2915 = vmul.f32 %v2910, %v2914
        %v2916 = vadd.f32 %v2915, 0.05243302
        %v2917 = vmul.f32 %v2910, %v2916
        %v2918 = vadd.f32 %v2917, 0.18741608
        %v2919 = vmul.f32 %v2910, %v2918
        %v2920 = vadd.f32 %v2919, 1.1283791
        %v2921 = vmul.f32 %v2347, %v2920
        %v2922 = vmul.f32 %v2910, 3.8918573e-05
        %v2923 = vadd.f32 %v2922, 0.001143296
        %v2924 = vmul.f32 %v2910, %v2923
        %v2925 = vadd.f32 %v2924, 0.014752088
        %v2926 = vmul.f32 %v2910, %v2925
        %v2927 = vadd.f32 %v2926, 0.112945676
        %v2928 = vmul.f32 %v2910, %v2927
        %v2929 = vadd.f32 %v2928, 0.4994258
        %v2930 = vmul.f32 %v2910, %v2929
        %v2931 = vadd.f32 %v2930, 1.0
        %v2932 = vrcp.pop %v2931
        %v2933 = vmul.f32 %v2931, %v2932
        %v2934 = vsub.f32 1.0, %v2933
        %v2935 = vmul.f32 %v2932, %v2934
        %v2936 = vadd.f32 %v2932, %v2935
        %vm2937 = vweird.f32 %v2931
        %vm2938 = vweird.f32 %v2932
        %vm2939 = vmor %vm2937, %vm2938
        %v2940 = vsel %vm2939, %v2932, %v2936
        %v2941 = vand.u32 2147483647, %v2931
        %vm2942 = vcmp.eq.f32.partialorder %v2941, 8.507059e+37
        %v2943 = vand.u32 %v2931, 2147483648
        %v2944 = vor.u32 1.1754944e-38, %v2943
        %v2945 = vsel %vm2942, %v2944, %v2940
        %v2946 = vmul.f32 %v2921, %v2945
        %v2947 = vmin.f32 %v2946, 1.0
        %v2948 = vmax.f32 %v2947, -1.0
        %v2949 = vmul.f32 %v2348, %v2348
        %v2950 = vmin.f32 16.0, %v2949
        %v2951 = vmul.f32 %v2950, 2.1237322e-06
        %v2952 = vadd.f32 %v2951, 0.00028619796
        %v2953 = vmul.f32 %v2950, %v2952
        %v2954 = vadd.f32 %v2953, 0.0036580483
        %v2955 = vmul.f32 %v2950, %v2954
        %v2956 = vadd.f32 %v2955, 0.05243302
        %v2957 = vmul.f32 %v2950, %v2956
        %v2958 = vadd.f32 %v2957, 0.18741608
        %v2959 = vmul.f32 %v2950, %v2958
        %v2960 = vadd.f32 %v2959, 1.1283791
        %v2961 = vmul.f32 %v2348, %v2960
        %v2962 = vmul.f32 %v2950, 3.8918573e-05
        %v2963 = vadd.f32 %v2962, 0.001143296
        %v2964 = vmul.f32 %v2950, %v2963
        %v2965 = vadd.f32 %v2964, 0.014752088
        %v2966 = vmul.f32 %v2950, %v2965
        %v2967 = vadd.f32 %v2966, 0.112945676
        %v2968 = vmul.f32 %v2950, %v2967
        %v2969 = vadd.f32 %v2968, 0.4994258
        %v2970 = vmul.f32 %v2950, %v2969
        %v2971 = vadd.f32 %v2970, 1.0
        %v2972 = vrcp.pop %v2971
        %v2973 = vmul.f32 %v2971, %v2972
        %v2974 = vsub.f32 1.0, %v2973
        %v2975 = vmul.f32 %v2972, %v2974
        %v2976 = vadd.f32 %v2972, %v2975
        %vm2977 = vweird.f32 %v2971
        %vm2978 = vweird.f32 %v2972
        %vm2979 = vmor %vm2977, %vm2978
        %v2980 = vsel %vm2979, %v2972, %v2976
        %v2981 = vand.u32 2147483647, %v2971
        %vm2982 = vcmp.eq.f32.partialorder %v2981, 8.507059e+37
        %v2983 = vand.u32 %v2971, 2147483648
        %v2984 = vor.u32 1.1754944e-38, %v2983
        %v2985 = vsel %vm2982, %v2984, %v2980
        %v2986 = vmul.f32 %v2961, %v2985
        %v2987 = vmin.f32 %v2986, 1.0
        %v2988 = vmax.f32 %v2987, -1.0
        %v2989 = vadd.f32 %v2388, 1.0
        %v2990 = vadd.f32 %v2428, 1.0
        %v2991 = vadd.f32 %v2468, 1.0
        %v2992 = vadd.f32 %v2508, 1.0
        %v2993 = vadd.f32 %v2548, 1.0
        %v2994 = vadd.f32 %v2588, 1.0
        %v2995 = vadd.f32 %v2628, 1.0
        %v2996 = vadd.f32 %v2668, 1.0
        %v2997 = vadd.f32 %v2708, 1.0
        %v2998 = vadd.f32 %v2748, 1.0
        %v2999 = vadd.f32 %v2788, 1.0
        %v3000 = vadd.f32 %v2828, 1.0
        %v3001 = vadd.f32 %v2868, 1.0
        %v3002 = vadd.f32 %v2908, 1.0
        %v3003 = vadd.f32 %v2948, 1.0
        %v3004 = vadd.f32 %v2988, 1.0
        %v3005 = vmul.f32 %v2317, %v2989
        %v3006 = vmul.f32 %v2318, %v2990
        %v3007 = vmul.f32 %v2319, %v2991
        %v3008 = vmul.f32 %v2320, %v2992
        %v3009 = vmul.f32 %v2321, %v2993
        %v3010 = vmul.f32 %v2322, %v2994
        %v3011 = vmul.f32 %v2323, %v2995
        %v3012 = vmul.f32 %v2324, %v2996
        %v3013 = vmul.f32 %v2325, %v2997
        %v3014 = vmul.f32 %v2326, %v2998
        %v3015 = vmul.f32 %v2327, %v2999
        %v3016 = vmul.f32 %v2328, %v3000
        %v3017 = vmul.f32 %v2329, %v3001
        %v3018 = vmul.f32 %v2330, %v3002
        %v3019 = vmul.f32 %v2331, %v3003
        %v3020 = vmul.f32 %v2332, %v3004
        %3021 = vset.pattern.permute.xlu0 11
        %3022 = vperm.xlu0 %3021, %v689
        %v3023 = vpop.permute.xlu0 %3022
        %3025 = vset.pattern.permute.xlu0 11
        %3026 = vperm.xlu0 %3025, %v690
        %v3027 = vpop.permute.xlu0 %3026
        %3029 = vset.pattern.permute.xlu0 11
        %3030 = vperm.xlu0 %3029, %v691
        %v3031 = vpop.permute.xlu0 %3030
        %3033 = vset.pattern.permute.xlu0 11
        %3034 = vperm.xlu0 %3033, %v692
        %v3035 = vpop.permute.xlu0 %3034
        %3037 = vset.pattern.permute.xlu0 11
        %3038 = vperm.xlu0 %3037, %v693
        %v3039 = vpop.permute.xlu0 %3038
        %3041 = vset.pattern.permute.xlu0 11
        %3042 = vperm.xlu0 %3041, %v694
        %v3043 = vpop.permute.xlu0 %3042
        %3045 = vset.pattern.permute.xlu0 11
        %3046 = vperm.xlu0 %3045, %v695
        %v3047 = vpop.permute.xlu0 %3046
        %3049 = vset.pattern.permute.xlu0 11
        %3050 = vperm.xlu0 %3049, %v696
        %v3051 = vpop.permute.xlu0 %3050
        %v3053 = vmul.f32 %v3023, %v3005
        %v3054 = vmul.f32 %v3023, %v3006
        %v3055 = vmul.f32 %v3027, %v3007
        %v3056 = vmul.f32 %v3027, %v3008
        %v3057 = vmul.f32 %v3031, %v3009
        %v3058 = vmul.f32 %v3031, %v3010
        %v3059 = vmul.f32 %v3035, %v3011
        %v3060 = vmul.f32 %v3035, %v3012
        %v3061 = vmul.f32 %v3039, %v3013
        %v3062 = vmul.f32 %v3039, %v3014
        %v3063 = vmul.f32 %v3043, %v3015
        %v3064 = vmul.f32 %v3043, %v3016
        %v3065 = vmul.f32 %v3047, %v3017
        %v3066 = vmul.f32 %v3047, %v3018
        %v3067 = vmul.f32 %v3051, %v3019
        %v3068 = vmul.f32 %v3051, %v3020
        %v3069 = vadd.f32 %v3053, %v3055
        %v3070 = vadd.f32 %v3069, %v3057
        %v3071 = vadd.f32 %v3070, %v3059
        %v3072 = vadd.f32 %v3071, %v3061
        %v3073 = vadd.f32 %v3072, %v3063
        %v3074 = vadd.f32 %v3073, %v3065
        %v3075 = vadd.f32 %v3074, %v3067
        %v3076 = vrot.slane %v3075, 4
        %v3077 = vadd.f32 %v3075, %v3076
        %v3078 = vrot.slane %v3077, 2
        %v3079 = vadd.f32 %v3077, %v3078
        %v3080 = vrot.slane %v3079, 1
        %v3081 = vadd.f32 %v3079, %v3080
        %v3082 = vadd.f32 %v3054, %v3056
        %v3083 = vadd.f32 %v3082, %v3058
        %v3084 = vadd.f32 %v3083, %v3060
        %v3085 = vadd.f32 %v3084, %v3062
        %v3086 = vadd.f32 %v3085, %v3064
        %v3087 = vadd.f32 %v3086, %v3066
        %v3088 = vadd.f32 %v3087, %v3068
        %v3089 = vrot.slane %v3088, 4
        %v3090 = vadd.f32 %v3088, %v3089
        %v3091 = vrot.slane %v3090, 2
        %v3092 = vadd.f32 %v3090, %v3091
        %v3093 = vrot.slane %v3092, 1
        %v3094 = vadd.f32 %v3092, %v3093
        %3095 = vset.pattern.permute.xlu0 1
        %3096 = vperm.xlu0 %3095, %v1890
        %v3097 = vpop.permute.xlu0 %3096
        %v3099 = vperm.slane %v3097, 0
        %v3100 = vadd.f32 %v3081, %v3099
        %v3101 = vadd.f32 %v3094, %v3099
        %v3102 = vadd.f32 %v3100, %v1899
        %v3103 = vadd.f32 %v3101, %v1900
        %v3106 = vrot.slane %v3103, 7
        %v3107 = vsel %vm1905, %v3102, %v3106
        %v3109 = vlaneseq
        %vm3110 = vcmp.ge.s32.totalorder %v3109, 0
        %vm3111 = vcmp.lt.s32.totalorder %v3109, 256
        %vm3112 = vmand %vm3110, %vm3111
        %3113 = vst.msk [vmem:[%s319] sm:$0x3] %vm3112, %v3107
        %s3114 = sand.u32 %s192, 1
        %s3115 = scalar_lea.sflag [#allocation4], %s3114
        %s3116 = sand.u32 %s192, 1
        %s3117 = smul.addr %s3116, 2
        %s3118 = scalar_lea.vmem [#allocation5], %s3117
        // Predicated region
        $region53: #{tpu_custom_call.1} parent=47 // pred_check
          %p3119 = pneg %p202
        $region54: #{tpu_custom_call.1} parent=47 // pred_check_branch
          %3121 = sbr.rel (%p3119) target = $region56
        $region55: #{tpu_custom_call.1} parent=47 // pred_region
          %s3122 = smul.u32 2, %s22
          %3124 = vsyncadd %s3115, 0
          %s3125 = scalar_lea.hbm %s7, %s3122
          %s3127 = sshll.u32 %s3118, 4
          %s3128 = int_to_ptr.vmem [resolvable:$true] %s3127
          %s3129 = sshll.u32 %s3125, 4
          %s3130 = int_to_ptr.hbm [resolvable:$true] %s3129
          %3132 = dma.vmem_to_hbm [thread:$0]  %s3128, 32, %s3130, %s3115
        $region56: #{tpu_custom_call.1} parent=47 // pred_fallthru
          _
      $region48: #{tpu_custom_call.1} parent=5 // pred_fallthru
        _
      %p3133 = scmp.le.s32.totalorder 2, %s17
      // Predicated region
      $region57: #{tpu_custom_call.1} parent=5 // pred_check
        %p3134 = pneg %p3133
      $region58: #{tpu_custom_call.1} parent=5 // pred_check_branch
        %3136 = sbr.rel (%p3134) target = $region60
      $region59: #{tpu_custom_call.1} parent=5 // pred_region
        %s3137 = ssub.s32 %s17, 2
        // Predicated region
        $region61: #{tpu_custom_call.1} parent=59 // pred_check
          %p3138 = pneg %p208
        $region62: #{tpu_custom_call.1} parent=59 // pred_check_branch
          %3140 = sbr.rel (%p3138) target = $region64
        $region63: #{tpu_custom_call.1} parent=59 // pred_region
          %s3141 = sand.u32 %s193, 1
          %s3142 = scalar_lea.sflag [#allocation4], %s3141
          %s3143 = sand.u32 %s193, 1
          %s3144 = smul.addr %s3143, 2
          %s3145 = scalar_lea.vmem [#allocation5], %s3144
          %3147 = dma.done %s3142, 32
        $region64: #{tpu_custom_call.1} parent=59 // pred_fallthru
          _
      $region60: #{tpu_custom_call.1} parent=5 // pred_fallthru
        _
    $region6: #{tpu_custom_call.1} parent=1 // loop_footer
      %s21 = sadd.s32 1, %s17
    $region7: #{tpu_custom_call.1} parent=1 // loop_footer_branch
      %16 = sbr.rel target = $region3
    $region8: #{tpu_custom_call.1} parent=1 // loop_exit
      _
    %3148 = vsyncpa [#allocation3], 1
    %s3149 = scalar_lea.sflag [#allocation3], 1
    %3150 = vsyncpa %s3149, 1
    %3151 = vsyncpa [#allocation4], 1
    %s3152 = scalar_lea.sflag [#allocation4], 1
    %3153 = vsyncpa %s3152, 1

</llo_original>
